<compile_context>
chip_gen: v7x
topology: tpu7x:2x2x1
jax: 0.10.0
libtpu: 0.0.40
codegen_flags: <defaults>
</compile_context>

<pallas_src>
import functools

import jax
import jax.numpy as jnp
import numpy as np
from jax import lax
from jax.experimental import pallas as pl
from jax.experimental.pallas import tpu as pltpu


# ----------------------------------------------------------------------------
# Pallas kernel
# ----------------------------------------------------------------------------
def _make_kernel(factor_x, factor_y):
    def kernel(a_ref, b_ref, w_ref, coords_ref, out_ref, xpad_ref, disp_ref):
        # a_ref, b_ref : (C, X, Y)        VMEM  channels-first images (pt-invariant blocks)
        # w_ref        : (2, 9*Cin + 1)   SMEM  conv weights (col = tap*Cin + cin), last col = bias
        # coords_ref   : (2, PT)          VMEM  physical coords for this P tile, lane-dense
        # out_ref      : (2, PT)          VMEM  transformed coords for this P tile
        # xpad_ref     : (Cin, X+2, Y+2)  VMEM  scratch: zero-padded conv input (per batch)
        # disp_ref     : (2X, Y)          VMEM  scratch: channel-stacked displacement field
        C = a_ref.shape[0]
        cin = 2 * C
        X, Y = a_ref.shape[1], a_ref.shape[2]
        PT = coords_ref.shape[1]

        # ---- once per batch (first P tile): Conv2d(2C -> 2, k=3, pad=1) on the VPU ----
        @pl.when(pl.program_id(1) == 0)
        def _():
            # 1-px zero halo built in VMEM (no padded HBM operand / extra HBM round trip).
            xpad_ref[...] = jnp.zeros_like(xpad_ref)
            for c in range(C):
                xpad_ref[c, 1:X + 1, 1:Y + 1] = a_ref[c]
                xpad_ref[C + c, 1:X + 1, 1:Y + 1] = b_ref[c]

            def tap_body(c, accs):
                acc0, acc1 = accs
                plane = xpad_ref[c]                               # (X+2, Y+2), dyn. channel idx
                for kh in range(3):
                    for kw in range(3):
                        t = plane[kh:kh + X, kw:kw + Y]           # (X, Y) shifted view
                        widx = (kh * 3 + kw) * cin + c
                        acc0 = acc0 + w_ref[0, widx] * t
                        acc1 = acc1 + w_ref[1, widx] * t
                return acc0, acc1

            acc0, acc1 = lax.fori_loop(
                0, cin, tap_body,
                (jnp.zeros((X, Y), jnp.float32), jnp.zeros((X, Y), jnp.float32)),
                unroll=True)
            acc0 = acc0 + w_ref[0, 9 * cin]                       # + bias_x
            acc1 = acc1 + w_ref[1, 9 * cin]                       # + bias_y
            # Channel-stacked (2X, Y) layout so the warp is one MXU matmul; stored in the
            # warp dtype (bf16 by default) so the cast happens once per batch, not per tile.
            disp_ref[0:X, :] = acc0.astype(disp_ref.dtype)
            disp_ref[X:2 * X, :] = acc1.astype(disp_ref.dtype)

        # ---- every P tile: separable bilinear warp of the displacement at `coords` ----
        # scale_map + grid_sample(mode='bilinear', padding='border', align_corners=True)
        coords = coords_ref[...]                                  # (2, PT), lane-dense
        px = jnp.clip(coords[0:1, :] * factor_x, 0.0, X - 1.0)    # (1, PT)
        py = jnp.clip(coords[1:2, :] * factor_y, 0.0, Y - 1.0)

        xi = lax.broadcasted_iota(jnp.int32, (X, PT), 0).astype(jnp.float32)
        yi = lax.broadcasted_iota(jnp.int32, (Y, PT), 0).astype(jnp.float32)
        # Bilinear "tent" weights; px/py are pre-clipped so weight 1 lands on the clamped
        # border row/col — identical to padding_mode='border'.
        w_row = jnp.maximum(1.0 - jnp.abs(xi - px), 0.0)          # (X, PT)
        w_col = jnp.maximum(1.0 - jnp.abs(yi - py), 0.0)          # (Y, PT)

        # Single MXU matmul for both channels: (2X, Y) @ (Y, PT) with f32 accumulation.
        r = jnp.dot(disp_ref[...], w_col.astype(disp_ref.dtype),
                    preferred_element_type=jnp.float32)           # (2X, PT)
        warped0 = jnp.sum(r[0:X, :] * w_row, axis=0, keepdims=True)     # (1, PT)
        warped1 = jnp.sum(r[X:2 * X, :] * w_row, axis=0, keepdims=True)

        # Two direct lane-dense row stores (no (2,PT) concat temporary).
        out_ref[0:1, :] = (coords[0:1, :] + warped0).astype(out_ref.dtype)
        out_ref[1:2, :] = (coords[1:2, :] + warped1).astype(out_ref.dtype)

    return kernel


def _choose_pt(P, cap):
    """Largest lane-dense P tile: full P if small, else a 128-multiple divisor <= cap."""
    if P <= cap:
        return P
    pt = (cap // 128) * 128
    while pt >= 128:
        if P % pt == 0:
            return pt
        pt -= 128
    # TODO(synk): pad/mask ragged P (no 128-multiple divisor); falls back to untiled.
    return P


# ----------------------------------------------------------------------------
# Wrapper (layout glue + pallas_call)
# ----------------------------------------------------------------------------
@functools.partial(jax.jit, static_argnames=("spacing", "warp_dtype", "pt_cap"))
def phi_ab_apply(image_A, image_B, coords, conv_w, conv_b, *, spacing,
                 warp_dtype=jnp.bfloat16, pt_cap=4096):
    """phi_AB(coords) = coords + bilinear_warp(net(image_A, image_B), coords).

    image_A/image_B: (B, C, X, Y) channels-first (PyTorch BCXY); coords: (B, 2, X, Y).
    conv_w: (3, 3, 2C, 2) HWIO; conv_b: (2,).  Returns (B, 2, X, Y).
    pt_cap: P-tile cap in lanes — ~2048-4096 keeps v7x (64 MiB VMEM) safe; raise to
    8192+ on v5e/v6e (128 MiB) to cut grid-step overhead.
    """
    B, C, X, Y = image_A.shape
    cin = 2 * C
    P = X * Y
    PT = _choose_pt(P, pt_cap)
    n_pt = P // PT

    img_a = image_A.astype(jnp.float32)
    img_b = image_B.astype(jnp.float32)
    coordsP = coords.reshape(B, 2, P).astype(jnp.float32)          # lane-dense point axis

    # SMEM weight table: row c = [w[c, tap*Cin + cin] ..., bias_c]
    w_tbl = jnp.concatenate(
        [jnp.transpose(conv_w, (3, 0, 1, 2)).reshape(2, 9 * cin),
         conv_b.reshape(2, 1)],
        axis=1).astype(jnp.float32)                                # (2, 9*Cin + 1)

    sx, sy = float(spacing[0]), float(spacing[1])
    # scale_map: s = phi * (2/(sz-1)/spacing) - 1 ; align_corners=True: pix = (s+1)*0.5*(sz-1)
    factor_x = (2.0 / (X - 1.0) / sx) * 0.5 * (X - 1.0)
    factor_y = (2.0 / (Y - 1.0) / sy) * 0.5 * (Y - 1.0)

    kernel = _make_kernel(factor_x, factor_y)

    # Explicit VMEM budget: image blocks + coords/out double buffers + scratch + per-tile temps.
    warp_bytes = jnp.dtype(warp_dtype).itemsize
    est = (2 * (C * X * Y * 4)                       # a, b blocks (pt-invariant, single buffer)
           + 2 * (2 * PT * 4) * 2                    # coords + out blocks, double-buffered
           + cin * (X + 2) * (Y + 2) * 4             # padded-conv-input scratch
           + 2 * X * Y * warp_bytes                  # displacement scratch
           + (4 * X + 3 * Y) * PT * 4)               # w_row, w_col, r, iotas, misc temps
    vmem_limit = int(min(max(2 * est, 32 * 1024 * 1024), 64 * 1024 * 1024))

    outP = pl.pallas_call(
        kernel,
        out_shape=jax.ShapeDtypeStruct((B, 2, P), jnp.float32),
        grid_spec=pltpu.PrefetchScalarGridSpec(
            num_scalar_prefetch=0,
            grid=(B, n_pt),
            in_specs=[
                pl.BlockSpec((None, C, X, Y), lambda i, t: (i, 0, 0, 0)),
                pl.BlockSpec((None, C, X, Y), lambda i, t: (i, 0, 0, 0)),
                pl.BlockSpec((2, 9 * cin + 1), lambda i, t: (0, 0),
                             memory_space=pltpu.MemorySpace.SMEM),
                pl.BlockSpec((None, 2, PT), lambda i, t: (i, 0, t)),
            ],
            out_specs=pl.BlockSpec((None, 2, PT), lambda i, t: (i, 0, t)),
            scratch_shapes=[
                pltpu.VMEM((cin, X + 2, Y + 2), jnp.float32),      # padded conv input
                pltpu.VMEM((2 * X, Y), warp_dtype),                # displacement field
            ],
        ),
        compiler_params=pltpu.CompilerParams(
            # pt axis must stay "arbitrary": the conv is cached in scratch at pt==0.
            dimension_semantics=("parallel", "arbitrary"),
            vmem_limit_bytes=vmem_limit),
    )(img_a, img_b, w_tbl, coordsP)

    return outP.reshape(B, 2, X, Y)


# ----------------------------------------------------------------------------
# Pure-JAX reference (same math, plain XLA ops) for the correctness check
# ----------------------------------------------------------------------------
def reference(image_A, image_B, coords, conv_w_hwio, conv_b, spacing):
    B, _, X, Y = coords.shape
    xcat = jnp.concatenate([image_A, image_B], axis=1)              # (B, 2C, X, Y)
    disp = lax.conv_general_dilated(
        xcat, conv_w_hwio, window_strides=(1, 1), padding="SAME",
        dimension_numbers=("NCHW", "HWIO", "NCHW"),
        precision=lax.Precision.HIGHEST) + conv_b.reshape(1, 2, 1, 1)

    sx, sy = float(spacing[0]), float(spacing[1])
    factor_x = (2.0 / (X - 1.0) / sx) * 0.5 * (X - 1.0)
    factor_y = (2.0 / (Y - 1.0) / sy) * 0.5 * (Y - 1.0)

    outs = []
    for b in range(B):
        px = jnp.clip(coords[b, 0] * factor_x, 0.0, X - 1.0)
        py = jnp.clip(coords[b, 1] * factor_y, 0.0, Y - 1.0)
        x0 = jnp.floor(px); y0 = jnp.floor(py)
        fx = px - x0;       fy = py - y0
        x0i = x0.astype(jnp.int32); y0i = y0.astype(jnp.int32)
        x1i = jnp.minimum(x0i + 1, X - 1); y1i = jnp.minimum(y0i + 1, Y - 1)
        d = jnp.transpose(disp[b], (1, 2, 0))                       # (X, Y, 2)
        v = (((1 - fx) * (1 - fy))[..., None] * d[x0i, y0i]
             + ((1 - fx) * fy)[..., None] * d[x0i, y1i]
             + (fx * (1 - fy))[..., None] * d[x1i, y0i]
             + (fx * fy)[..., None] * d[x1i, y1i])
        outs.append(coords[b] + jnp.transpose(v, (2, 0, 1)))
    return jnp.stack(outs)


# ----------------------------------------------------------------------------
if __name__ == "__main__":
    B, C, X, Y = 2, 4, 16, 16          # images: (B, C, X, Y) BCXY; coords: (B, 2, X, Y)
    spacing = (1.0 / (X - 1), 1.0 / (Y - 1))

    key = jax.random.PRNGKey(0)
    k_a, k_b, k_w, k_bias, k_c = jax.random.split(key, 5)

    image_A = jax.random.normal(k_a, (B, C, X, Y), dtype=jnp.float32)
    image_B = jax.random.normal(k_b, (B, C, X, Y), dtype=jnp.float32)

    # deterministic synthetic inner net: Conv2d(2C -> 2, kernel=3, padding=1)
    conv_w = 0.1 * jax.random.normal(k_w, (3, 3, 2 * C, 2), dtype=jnp.float32)   # HWIO
    conv_b = 0.01 * jax.random.normal(k_bias, (2,), dtype=jnp.float32)

    # coordinates: identity map (physical coords, B x dim x X x Y) + small perturbation
    ix = jnp.arange(X, dtype=jnp.float32) * spacing[0]
    iy = jnp.arange(Y, dtype=jnp.float32) * spacing[1]
    ident = jnp.stack(jnp.meshgrid(ix, iy, indexing="ij"), axis=0)               # (2, X, Y)
    coords = ident[None] + 0.03 * jax.random.normal(k_c, (B, 2, X, Y), dtype=jnp.float32)

    ref = reference(image_A, image_B, coords, conv_w, conv_b, spacing)

    # exact path: f32 warp matmul, tight tolerance
    out_f32 = phi_ab_apply(image_A, image_B, coords, conv_w, conv_b,
                           spacing=spacing, warp_dtype=jnp.float32)
    out_f32 = jax.block_until_ready(out_f32)
    np.testing.assert_allclose(np.asarray(out_f32), np.asarray(ref), rtol=2e-3, atol=2e-3)

    # fast path: bf16 warp matmul on the MXU (f32 accumulation), bf16-level tolerance
    out_bf16 = phi_ab_apply(image_A, image_B, coords, conv_w, conv_b,
                            spacing=spacing, warp_dtype=jnp.bfloat16)
    out_bf16 = jax.block_until_ready(out_bf16)
    np.testing.assert_allclose(np.asarray(out_bf16), np.asarray(ref), rtol=2e-2, atol=2e-2)

    # TODO(synk): GradientICON.forward additionally builds deferred phi_AB/phi_BA closures and
    # similarity / gradient-inverse-consistency losses around an arbitrary regis_net + similarity;
    # here the regis_net is a fixed Conv2d(2C->2) and only the coordinate-transform application
    # (the repeatedly-evaluated hot path) is fused into the Pallas kernel.
    # TODO(synk): for very large X,Y additionally row-tile the per-batch conv (its (X,Y)
    # accumulators exceed the vreg file above ~256^2 and will stream through VMEM).
    print("KERNEL_OK")
</pallas_src>

<mosaic_0001>
module attributes {stable_mosaic.version = 11 : i64} {
  func.func @kernel(%arg0: i32, %arg1: i32, %arg2: memref<1x4x16x16xf32, #tpu.memory_space<vmem>>, %arg3: memref<1x4x16x16xf32, #tpu.memory_space<vmem>>, %arg4: memref<2x73xf32, #tpu.memory_space<smem>>, %arg5: memref<1x2x256xf32, #tpu.memory_space<vmem>>, %arg6: memref<1x2x256xf32, #tpu.memory_space<vmem>>, %arg7: memref<8x18x18xf32, #tpu.memory_space<vmem>>, %arg8: memref<32x16xf32, #tpu.memory_space<vmem>>) attributes {dimension_semantics = [#tpu.dimension_semantics<parallel>, #tpu.dimension_semantics<arbitrary>], iteration_bounds = array<i64: 2, 1>, scalar_prefetch = 0 : i64, scratch_operands = 2 : i64, tpu.core_type = #tpu.core_type<tc>, window_params = [{transform_indices = @transform_0, window_bounds = array<i64: 1, 4, 16, 16>}, {transform_indices = @transform_1, window_bounds = array<i64: 1, 4, 16, 16>}, {transform_indices = @transform_2, window_bounds = array<i64: 2, 73>}, {transform_indices = @transform_3, window_bounds = array<i64: 1, 2, 256>}, {transform_indices = @transform_4, window_bounds = array<i64: 1, 2, 256>}]} {
    %c0_i32 = arith.constant 0 : i32
    %0 = arith.cmpi eq, %arg1, %c0_i32 : i32
    %1 = arith.extui %0 : i1 to i32
    %c0_i32_0 = arith.constant 0 : i32
    %2 = arith.cmpi ne, %1, %c0_i32_0 : i32
    scf.if %2 {
      %cst_22 = arith.constant 0.000000e+00 : f32
      %57 = vector.broadcast %cst_22 : f32 to vector<8x18x18xf32>
      %c0_23 = arith.constant 0 : index
      %c0_24 = arith.constant 0 : index
      %c0_25 = arith.constant 0 : index
      %58 = vector.load %arg7[%c0_23, %c0_24, %c0_25] : memref<8x18x18xf32, #tpu.memory_space<vmem>>, vector<8x18x18xf32>
      tpu.vector_store %arg7[%c0_23, %c0_24, %c0_25], %57 {strides = array<i32>} : memref<8x18x18xf32, #tpu.memory_space<vmem>>, vector<8x18x18xf32>,
      %c0_26 = arith.constant 0 : index
      %c0_27 = arith.constant 0 : index
      %c0_28 = arith.constant 0 : index
      %c0_29 = arith.constant 0 : index
      %59 = vector.load %arg2[%c0_26, %c0_27, %c0_28, %c0_29] : memref<1x4x16x16xf32, #tpu.memory_space<vmem>>, vector<1x1x16x16xf32>
      %60 = vector.shape_cast %59 : vector<1x1x16x16xf32> to vector<16x16xf32>
      %c0_30 = arith.constant 0 : index
      %c1_31 = arith.constant 1 : index
      %c1_32 = arith.constant 1 : index
      %61 = vector.load %arg7[%c0_30, %c1_31, %c1_32] : memref<8x18x18xf32, #tpu.memory_space<vmem>>, vector<1x16x16xf32>
      %62 = vector.shape_cast %61 : vector<1x16x16xf32> to vector<16x16xf32>
      %63 = vector.shape_cast %60 : vector<16x16xf32> to vector<1x16x16xf32>
      tpu.vector_store %arg7[%c0_30, %c1_31, %c1_32], %63 {strides = array<i32>} : memref<8x18x18xf32, #tpu.memory_space<vmem>>, vector<1x16x16xf32>,
      %c0_33 = arith.constant 0 : index
      %c0_34 = arith.constant 0 : index
      %c0_35 = arith.constant 0 : index
      %c0_36 = arith.constant 0 : index
      %64 = vector.load %arg3[%c0_33, %c0_34, %c0_35, %c0_36] : memref<1x4x16x16xf32, #tpu.memory_space<vmem>>, vector<1x1x16x16xf32>
      %65 = vector.shape_cast %64 : vector<1x1x16x16xf32> to vector<16x16xf32>
      %c4 = arith.constant 4 : index
      %c1_37 = arith.constant 1 : index
      %c1_38 = arith.constant 1 : index
      %66 = vector.load %arg7[%c4, %c1_37, %c1_38] : memref<8x18x18xf32, #tpu.memory_space<vmem>>, vector<1x16x16xf32>
      %67 = vector.shape_cast %66 : vector<1x16x16xf32> to vector<16x16xf32>
      %68 = vector.shape_cast %65 : vector<16x16xf32> to vector<1x16x16xf32>
      tpu.vector_store %arg7[%c4, %c1_37, %c1_38], %68 {strides = array<i32>} : memref<8x18x18xf32, #tpu.memory_space<vmem>>, vector<1x16x16xf32>,
      %c0_39 = arith.constant 0 : index
      %c1_40 = arith.constant 1 : index
      %c0_41 = arith.constant 0 : index
      %c0_42 = arith.constant 0 : index
      %69 = vector.load %arg2[%c0_39, %c1_40, %c0_41, %c0_42] : memref<1x4x16x16xf32, #tpu.memory_space<vmem>>, vector<1x1x16x16xf32>
      %70 = vector.shape_cast %69 : vector<1x1x16x16xf32> to vector<16x16xf32>
      %c1_43 = arith.constant 1 : index
      %c1_44 = arith.constant 1 : index
      %c1_45 = arith.constant 1 : index
      %71 = vector.load %arg7[%c1_43, %c1_44, %c1_45] : memref<8x18x18xf32, #tpu.memory_space<vmem>>, vector<1x16x16xf32>
      %72 = vector.shape_cast %71 : vector<1x16x16xf32> to vector<16x16xf32>
      %73 = vector.shape_cast %70 : vector<16x16xf32> to vector<1x16x16xf32>
      tpu.vector_store %arg7[%c1_43, %c1_44, %c1_45], %73 {strides = array<i32>} : memref<8x18x18xf32, #tpu.memory_space<vmem>>, vector<1x16x16xf32>,
      %c0_46 = arith.constant 0 : index
      %c1_47 = arith.constant 1 : index
      %c0_48 = arith.constant 0 : index
      %c0_49 = arith.constant 0 : index
      %74 = vector.load %arg3[%c0_46, %c1_47, %c0_48, %c0_49] : memref<1x4x16x16xf32, #tpu.memory_space<vmem>>, vector<1x1x16x16xf32>
      %75 = vector.shape_cast %74 : vector<1x1x16x16xf32> to vector<16x16xf32>
      %c5 = arith.constant 5 : index
      %c1_50 = arith.constant 1 : index
      %c1_51 = arith.constant 1 : index
      %76 = vector.load %arg7[%c5, %c1_50, %c1_51] : memref<8x18x18xf32, #tpu.memory_space<vmem>>, vector<1x16x16xf32>
      %77 = vector.shape_cast %76 : vector<1x16x16xf32> to vector<16x16xf32>
      %78 = vector.shape_cast %75 : vector<16x16xf32> to vector<1x16x16xf32>
      tpu.vector_store %arg7[%c5, %c1_50, %c1_51], %78 {strides = array<i32>} : memref<8x18x18xf32, #tpu.memory_space<vmem>>, vector<1x16x16xf32>,
      %c0_52 = arith.constant 0 : index
      %c2 = arith.constant 2 : index
      %c0_53 = arith.constant 0 : index
      %c0_54 = arith.constant 0 : index
      %79 = vector.load %arg2[%c0_52, %c2, %c0_53, %c0_54] : memref<1x4x16x16xf32, #tpu.memory_space<vmem>>, vector<1x1x16x16xf32>
      %80 = vector.shape_cast %79 : vector<1x1x16x16xf32> to vector<16x16xf32>
      %c2_55 = arith.constant 2 : index
      %c1_56 = arith.constant 1 : index
      %c1_57 = arith.constant 1 : index
      %81 = vector.load %arg7[%c2_55, %c1_56, %c1_57] : memref<8x18x18xf32, #tpu.memory_space<vmem>>, vector<1x16x16xf32>
      %82 = vector.shape_cast %81 : vector<1x16x16xf32> to vector<16x16xf32>
      %83 = vector.shape_cast %80 : vector<16x16xf32> to vector<1x16x16xf32>
      tpu.vector_store %arg7[%c2_55, %c1_56, %c1_57], %83 {strides = array<i32>} : memref<8x18x18xf32, #tpu.memory_space<vmem>>, vector<1x16x16xf32>,
      %c0_58 = arith.constant 0 : index
      %c2_59 = arith.constant 2 : index
      %c0_60 = arith.constant 0 : index
      %c0_61 = arith.constant 0 : index
      %84 = vector.load %arg3[%c0_58, %c2_59, %c0_60, %c0_61] : memref<1x4x16x16xf32, #tpu.memory_space<vmem>>, vector<1x1x16x16xf32>
      %85 = vector.shape_cast %84 : vector<1x1x16x16xf32> to vector<16x16xf32>
      %c6 = arith.constant 6 : index
      %c1_62 = arith.constant 1 : index
      %c1_63 = arith.constant 1 : index
      %86 = vector.load %arg7[%c6, %c1_62, %c1_63] : memref<8x18x18xf32, #tpu.memory_space<vmem>>, vector<1x16x16xf32>
      %87 = vector.shape_cast %86 : vector<1x16x16xf32> to vector<16x16xf32>
      %88 = vector.shape_cast %85 : vector<16x16xf32> to vector<1x16x16xf32>
      tpu.vector_store %arg7[%c6, %c1_62, %c1_63], %88 {strides = array<i32>} : memref<8x18x18xf32, #tpu.memory_space<vmem>>, vector<1x16x16xf32>,
      %c0_64 = arith.constant 0 : index
      %c3 = arith.constant 3 : index
      %c0_65 = arith.constant 0 : index
      %c0_66 = arith.constant 0 : index
      %89 = vector.load %arg2[%c0_64, %c3, %c0_65, %c0_66] : memref<1x4x16x16xf32, #tpu.memory_space<vmem>>, vector<1x1x16x16xf32>
      %90 = vector.shape_cast %89 : vector<1x1x16x16xf32> to vector<16x16xf32>
      %c3_67 = arith.constant 3 : index
      %c1_68 = arith.constant 1 : index
      %c1_69 = arith.constant 1 : index
      %91 = vector.load %arg7[%c3_67, %c1_68, %c1_69] : memref<8x18x18xf32, #tpu.memory_space<vmem>>, vector<1x16x16xf32>
      %92 = vector.shape_cast %91 : vector<1x16x16xf32> to vector<16x16xf32>
      %93 = vector.shape_cast %90 : vector<16x16xf32> to vector<1x16x16xf32>
      tpu.vector_store %arg7[%c3_67, %c1_68, %c1_69], %93 {strides = array<i32>} : memref<8x18x18xf32, #tpu.memory_space<vmem>>, vector<1x16x16xf32>,
      %c0_70 = arith.constant 0 : index
      %c3_71 = arith.constant 3 : index
      %c0_72 = arith.constant 0 : index
      %c0_73 = arith.constant 0 : index
      %94 = vector.load %arg3[%c0_70, %c3_71, %c0_72, %c0_73] : memref<1x4x16x16xf32, #tpu.memory_space<vmem>>, vector<1x1x16x16xf32>
      %95 = vector.shape_cast %94 : vector<1x1x16x16xf32> to vector<16x16xf32>
      %c7 = arith.constant 7 : index
      %c1_74 = arith.constant 1 : index
      %c1_75 = arith.constant 1 : index
      %96 = vector.load %arg7[%c7, %c1_74, %c1_75] : memref<8x18x18xf32, #tpu.memory_space<vmem>>, vector<1x16x16xf32>
      %97 = vector.shape_cast %96 : vector<1x16x16xf32> to vector<16x16xf32>
      %98 = vector.shape_cast %95 : vector<16x16xf32> to vector<1x16x16xf32>
      tpu.vector_store %arg7[%c7, %c1_74, %c1_75], %98 {strides = array<i32>} : memref<8x18x18xf32, #tpu.memory_space<vmem>>, vector<1x16x16xf32>,
      %cst_76 = arith.constant 0.000000e+00 : f32
      %99 = vector.broadcast %cst_76 : f32 to vector<16x16xf32>
      %cst_77 = arith.constant 0.000000e+00 : f32
      %100 = vector.broadcast %cst_77 : f32 to vector<16x16xf32>
      %c0_i32_78 = arith.constant 0 : i32
      %101 = arith.index_cast %c0_i32_78 : i32 to index
      %c0_79 = arith.constant 0 : index
      %c0_80 = arith.constant 0 : index
      %102 = vector.load %arg7[%101, %c0_79, %c0_80] : memref<8x18x18xf32, #tpu.memory_space<vmem>>, vector<1x18x18xf32>
      %103 = vector.shape_cast %102 : vector<1x18x18xf32> to vector<18x18xf32>
      %104 = vector.extract_strided_slice %103 {offsets = [0, 0], sizes = [16, 16], strides = [1, 1]} : vector<18x18xf32> to vector<16x16xf32>
      %c0_i32_81 = arith.constant 0 : i32
      %105 = arith.addi %c0_i32_81, %c0_i32_78 : i32
      %c0_82 = arith.constant 0 : index
      %106 = arith.index_cast %105 : i32 to index
      %107 = memref.load %arg4[%c0_82, %106] : memref<2x73xf32, #tpu.memory_space<smem>>
      %108 = vector.broadcast %107 : f32 to vector<16x16xf32>
      %109 = arith.mulf %108, %104 : vector<16x16xf32>
      %110 = arith.addf %99, %109 : vector<16x16xf32>
      %c1_83 = arith.constant 1 : index
      %111 = arith.index_cast %105 : i32 to index
      %112 = memref.load %arg4[%c1_83, %111] : memref<2x73xf32, #tpu.memory_space<smem>>
      %113 = vector.broadcast %112 : f32 to vector<16x16xf32>
      %114 = arith.mulf %113, %104 : vector<16x16xf32>
      %115 = arith.addf %100, %114 : vector<16x16xf32>
      %116 = vector.extract_strided_slice %103 {offsets = [0, 1], sizes = [16, 16], strides = [1, 1]} : vector<18x18xf32> to vector<16x16xf32>
      %c8_i32 = arith.constant 8 : i32
      %117 = arith.addi %c8_i32, %c0_i32_78 : i32
      %c0_84 = arith.constant 0 : index
      %118 = arith.index_cast %117 : i32 to index
      %119 = memref.load %arg4[%c0_84, %118] : memref<2x73xf32, #tpu.memory_space<smem>>
      %120 = vector.broadcast %119 : f32 to vector<16x16xf32>
      %121 = arith.mulf %120, %116 : vector<16x16xf32>
      %122 = arith.addf %110, %121 : vector<16x16xf32>
      %c1_85 = arith.constant 1 : index
      %123 = arith.index_cast %117 : i32 to index
      %124 = memref.load %arg4[%c1_85, %123] : memref<2x73xf32, #tpu.memory_space<smem>>
      %125 = vector.broadcast %124 : f32 to vector<16x16xf32>
      %126 = arith.mulf %125, %116 : vector<16x16xf32>
      %127 = arith.addf %115, %126 : vector<16x16xf32>
      %128 = vector.extract_strided_slice %103 {offsets = [0, 2], sizes = [16, 16], strides = [1, 1]} : vector<18x18xf32> to vector<16x16xf32>
      %c16_i32 = arith.constant 16 : i32
      %129 = arith.addi %c16_i32, %c0_i32_78 : i32
      %c0_86 = arith.constant 0 : index
      %130 = arith.index_cast %129 : i32 to index
      %131 = memref.load %arg4[%c0_86, %130] : memref<2x73xf32, #tpu.memory_space<smem>>
      %132 = vector.broadcast %131 : f32 to vector<16x16xf32>
      %133 = arith.mulf %132, %128 : vector<16x16xf32>
      %134 = arith.addf %122, %133 : vector<16x16xf32>
      %c1_87 = arith.constant 1 : index
      %135 = arith.index_cast %129 : i32 to index
      %136 = memref.load %arg4[%c1_87, %135] : memref<2x73xf32, #tpu.memory_space<smem>>
      %137 = vector.broadcast %136 : f32 to vector<16x16xf32>
      %138 = arith.mulf %137, %128 : vector<16x16xf32>
      %139 = arith.addf %127, %138 : vector<16x16xf32>
      %140 = vector.extract_strided_slice %103 {offsets = [1, 0], sizes = [16, 16], strides = [1, 1]} : vector<18x18xf32> to vector<16x16xf32>
      %c24_i32 = arith.constant 24 : i32
      %141 = arith.addi %c24_i32, %c0_i32_78 : i32
      %c0_88 = arith.constant 0 : index
      %142 = arith.index_cast %141 : i32 to index
      %143 = memref.load %arg4[%c0_88, %142] : memref<2x73xf32, #tpu.memory_space<smem>>
      %144 = vector.broadcast %143 : f32 to vector<16x16xf32>
      %145 = arith.mulf %144, %140 : vector<16x16xf32>
      %146 = arith.addf %134, %145 : vector<16x16xf32>
      %c1_89 = arith.constant 1 : index
      %147 = arith.index_cast %141 : i32 to index
      %148 = memref.load %arg4[%c1_89, %147] : memref<2x73xf32, #tpu.memory_space<smem>>
      %149 = vector.broadcast %148 : f32 to vector<16x16xf32>
      %150 = arith.mulf %149, %140 : vector<16x16xf32>
      %151 = arith.addf %139, %150 : vector<16x16xf32>
      %152 = vector.extract_strided_slice %103 {offsets = [1, 1], sizes = [16, 16], strides = [1, 1]} : vector<18x18xf32> to vector<16x16xf32>
      %c32_i32 = arith.constant 32 : i32
      %153 = arith.addi %c32_i32, %c0_i32_78 : i32
      %c0_90 = arith.constant 0 : index
      %154 = arith.index_cast %153 : i32 to index
      %155 = memref.load %arg4[%c0_90, %154] : memref<2x73xf32, #tpu.memory_space<smem>>
      %156 = vector.broadcast %155 : f32 to vector<16x16xf32>
      %157 = arith.mulf %156, %152 : vector<16x16xf32>
      %158 = arith.addf %146, %157 : vector<16x16xf32>
      %c1_91 = arith.constant 1 : index
      %159 = arith.index_cast %153 : i32 to index
      %160 = memref.load %arg4[%c1_91, %159] : memref<2x73xf32, #tpu.memory_space<smem>>
      %161 = vector.broadcast %160 : f32 to vector<16x16xf32>
      %162 = arith.mulf %161, %152 : vector<16x16xf32>
      %163 = arith.addf %151, %162 : vector<16x16xf32>
      %164 = vector.extract_strided_slice %103 {offsets = [1, 2], sizes = [16, 16], strides = [1, 1]} : vector<18x18xf32> to vector<16x16xf32>
      %c40_i32 = arith.constant 40 : i32
      %165 = arith.addi %c40_i32, %c0_i32_78 : i32
      %c0_92 = arith.constant 0 : index
      %166 = arith.index_cast %165 : i32 to index
      %167 = memref.load %arg4[%c0_92, %166] : memref<2x73xf32, #tpu.memory_space<smem>>
      %168 = vector.broadcast %167 : f32 to vector<16x16xf32>
      %169 = arith.mulf %168, %164 : vector<16x16xf32>
      %170 = arith.addf %158, %169 : vector<16x16xf32>
      %c1_93 = arith.constant 1 : index
      %171 = arith.index_cast %165 : i32 to index
      %172 = memref.load %arg4[%c1_93, %171] : memref<2x73xf32, #tpu.memory_space<smem>>
      %173 = vector.broadcast %172 : f32 to vector<16x16xf32>
      %174 = arith.mulf %173, %164 : vector<16x16xf32>
      %175 = arith.addf %163, %174 : vector<16x16xf32>
      %176 = vector.extract_strided_slice %103 {offsets = [2, 0], sizes = [16, 16], strides = [1, 1]} : vector<18x18xf32> to vector<16x16xf32>
      %c48_i32 = arith.constant 48 : i32
      %177 = arith.addi %c48_i32, %c0_i32_78 : i32
      %c0_94 = arith.constant 0 : index
      %178 = arith.index_cast %177 : i32 to index
      %179 = memref.load %arg4[%c0_94, %178] : memref<2x73xf32, #tpu.memory_space<smem>>
      %180 = vector.broadcast %179 : f32 to vector<16x16xf32>
      %181 = arith.mulf %180, %176 : vector<16x16xf32>
      %182 = arith.addf %170, %181 : vector<16x16xf32>
      %c1_95 = arith.constant 1 : index
      %183 = arith.index_cast %177 : i32 to index
      %184 = memref.load %arg4[%c1_95, %183] : memref<2x73xf32, #tpu.memory_space<smem>>
      %185 = vector.broadcast %184 : f32 to vector<16x16xf32>
      %186 = arith.mulf %185, %176 : vector<16x16xf32>
      %187 = arith.addf %175, %186 : vector<16x16xf32>
      %188 = vector.extract_strided_slice %103 {offsets = [2, 1], sizes = [16, 16], strides = [1, 1]} : vector<18x18xf32> to vector<16x16xf32>
      %c56_i32 = arith.constant 56 : i32
      %189 = arith.addi %c56_i32, %c0_i32_78 : i32
      %c0_96 = arith.constant 0 : index
      %190 = arith.index_cast %189 : i32 to index
      %191 = memref.load %arg4[%c0_96, %190] : memref<2x73xf32, #tpu.memory_space<smem>>
      %192 = vector.broadcast %191 : f32 to vector<16x16xf32>
      %193 = arith.mulf %192, %188 : vector<16x16xf32>
      %194 = arith.addf %182, %193 : vector<16x16xf32>
      %c1_97 = arith.constant 1 : index
      %195 = arith.index_cast %189 : i32 to index
      %196 = memref.load %arg4[%c1_97, %195] : memref<2x73xf32, #tpu.memory_space<smem>>
      %197 = vector.broadcast %196 : f32 to vector<16x16xf32>
      %198 = arith.mulf %197, %188 : vector<16x16xf32>
      %199 = arith.addf %187, %198 : vector<16x16xf32>
      %200 = vector.extract_strided_slice %103 {offsets = [2, 2], sizes = [16, 16], strides = [1, 1]} : vector<18x18xf32> to vector<16x16xf32>
      %c64_i32 = arith.constant 64 : i32
      %201 = arith.addi %c64_i32, %c0_i32_78 : i32
      %c0_98 = arith.constant 0 : index
      %202 = arith.index_cast %201 : i32 to index
      %203 = memref.load %arg4[%c0_98, %202] : memref<2x73xf32, #tpu.memory_space<smem>>
      %204 = vector.broadcast %203 : f32 to vector<16x16xf32>
      %205 = arith.mulf %204, %200 : vector<16x16xf32>
      %206 = arith.addf %194, %205 : vector<16x16xf32>
      %c1_99 = arith.constant 1 : index
      %207 = arith.index_cast %201 : i32 to index
      %208 = memref.load %arg4[%c1_99, %207] : memref<2x73xf32, #tpu.memory_space<smem>>
      %209 = vector.broadcast %208 : f32 to vector<16x16xf32>
      %210 = arith.mulf %209, %200 : vector<16x16xf32>
      %211 = arith.addf %199, %210 : vector<16x16xf32>
      %c1_i32 = arith.constant 1 : i32
      %212 = arith.index_cast %c1_i32 : i32 to index
      %c0_100 = arith.constant 0 : index
      %c0_101 = arith.constant 0 : index
      %213 = vector.load %arg7[%212, %c0_100, %c0_101] : memref<8x18x18xf32, #tpu.memory_space<vmem>>, vector<1x18x18xf32>
      %214 = vector.shape_cast %213 : vector<1x18x18xf32> to vector<18x18xf32>
      %215 = vector.extract_strided_slice %214 {offsets = [0, 0], sizes = [16, 16], strides = [1, 1]} : vector<18x18xf32> to vector<16x16xf32>
      %c0_i32_102 = arith.constant 0 : i32
      %216 = arith.addi %c0_i32_102, %c1_i32 : i32
      %c0_103 = arith.constant 0 : index
      %217 = arith.index_cast %216 : i32 to index
      %218 = memref.load %arg4[%c0_103, %217] : memref<2x73xf32, #tpu.memory_space<smem>>
      %219 = vector.broadcast %218 : f32 to vector<16x16xf32>
      %220 = arith.mulf %219, %215 : vector<16x16xf32>
      %221 = arith.addf %206, %220 : vector<16x16xf32>
      %c1_104 = arith.constant 1 : index
      %222 = arith.index_cast %216 : i32 to index
      %223 = memref.load %arg4[%c1_104, %222] : memref<2x73xf32, #tpu.memory_space<smem>>
      %224 = vector.broadcast %223 : f32 to vector<16x16xf32>
      %225 = arith.mulf %224, %215 : vector<16x16xf32>
      %226 = arith.addf %211, %225 : vector<16x16xf32>
      %227 = vector.extract_strided_slice %214 {offsets = [0, 1], sizes = [16, 16], strides = [1, 1]} : vector<18x18xf32> to vector<16x16xf32>
      %c8_i32_105 = arith.constant 8 : i32
      %228 = arith.addi %c8_i32_105, %c1_i32 : i32
      %c0_106 = arith.constant 0 : index
      %229 = arith.index_cast %228 : i32 to index
      %230 = memref.load %arg4[%c0_106, %229] : memref<2x73xf32, #tpu.memory_space<smem>>
      %231 = vector.broadcast %230 : f32 to vector<16x16xf32>
      %232 = arith.mulf %231, %227 : vector<16x16xf32>
      %233 = arith.addf %221, %232 : vector<16x16xf32>
      %c1_107 = arith.constant 1 : index
      %234 = arith.index_cast %228 : i32 to index
      %235 = memref.load %arg4[%c1_107, %234] : memref<2x73xf32, #tpu.memory_space<smem>>
      %236 = vector.broadcast %235 : f32 to vector<16x16xf32>
      %237 = arith.mulf %236, %227 : vector<16x16xf32>
      %238 = arith.addf %226, %237 : vector<16x16xf32>
      %239 = vector.extract_strided_slice %214 {offsets = [0, 2], sizes = [16, 16], strides = [1, 1]} : vector<18x18xf32> to vector<16x16xf32>
      %c16_i32_108 = arith.constant 16 : i32
      %240 = arith.addi %c16_i32_108, %c1_i32 : i32
      %c0_109 = arith.constant 0 : index
      %241 = arith.index_cast %240 : i32 to index
      %242 = memref.load %arg4[%c0_109, %241] : memref<2x73xf32, #tpu.memory_space<smem>>
      %243 = vector.broadcast %242 : f32 to vector<16x16xf32>
      %244 = arith.mulf %243, %239 : vector<16x16xf32>
      %245 = arith.addf %233, %244 : vector<16x16xf32>
      %c1_110 = arith.constant 1 : index
      %246 = arith.index_cast %240 : i32 to index
      %247 = memref.load %arg4[%c1_110, %246] : memref<2x73xf32, #tpu.memory_space<smem>>
      %248 = vector.broadcast %247 : f32 to vector<16x16xf32>
      %249 = arith.mulf %248, %239 : vector<16x16xf32>
      %250 = arith.addf %238, %249 : vector<16x16xf32>
      %251 = vector.extract_strided_slice %214 {offsets = [1, 0], sizes = [16, 16], strides = [1, 1]} : vector<18x18xf32> to vector<16x16xf32>
      %c24_i32_111 = arith.constant 24 : i32
      %252 = arith.addi %c24_i32_111, %c1_i32 : i32
      %c0_112 = arith.constant 0 : index
      %253 = arith.index_cast %252 : i32 to index
      %254 = memref.load %arg4[%c0_112, %253] : memref<2x73xf32, #tpu.memory_space<smem>>
      %255 = vector.broadcast %254 : f32 to vector<16x16xf32>
      %256 = arith.mulf %255, %251 : vector<16x16xf32>
      %257 = arith.addf %245, %256 : vector<16x16xf32>
      %c1_113 = arith.constant 1 : index
      %258 = arith.index_cast %252 : i32 to index
      %259 = memref.load %arg4[%c1_113, %258] : memref<2x73xf32, #tpu.memory_space<smem>>
      %260 = vector.broadcast %259 : f32 to vector<16x16xf32>
      %261 = arith.mulf %260, %251 : vector<16x16xf32>
      %262 = arith.addf %250, %261 : vector<16x16xf32>
      %263 = vector.extract_strided_slice %214 {offsets = [1, 1], sizes = [16, 16], strides = [1, 1]} : vector<18x18xf32> to vector<16x16xf32>
      %c32_i32_114 = arith.constant 32 : i32
      %264 = arith.addi %c32_i32_114, %c1_i32 : i32
      %c0_115 = arith.constant 0 : index
      %265 = arith.index_cast %264 : i32 to index
      %266 = memref.load %arg4[%c0_115, %265] : memref<2x73xf32, #tpu.memory_space<smem>>
      %267 = vector.broadcast %266 : f32 to vector<16x16xf32>
      %268 = arith.mulf %267, %263 : vector<16x16xf32>
      %269 = arith.addf %257, %268 : vector<16x16xf32>
      %c1_116 = arith.constant 1 : index
      %270 = arith.index_cast %264 : i32 to index
      %271 = memref.load %arg4[%c1_116, %270] : memref<2x73xf32, #tpu.memory_space<smem>>
      %272 = vector.broadcast %271 : f32 to vector<16x16xf32>
      %273 = arith.mulf %272, %263 : vector<16x16xf32>
      %274 = arith.addf %262, %273 : vector<16x16xf32>
      %275 = vector.extract_strided_slice %214 {offsets = [1, 2], sizes = [16, 16], strides = [1, 1]} : vector<18x18xf32> to vector<16x16xf32>
      %c40_i32_117 = arith.constant 40 : i32
      %276 = arith.addi %c40_i32_117, %c1_i32 : i32
      %c0_118 = arith.constant 0 : index
      %277 = arith.index_cast %276 : i32 to index
      %278 = memref.load %arg4[%c0_118, %277] : memref<2x73xf32, #tpu.memory_space<smem>>
      %279 = vector.broadcast %278 : f32 to vector<16x16xf32>
      %280 = arith.mulf %279, %275 : vector<16x16xf32>
      %281 = arith.addf %269, %280 : vector<16x16xf32>
      %c1_119 = arith.constant 1 : index
      %282 = arith.index_cast %276 : i32 to index
      %283 = memref.load %arg4[%c1_119, %282] : memref<2x73xf32, #tpu.memory_space<smem>>
      %284 = vector.broadcast %283 : f32 to vector<16x16xf32>
      %285 = arith.mulf %284, %275 : vector<16x16xf32>
      %286 = arith.addf %274, %285 : vector<16x16xf32>
      %287 = vector.extract_strided_slice %214 {offsets = [2, 0], sizes = [16, 16], strides = [1, 1]} : vector<18x18xf32> to vector<16x16xf32>
      %c48_i32_120 = arith.constant 48 : i32
      %288 = arith.addi %c48_i32_120, %c1_i32 : i32
      %c0_121 = arith.constant 0 : index
      %289 = arith.index_cast %288 : i32 to index
      %290 = memref.load %arg4[%c0_121, %289] : memref<2x73xf32, #tpu.memory_space<smem>>
      %291 = vector.broadcast %290 : f32 to vector<16x16xf32>
      %292 = arith.mulf %291, %287 : vector<16x16xf32>
      %293 = arith.addf %281, %292 : vector<16x16xf32>
      %c1_122 = arith.constant 1 : index
      %294 = arith.index_cast %288 : i32 to index
      %295 = memref.load %arg4[%c1_122, %294] : memref<2x73xf32, #tpu.memory_space<smem>>
      %296 = vector.broadcast %295 : f32 to vector<16x16xf32>
      %297 = arith.mulf %296, %287 : vector<16x16xf32>
      %298 = arith.addf %286, %297 : vector<16x16xf32>
      %299 = vector.extract_strided_slice %214 {offsets = [2, 1], sizes = [16, 16], strides = [1, 1]} : vector<18x18xf32> to vector<16x16xf32>
      %c56_i32_123 = arith.constant 56 : i32
      %300 = arith.addi %c56_i32_123, %c1_i32 : i32
      %c0_124 = arith.constant 0 : index
      %301 = arith.index_cast %300 : i32 to index
      %302 = memref.load %arg4[%c0_124, %301] : memref<2x73xf32, #tpu.memory_space<smem>>
      %303 = vector.broadcast %302 : f32 to vector<16x16xf32>
      %304 = arith.mulf %303, %299 : vector<16x16xf32>
      %305 = arith.addf %293, %304 : vector<16x16xf32>
      %c1_125 = arith.constant 1 : index
      %306 = arith.index_cast %300 : i32 to index
      %307 = memref.load %arg4[%c1_125, %306] : memref<2x73xf32, #tpu.memory_space<smem>>
      %308 = vector.broadcast %307 : f32 to vector<16x16xf32>
      %309 = arith.mulf %308, %299 : vector<16x16xf32>
      %310 = arith.addf %298, %309 : vector<16x16xf32>
      %311 = vector.extract_strided_slice %214 {offsets = [2, 2], sizes = [16, 16], strides = [1, 1]} : vector<18x18xf32> to vector<16x16xf32>
      %c64_i32_126 = arith.constant 64 : i32
      %312 = arith.addi %c64_i32_126, %c1_i32 : i32
      %c0_127 = arith.constant 0 : index
      %313 = arith.index_cast %312 : i32 to index
      %314 = memref.load %arg4[%c0_127, %313] : memref<2x73xf32, #tpu.memory_space<smem>>
      %315 = vector.broadcast %314 : f32 to vector<16x16xf32>
      %316 = arith.mulf %315, %311 : vector<16x16xf32>
      %317 = arith.addf %305, %316 : vector<16x16xf32>
      %c1_128 = arith.constant 1 : index
      %318 = arith.index_cast %312 : i32 to index
      %319 = memref.load %arg4[%c1_128, %318] : memref<2x73xf32, #tpu.memory_space<smem>>
      %320 = vector.broadcast %319 : f32 to vector<16x16xf32>
      %321 = arith.mulf %320, %311 : vector<16x16xf32>
      %322 = arith.addf %310, %321 : vector<16x16xf32>
      %c2_i32 = arith.constant 2 : i32
      %323 = arith.index_cast %c2_i32 : i32 to index
      %c0_129 = arith.constant 0 : index
      %c0_130 = arith.constant 0 : index
      %324 = vector.load %arg7[%323, %c0_129, %c0_130] : memref<8x18x18xf32, #tpu.memory_space<vmem>>, vector<1x18x18xf32>
      %325 = vector.shape_cast %324 : vector<1x18x18xf32> to vector<18x18xf32>
      %326 = vector.extract_strided_slice %325 {offsets = [0, 0], sizes = [16, 16], strides = [1, 1]} : vector<18x18xf32> to vector<16x16xf32>
      %c0_i32_131 = arith.constant 0 : i32
      %327 = arith.addi %c0_i32_131, %c2_i32 : i32
      %c0_132 = arith.constant 0 : index
      %328 = arith.index_cast %327 : i32 to index
      %329 = memref.load %arg4[%c0_132, %328] : memref<2x73xf32, #tpu.memory_space<smem>>
      %330 = vector.broadcast %329 : f32 to vector<16x16xf32>
      %331 = arith.mulf %330, %326 : vector<16x16xf32>
      %332 = arith.addf %317, %331 : vector<16x16xf32>
      %c1_133 = arith.constant 1 : index
      %333 = arith.index_cast %327 : i32 to index
      %334 = memref.load %arg4[%c1_133, %333] : memref<2x73xf32, #tpu.memory_space<smem>>
      %335 = vector.broadcast %334 : f32 to vector<16x16xf32>
      %336 = arith.mulf %335, %326 : vector<16x16xf32>
      %337 = arith.addf %322, %336 : vector<16x16xf32>
      %338 = vector.extract_strided_slice %325 {offsets = [0, 1], sizes = [16, 16], strides = [1, 1]} : vector<18x18xf32> to vector<16x16xf32>
      %c8_i32_134 = arith.constant 8 : i32
      %339 = arith.addi %c8_i32_134, %c2_i32 : i32
      %c0_135 = arith.constant 0 : index
      %340 = arith.index_cast %339 : i32 to index
      %341 = memref.load %arg4[%c0_135, %340] : memref<2x73xf32, #tpu.memory_space<smem>>
      %342 = vector.broadcast %341 : f32 to vector<16x16xf32>
      %343 = arith.mulf %342, %338 : vector<16x16xf32>
      %344 = arith.addf %332, %343 : vector<16x16xf32>
      %c1_136 = arith.constant 1 : index
      %345 = arith.index_cast %339 : i32 to index
      %346 = memref.load %arg4[%c1_136, %345] : memref<2x73xf32, #tpu.memory_space<smem>>
      %347 = vector.broadcast %346 : f32 to vector<16x16xf32>
      %348 = arith.mulf %347, %338 : vector<16x16xf32>
      %349 = arith.addf %337, %348 : vector<16x16xf32>
      %350 = vector.extract_strided_slice %325 {offsets = [0, 2], sizes = [16, 16], strides = [1, 1]} : vector<18x18xf32> to vector<16x16xf32>
      %c16_i32_137 = arith.constant 16 : i32
      %351 = arith.addi %c16_i32_137, %c2_i32 : i32
      %c0_138 = arith.constant 0 : index
      %352 = arith.index_cast %351 : i32 to index
      %353 = memref.load %arg4[%c0_138, %352] : memref<2x73xf32, #tpu.memory_space<smem>>
      %354 = vector.broadcast %353 : f32 to vector<16x16xf32>
      %355 = arith.mulf %354, %350 : vector<16x16xf32>
      %356 = arith.addf %344, %355 : vector<16x16xf32>
      %c1_139 = arith.constant 1 : index
      %357 = arith.index_cast %351 : i32 to index
      %358 = memref.load %arg4[%c1_139, %357] : memref<2x73xf32, #tpu.memory_space<smem>>
      %359 = vector.broadcast %358 : f32 to vector<16x16xf32>
      %360 = arith.mulf %359, %350 : vector<16x16xf32>
      %361 = arith.addf %349, %360 : vector<16x16xf32>
      %362 = vector.extract_strided_slice %325 {offsets = [1, 0], sizes = [16, 16], strides = [1, 1]} : vector<18x18xf32> to vector<16x16xf32>
      %c24_i32_140 = arith.constant 24 : i32
      %363 = arith.addi %c24_i32_140, %c2_i32 : i32
      %c0_141 = arith.constant 0 : index
      %364 = arith.index_cast %363 : i32 to index
      %365 = memref.load %arg4[%c0_141, %364] : memref<2x73xf32, #tpu.memory_space<smem>>
      %366 = vector.broadcast %365 : f32 to vector<16x16xf32>
      %367 = arith.mulf %366, %362 : vector<16x16xf32>
      %368 = arith.addf %356, %367 : vector<16x16xf32>
      %c1_142 = arith.constant 1 : index
      %369 = arith.index_cast %363 : i32 to index
      %370 = memref.load %arg4[%c1_142, %369] : memref<2x73xf32, #tpu.memory_space<smem>>
      %371 = vector.broadcast %370 : f32 to vector<16x16xf32>
      %372 = arith.mulf %371, %362 : vector<16x16xf32>
      %373 = arith.addf %361, %372 : vector<16x16xf32>
      %374 = vector.extract_strided_slice %325 {offsets = [1, 1], sizes = [16, 16], strides = [1, 1]} : vector<18x18xf32> to vector<16x16xf32>
      %c32_i32_143 = arith.constant 32 : i32
      %375 = arith.addi %c32_i32_143, %c2_i32 : i32
      %c0_144 = arith.constant 0 : index
      %376 = arith.index_cast %375 : i32 to index
      %377 = memref.load %arg4[%c0_144, %376] : memref<2x73xf32, #tpu.memory_space<smem>>
      %378 = vector.broadcast %377 : f32 to vector<16x16xf32>
      %379 = arith.mulf %378, %374 : vector<16x16xf32>
      %380 = arith.addf %368, %379 : vector<16x16xf32>
      %c1_145 = arith.constant 1 : index
      %381 = arith.index_cast %375 : i32 to index
      %382 = memref.load %arg4[%c1_145, %381] : memref<2x73xf32, #tpu.memory_space<smem>>
      %383 = vector.broadcast %382 : f32 to vector<16x16xf32>
      %384 = arith.mulf %383, %374 : vector<16x16xf32>
      %385 = arith.addf %373, %384 : vector<16x16xf32>
      %386 = vector.extract_strided_slice %325 {offsets = [1, 2], sizes = [16, 16], strides = [1, 1]} : vector<18x18xf32> to vector<16x16xf32>
      %c40_i32_146 = arith.constant 40 : i32
      %387 = arith.addi %c40_i32_146, %c2_i32 : i32
      %c0_147 = arith.constant 0 : index
      %388 = arith.index_cast %387 : i32 to index
      %389 = memref.load %arg4[%c0_147, %388] : memref<2x73xf32, #tpu.memory_space<smem>>
      %390 = vector.broadcast %389 : f32 to vector<16x16xf32>
      %391 = arith.mulf %390, %386 : vector<16x16xf32>
      %392 = arith.addf %380, %391 : vector<16x16xf32>
      %c1_148 = arith.constant 1 : index
      %393 = arith.index_cast %387 : i32 to index
      %394 = memref.load %arg4[%c1_148, %393] : memref<2x73xf32, #tpu.memory_space<smem>>
      %395 = vector.broadcast %394 : f32 to vector<16x16xf32>
      %396 = arith.mulf %395, %386 : vector<16x16xf32>
      %397 = arith.addf %385, %396 : vector<16x16xf32>
      %398 = vector.extract_strided_slice %325 {offsets = [2, 0], sizes = [16, 16], strides = [1, 1]} : vector<18x18xf32> to vector<16x16xf32>
      %c48_i32_149 = arith.constant 48 : i32
      %399 = arith.addi %c48_i32_149, %c2_i32 : i32
      %c0_150 = arith.constant 0 : index
      %400 = arith.index_cast %399 : i32 to index
      %401 = memref.load %arg4[%c0_150, %400] : memref<2x73xf32, #tpu.memory_space<smem>>
      %402 = vector.broadcast %401 : f32 to vector<16x16xf32>
      %403 = arith.mulf %402, %398 : vector<16x16xf32>
      %404 = arith.addf %392, %403 : vector<16x16xf32>
      %c1_151 = arith.constant 1 : index
      %405 = arith.index_cast %399 : i32 to index
      %406 = memref.load %arg4[%c1_151, %405] : memref<2x73xf32, #tpu.memory_space<smem>>
      %407 = vector.broadcast %406 : f32 to vector<16x16xf32>
      %408 = arith.mulf %407, %398 : vector<16x16xf32>
      %409 = arith.addf %397, %408 : vector<16x16xf32>
      %410 = vector.extract_strided_slice %325 {offsets = [2, 1], sizes = [16, 16], strides = [1, 1]} : vector<18x18xf32> to vector<16x16xf32>
      %c56_i32_152 = arith.constant 56 : i32
      %411 = arith.addi %c56_i32_152, %c2_i32 : i32
      %c0_153 = arith.constant 0 : index
      %412 = arith.index_cast %411 : i32 to index
      %413 = memref.load %arg4[%c0_153, %412] : memref<2x73xf32, #tpu.memory_space<smem>>
      %414 = vector.broadcast %413 : f32 to vector<16x16xf32>
      %415 = arith.mulf %414, %410 : vector<16x16xf32>
      %416 = arith.addf %404, %415 : vector<16x16xf32>
      %c1_154 = arith.constant 1 : index
      %417 = arith.index_cast %411 : i32 to index
      %418 = memref.load %arg4[%c1_154, %417] : memref<2x73xf32, #tpu.memory_space<smem>>
      %419 = vector.broadcast %418 : f32 to vector<16x16xf32>
      %420 = arith.mulf %419, %410 : vector<16x16xf32>
      %421 = arith.addf %409, %420 : vector<16x16xf32>
      %422 = vector.extract_strided_slice %325 {offsets = [2, 2], sizes = [16, 16], strides = [1, 1]} : vector<18x18xf32> to vector<16x16xf32>
      %c64_i32_155 = arith.constant 64 : i32
      %423 = arith.addi %c64_i32_155, %c2_i32 : i32
      %c0_156 = arith.constant 0 : index
      %424 = arith.index_cast %423 : i32 to index
      %425 = memref.load %arg4[%c0_156, %424] : memref<2x73xf32, #tpu.memory_space<smem>>
      %426 = vector.broadcast %425 : f32 to vector<16x16xf32>
      %427 = arith.mulf %426, %422 : vector<16x16xf32>
      %428 = arith.addf %416, %427 : vector<16x16xf32>
      %c1_157 = arith.constant 1 : index
      %429 = arith.index_cast %423 : i32 to index
      %430 = memref.load %arg4[%c1_157, %429] : memref<2x73xf32, #tpu.memory_space<smem>>
      %431 = vector.broadcast %430 : f32 to vector<16x16xf32>
      %432 = arith.mulf %431, %422 : vector<16x16xf32>
      %433 = arith.addf %421, %432 : vector<16x16xf32>
      %c3_i32 = arith.constant 3 : i32
      %434 = arith.index_cast %c3_i32 : i32 to index
      %c0_158 = arith.constant 0 : index
      %c0_159 = arith.constant 0 : index
      %435 = vector.load %arg7[%434, %c0_158, %c0_159] : memref<8x18x18xf32, #tpu.memory_space<vmem>>, vector<1x18x18xf32>
      %436 = vector.shape_cast %435 : vector<1x18x18xf32> to vector<18x18xf32>
      %437 = vector.extract_strided_slice %436 {offsets = [0, 0], sizes = [16, 16], strides = [1, 1]} : vector<18x18xf32> to vector<16x16xf32>
      %c0_i32_160 = arith.constant 0 : i32
      %438 = arith.addi %c0_i32_160, %c3_i32 : i32
      %c0_161 = arith.constant 0 : index
      %439 = arith.index_cast %438 : i32 to index
      %440 = memref.load %arg4[%c0_161, %439] : memref<2x73xf32, #tpu.memory_space<smem>>
      %441 = vector.broadcast %440 : f32 to vector<16x16xf32>
      %442 = arith.mulf %441, %437 : vector<16x16xf32>
      %443 = arith.addf %428, %442 : vector<16x16xf32>
      %c1_162 = arith.constant 1 : index
      %444 = arith.index_cast %438 : i32 to index
      %445 = memref.load %arg4[%c1_162, %444] : memref<2x73xf32, #tpu.memory_space<smem>>
      %446 = vector.broadcast %445 : f32 to vector<16x16xf32>
      %447 = arith.mulf %446, %437 : vector<16x16xf32>
      %448 = arith.addf %433, %447 : vector<16x16xf32>
      %449 = vector.extract_strided_slice %436 {offsets = [0, 1], sizes = [16, 16], strides = [1, 1]} : vector<18x18xf32> to vector<16x16xf32>
      %c8_i32_163 = arith.constant 8 : i32
      %450 = arith.addi %c8_i32_163, %c3_i32 : i32
      %c0_164 = arith.constant 0 : index
      %451 = arith.index_cast %450 : i32 to index
      %452 = memref.load %arg4[%c0_164, %451] : memref<2x73xf32, #tpu.memory_space<smem>>
      %453 = vector.broadcast %452 : f32 to vector<16x16xf32>
      %454 = arith.mulf %453, %449 : vector<16x16xf32>
      %455 = arith.addf %443, %454 : vector<16x16xf32>
      %c1_165 = arith.constant 1 : index
      %456 = arith.index_cast %450 : i32 to index
      %457 = memref.load %arg4[%c1_165, %456] : memref<2x73xf32, #tpu.memory_space<smem>>
      %458 = vector.broadcast %457 : f32 to vector<16x16xf32>
      %459 = arith.mulf %458, %449 : vector<16x16xf32>
      %460 = arith.addf %448, %459 : vector<16x16xf32>
      %461 = vector.extract_strided_slice %436 {offsets = [0, 2], sizes = [16, 16], strides = [1, 1]} : vector<18x18xf32> to vector<16x16xf32>
      %c16_i32_166 = arith.constant 16 : i32
      %462 = arith.addi %c16_i32_166, %c3_i32 : i32
      %c0_167 = arith.constant 0 : index
      %463 = arith.index_cast %462 : i32 to index
      %464 = memref.load %arg4[%c0_167, %463] : memref<2x73xf32, #tpu.memory_space<smem>>
      %465 = vector.broadcast %464 : f32 to vector<16x16xf32>
      %466 = arith.mulf %465, %461 : vector<16x16xf32>
      %467 = arith.addf %455, %466 : vector<16x16xf32>
      %c1_168 = arith.constant 1 : index
      %468 = arith.index_cast %462 : i32 to index
      %469 = memref.load %arg4[%c1_168, %468] : memref<2x73xf32, #tpu.memory_space<smem>>
      %470 = vector.broadcast %469 : f32 to vector<16x16xf32>
      %471 = arith.mulf %470, %461 : vector<16x16xf32>
      %472 = arith.addf %460, %471 : vector<16x16xf32>
      %473 = vector.extract_strided_slice %436 {offsets = [1, 0], sizes = [16, 16], strides = [1, 1]} : vector<18x18xf32> to vector<16x16xf32>
      %c24_i32_169 = arith.constant 24 : i32
      %474 = arith.addi %c24_i32_169, %c3_i32 : i32
      %c0_170 = arith.constant 0 : index
      %475 = arith.index_cast %474 : i32 to index
      %476 = memref.load %arg4[%c0_170, %475] : memref<2x73xf32, #tpu.memory_space<smem>>
      %477 = vector.broadcast %476 : f32 to vector<16x16xf32>
      %478 = arith.mulf %477, %473 : vector<16x16xf32>
      %479 = arith.addf %467, %478 : vector<16x16xf32>
      %c1_171 = arith.constant 1 : index
      %480 = arith.index_cast %474 : i32 to index
      %481 = memref.load %arg4[%c1_171, %480] : memref<2x73xf32, #tpu.memory_space<smem>>
      %482 = vector.broadcast %481 : f32 to vector<16x16xf32>
      %483 = arith.mulf %482, %473 : vector<16x16xf32>
      %484 = arith.addf %472, %483 : vector<16x16xf32>
      %485 = vector.extract_strided_slice %436 {offsets = [1, 1], sizes = [16, 16], strides = [1, 1]} : vector<18x18xf32> to vector<16x16xf32>
      %c32_i32_172 = arith.constant 32 : i32
      %486 = arith.addi %c32_i32_172, %c3_i32 : i32
      %c0_173 = arith.constant 0 : index
      %487 = arith.index_cast %486 : i32 to index
      %488 = memref.load %arg4[%c0_173, %487] : memref<2x73xf32, #tpu.memory_space<smem>>
      %489 = vector.broadcast %488 : f32 to vector<16x16xf32>
      %490 = arith.mulf %489, %485 : vector<16x16xf32>
      %491 = arith.addf %479, %490 : vector<16x16xf32>
      %c1_174 = arith.constant 1 : index
      %492 = arith.index_cast %486 : i32 to index
      %493 = memref.load %arg4[%c1_174, %492] : memref<2x73xf32, #tpu.memory_space<smem>>
      %494 = vector.broadcast %493 : f32 to vector<16x16xf32>
      %495 = arith.mulf %494, %485 : vector<16x16xf32>
      %496 = arith.addf %484, %495 : vector<16x16xf32>
      %497 = vector.extract_strided_slice %436 {offsets = [1, 2], sizes = [16, 16], strides = [1, 1]} : vector<18x18xf32> to vector<16x16xf32>
      %c40_i32_175 = arith.constant 40 : i32
      %498 = arith.addi %c40_i32_175, %c3_i32 : i32
      %c0_176 = arith.constant 0 : index
      %499 = arith.index_cast %498 : i32 to index
      %500 = memref.load %arg4[%c0_176, %499] : memref<2x73xf32, #tpu.memory_space<smem>>
      %501 = vector.broadcast %500 : f32 to vector<16x16xf32>
      %502 = arith.mulf %501, %497 : vector<16x16xf32>
      %503 = arith.addf %491, %502 : vector<16x16xf32>
      %c1_177 = arith.constant 1 : index
      %504 = arith.index_cast %498 : i32 to index
      %505 = memref.load %arg4[%c1_177, %504] : memref<2x73xf32, #tpu.memory_space<smem>>
      %506 = vector.broadcast %505 : f32 to vector<16x16xf32>
      %507 = arith.mulf %506, %497 : vector<16x16xf32>
      %508 = arith.addf %496, %507 : vector<16x16xf32>
      %509 = vector.extract_strided_slice %436 {offsets = [2, 0], sizes = [16, 16], strides = [1, 1]} : vector<18x18xf32> to vector<16x16xf32>
      %c48_i32_178 = arith.constant 48 : i32
      %510 = arith.addi %c48_i32_178, %c3_i32 : i32
      %c0_179 = arith.constant 0 : index
      %511 = arith.index_cast %510 : i32 to index
      %512 = memref.load %arg4[%c0_179, %511] : memref<2x73xf32, #tpu.memory_space<smem>>
      %513 = vector.broadcast %512 : f32 to vector<16x16xf32>
      %514 = arith.mulf %513, %509 : vector<16x16xf32>
      %515 = arith.addf %503, %514 : vector<16x16xf32>
      %c1_180 = arith.constant 1 : index
      %516 = arith.index_cast %510 : i32 to index
      %517 = memref.load %arg4[%c1_180, %516] : memref<2x73xf32, #tpu.memory_space<smem>>
      %518 = vector.broadcast %517 : f32 to vector<16x16xf32>
      %519 = arith.mulf %518, %509 : vector<16x16xf32>
      %520 = arith.addf %508, %519 : vector<16x16xf32>
      %521 = vector.extract_strided_slice %436 {offsets = [2, 1], sizes = [16, 16], strides = [1, 1]} : vector<18x18xf32> to vector<16x16xf32>
      %c56_i32_181 = arith.constant 56 : i32
      %522 = arith.addi %c56_i32_181, %c3_i32 : i32
      %c0_182 = arith.constant 0 : index
      %523 = arith.index_cast %522 : i32 to index
      %524 = memref.load %arg4[%c0_182, %523] : memref<2x73xf32, #tpu.memory_space<smem>>
      %525 = vector.broadcast %524 : f32 to vector<16x16xf32>
      %526 = arith.mulf %525, %521 : vector<16x16xf32>
      %527 = arith.addf %515, %526 : vector<16x16xf32>
      %c1_183 = arith.constant 1 : index
      %528 = arith.index_cast %522 : i32 to index
      %529 = memref.load %arg4[%c1_183, %528] : memref<2x73xf32, #tpu.memory_space<smem>>
      %530 = vector.broadcast %529 : f32 to vector<16x16xf32>
      %531 = arith.mulf %530, %521 : vector<16x16xf32>
      %532 = arith.addf %520, %531 : vector<16x16xf32>
      %533 = vector.extract_strided_slice %436 {offsets = [2, 2], sizes = [16, 16], strides = [1, 1]} : vector<18x18xf32> to vector<16x16xf32>
      %c64_i32_184 = arith.constant 64 : i32
      %534 = arith.addi %c64_i32_184, %c3_i32 : i32
      %c0_185 = arith.constant 0 : index
      %535 = arith.index_cast %534 : i32 to index
      %536 = memref.load %arg4[%c0_185, %535] : memref<2x73xf32, #tpu.memory_space<smem>>
      %537 = vector.broadcast %536 : f32 to vector<16x16xf32>
      %538 = arith.mulf %537, %533 : vector<16x16xf32>
      %539 = arith.addf %527, %538 : vector<16x16xf32>
      %c1_186 = arith.constant 1 : index
      %540 = arith.index_cast %534 : i32 to index
      %541 = memref.load %arg4[%c1_186, %540] : memref<2x73xf32, #tpu.memory_space<smem>>
      %542 = vector.broadcast %541 : f32 to vector<16x16xf32>
      %543 = arith.mulf %542, %533 : vector<16x16xf32>
      %544 = arith.addf %532, %543 : vector<16x16xf32>
      %c4_i32 = arith.constant 4 : i32
      %545 = arith.index_cast %c4_i32 : i32 to index
      %c0_187 = arith.constant 0 : index
      %c0_188 = arith.constant 0 : index
      %546 = vector.load %arg7[%545, %c0_187, %c0_188] : memref<8x18x18xf32, #tpu.memory_space<vmem>>, vector<1x18x18xf32>
      %547 = vector.shape_cast %546 : vector<1x18x18xf32> to vector<18x18xf32>
      %548 = vector.extract_strided_slice %547 {offsets = [0, 0], sizes = [16, 16], strides = [1, 1]} : vector<18x18xf32> to vector<16x16xf32>
      %c0_i32_189 = arith.constant 0 : i32
      %549 = arith.addi %c0_i32_189, %c4_i32 : i32
      %c0_190 = arith.constant 0 : index
      %550 = arith.index_cast %549 : i32 to index
      %551 = memref.load %arg4[%c0_190, %550] : memref<2x73xf32, #tpu.memory_space<smem>>
      %552 = vector.broadcast %551 : f32 to vector<16x16xf32>
      %553 = arith.mulf %552, %548 : vector<16x16xf32>
      %554 = arith.addf %539, %553 : vector<16x16xf32>
      %c1_191 = arith.constant 1 : index
      %555 = arith.index_cast %549 : i32 to index
      %556 = memref.load %arg4[%c1_191, %555] : memref<2x73xf32, #tpu.memory_space<smem>>
      %557 = vector.broadcast %556 : f32 to vector<16x16xf32>
      %558 = arith.mulf %557, %548 : vector<16x16xf32>
      %559 = arith.addf %544, %558 : vector<16x16xf32>
      %560 = vector.extract_strided_slice %547 {offsets = [0, 1], sizes = [16, 16], strides = [1, 1]} : vector<18x18xf32> to vector<16x16xf32>
      %c8_i32_192 = arith.constant 8 : i32
      %561 = arith.addi %c8_i32_192, %c4_i32 : i32
      %c0_193 = arith.constant 0 : index
      %562 = arith.index_cast %561 : i32 to index
      %563 = memref.load %arg4[%c0_193, %562] : memref<2x73xf32, #tpu.memory_space<smem>>
      %564 = vector.broadcast %563 : f32 to vector<16x16xf32>
      %565 = arith.mulf %564, %560 : vector<16x16xf32>
      %566 = arith.addf %554, %565 : vector<16x16xf32>
      %c1_194 = arith.constant 1 : index
      %567 = arith.index_cast %561 : i32 to index
      %568 = memref.load %arg4[%c1_194, %567] : memref<2x73xf32, #tpu.memory_space<smem>>
      %569 = vector.broadcast %568 : f32 to vector<16x16xf32>
      %570 = arith.mulf %569, %560 : vector<16x16xf32>
      %571 = arith.addf %559, %570 : vector<16x16xf32>
      %572 = vector.extract_strided_slice %547 {offsets = [0, 2], sizes = [16, 16], strides = [1, 1]} : vector<18x18xf32> to vector<16x16xf32>
      %c16_i32_195 = arith.constant 16 : i32
      %573 = arith.addi %c16_i32_195, %c4_i32 : i32
      %c0_196 = arith.constant 0 : index
      %574 = arith.index_cast %573 : i32 to index
      %575 = memref.load %arg4[%c0_196, %574] : memref<2x73xf32, #tpu.memory_space<smem>>
      %576 = vector.broadcast %575 : f32 to vector<16x16xf32>
      %577 = arith.mulf %576, %572 : vector<16x16xf32>
      %578 = arith.addf %566, %577 : vector<16x16xf32>
      %c1_197 = arith.constant 1 : index
      %579 = arith.index_cast %573 : i32 to index
      %580 = memref.load %arg4[%c1_197, %579] : memref<2x73xf32, #tpu.memory_space<smem>>
      %581 = vector.broadcast %580 : f32 to vector<16x16xf32>
      %582 = arith.mulf %581, %572 : vector<16x16xf32>
      %583 = arith.addf %571, %582 : vector<16x16xf32>
      %584 = vector.extract_strided_slice %547 {offsets = [1, 0], sizes = [16, 16], strides = [1, 1]} : vector<18x18xf32> to vector<16x16xf32>
      %c24_i32_198 = arith.constant 24 : i32
      %585 = arith.addi %c24_i32_198, %c4_i32 : i32
      %c0_199 = arith.constant 0 : index
      %586 = arith.index_cast %585 : i32 to index
      %587 = memref.load %arg4[%c0_199, %586] : memref<2x73xf32, #tpu.memory_space<smem>>
      %588 = vector.broadcast %587 : f32 to vector<16x16xf32>
      %589 = arith.mulf %588, %584 : vector<16x16xf32>
      %590 = arith.addf %578, %589 : vector<16x16xf32>
      %c1_200 = arith.constant 1 : index
      %591 = arith.index_cast %585 : i32 to index
      %592 = memref.load %arg4[%c1_200, %591] : memref<2x73xf32, #tpu.memory_space<smem>>
      %593 = vector.broadcast %592 : f32 to vector<16x16xf32>
      %594 = arith.mulf %593, %584 : vector<16x16xf32>
      %595 = arith.addf %583, %594 : vector<16x16xf32>
      %596 = vector.extract_strided_slice %547 {offsets = [1, 1], sizes = [16, 16], strides = [1, 1]} : vector<18x18xf32> to vector<16x16xf32>
      %c32_i32_201 = arith.constant 32 : i32
      %597 = arith.addi %c32_i32_201, %c4_i32 : i32
      %c0_202 = arith.constant 0 : index
      %598 = arith.index_cast %597 : i32 to index
      %599 = memref.load %arg4[%c0_202, %598] : memref<2x73xf32, #tpu.memory_space<smem>>
      %600 = vector.broadcast %599 : f32 to vector<16x16xf32>
      %601 = arith.mulf %600, %596 : vector<16x16xf32>
      %602 = arith.addf %590, %601 : vector<16x16xf32>
      %c1_203 = arith.constant 1 : index
      %603 = arith.index_cast %597 : i32 to index
      %604 = memref.load %arg4[%c1_203, %603] : memref<2x73xf32, #tpu.memory_space<smem>>
      %605 = vector.broadcast %604 : f32 to vector<16x16xf32>
      %606 = arith.mulf %605, %596 : vector<16x16xf32>
      %607 = arith.addf %595, %606 : vector<16x16xf32>
      %608 = vector.extract_strided_slice %547 {offsets = [1, 2], sizes = [16, 16], strides = [1, 1]} : vector<18x18xf32> to vector<16x16xf32>
      %c40_i32_204 = arith.constant 40 : i32
      %609 = arith.addi %c40_i32_204, %c4_i32 : i32
      %c0_205 = arith.constant 0 : index
      %610 = arith.index_cast %609 : i32 to index
      %611 = memref.load %arg4[%c0_205, %610] : memref<2x73xf32, #tpu.memory_space<smem>>
      %612 = vector.broadcast %611 : f32 to vector<16x16xf32>
      %613 = arith.mulf %612, %608 : vector<16x16xf32>
      %614 = arith.addf %602, %613 : vector<16x16xf32>
      %c1_206 = arith.constant 1 : index
      %615 = arith.index_cast %609 : i32 to index
      %616 = memref.load %arg4[%c1_206, %615] : memref<2x73xf32, #tpu.memory_space<smem>>
      %617 = vector.broadcast %616 : f32 to vector<16x16xf32>
      %618 = arith.mulf %617, %608 : vector<16x16xf32>
      %619 = arith.addf %607, %618 : vector<16x16xf32>
      %620 = vector.extract_strided_slice %547 {offsets = [2, 0], sizes = [16, 16], strides = [1, 1]} : vector<18x18xf32> to vector<16x16xf32>
      %c48_i32_207 = arith.constant 48 : i32
      %621 = arith.addi %c48_i32_207, %c4_i32 : i32
      %c0_208 = arith.constant 0 : index
      %622 = arith.index_cast %621 : i32 to index
      %623 = memref.load %arg4[%c0_208, %622] : memref<2x73xf32, #tpu.memory_space<smem>>
      %624 = vector.broadcast %623 : f32 to vector<16x16xf32>
      %625 = arith.mulf %624, %620 : vector<16x16xf32>
      %626 = arith.addf %614, %625 : vector<16x16xf32>
      %c1_209 = arith.constant 1 : index
      %627 = arith.index_cast %621 : i32 to index
      %628 = memref.load %arg4[%c1_209, %627] : memref<2x73xf32, #tpu.memory_space<smem>>
      %629 = vector.broadcast %628 : f32 to vector<16x16xf32>
      %630 = arith.mulf %629, %620 : vector<16x16xf32>
      %631 = arith.addf %619, %630 : vector<16x16xf32>
      %632 = vector.extract_strided_slice %547 {offsets = [2, 1], sizes = [16, 16], strides = [1, 1]} : vector<18x18xf32> to vector<16x16xf32>
      %c56_i32_210 = arith.constant 56 : i32
      %633 = arith.addi %c56_i32_210, %c4_i32 : i32
      %c0_211 = arith.constant 0 : index
      %634 = arith.index_cast %633 : i32 to index
      %635 = memref.load %arg4[%c0_211, %634] : memref<2x73xf32, #tpu.memory_space<smem>>
      %636 = vector.broadcast %635 : f32 to vector<16x16xf32>
      %637 = arith.mulf %636, %632 : vector<16x16xf32>
      %638 = arith.addf %626, %637 : vector<16x16xf32>
      %c1_212 = arith.constant 1 : index
      %639 = arith.index_cast %633 : i32 to index
      %640 = memref.load %arg4[%c1_212, %639] : memref<2x73xf32, #tpu.memory_space<smem>>
      %641 = vector.broadcast %640 : f32 to vector<16x16xf32>
      %642 = arith.mulf %641, %632 : vector<16x16xf32>
      %643 = arith.addf %631, %642 : vector<16x16xf32>
      %644 = vector.extract_strided_slice %547 {offsets = [2, 2], sizes = [16, 16], strides = [1, 1]} : vector<18x18xf32> to vector<16x16xf32>
      %c64_i32_213 = arith.constant 64 : i32
      %645 = arith.addi %c64_i32_213, %c4_i32 : i32
      %c0_214 = arith.constant 0 : index
      %646 = arith.index_cast %645 : i32 to index
      %647 = memref.load %arg4[%c0_214, %646] : memref<2x73xf32, #tpu.memory_space<smem>>
      %648 = vector.broadcast %647 : f32 to vector<16x16xf32>
      %649 = arith.mulf %648, %644 : vector<16x16xf32>
      %650 = arith.addf %638, %649 : vector<16x16xf32>
      %c1_215 = arith.constant 1 : index
      %651 = arith.index_cast %645 : i32 to index
      %652 = memref.load %arg4[%c1_215, %651] : memref<2x73xf32, #tpu.memory_space<smem>>
      %653 = vector.broadcast %652 : f32 to vector<16x16xf32>
      %654 = arith.mulf %653, %644 : vector<16x16xf32>
      %655 = arith.addf %643, %654 : vector<16x16xf32>
      %c5_i32 = arith.constant 5 : i32
      %656 = arith.index_cast %c5_i32 : i32 to index
      %c0_216 = arith.constant 0 : index
      %c0_217 = arith.constant 0 : index
      %657 = vector.load %arg7[%656, %c0_216, %c0_217] : memref<8x18x18xf32, #tpu.memory_space<vmem>>, vector<1x18x18xf32>
      %658 = vector.shape_cast %657 : vector<1x18x18xf32> to vector<18x18xf32>
      %659 = vector.extract_strided_slice %658 {offsets = [0, 0], sizes = [16, 16], strides = [1, 1]} : vector<18x18xf32> to vector<16x16xf32>
      %c0_i32_218 = arith.constant 0 : i32
      %660 = arith.addi %c0_i32_218, %c5_i32 : i32
      %c0_219 = arith.constant 0 : index
      %661 = arith.index_cast %660 : i32 to index
      %662 = memref.load %arg4[%c0_219, %661] : memref<2x73xf32, #tpu.memory_space<smem>>
      %663 = vector.broadcast %662 : f32 to vector<16x16xf32>
      %664 = arith.mulf %663, %659 : vector<16x16xf32>
      %665 = arith.addf %650, %664 : vector<16x16xf32>
      %c1_220 = arith.constant 1 : index
      %666 = arith.index_cast %660 : i32 to index
      %667 = memref.load %arg4[%c1_220, %666] : memref<2x73xf32, #tpu.memory_space<smem>>
      %668 = vector.broadcast %667 : f32 to vector<16x16xf32>
      %669 = arith.mulf %668, %659 : vector<16x16xf32>
      %670 = arith.addf %655, %669 : vector<16x16xf32>
      %671 = vector.extract_strided_slice %658 {offsets = [0, 1], sizes = [16, 16], strides = [1, 1]} : vector<18x18xf32> to vector<16x16xf32>
      %c8_i32_221 = arith.constant 8 : i32
      %672 = arith.addi %c8_i32_221, %c5_i32 : i32
      %c0_222 = arith.constant 0 : index
      %673 = arith.index_cast %672 : i32 to index
      %674 = memref.load %arg4[%c0_222, %673] : memref<2x73xf32, #tpu.memory_space<smem>>
      %675 = vector.broadcast %674 : f32 to vector<16x16xf32>
      %676 = arith.mulf %675, %671 : vector<16x16xf32>
      %677 = arith.addf %665, %676 : vector<16x16xf32>
      %c1_223 = arith.constant 1 : index
      %678 = arith.index_cast %672 : i32 to index
      %679 = memref.load %arg4[%c1_223, %678] : memref<2x73xf32, #tpu.memory_space<smem>>
      %680 = vector.broadcast %679 : f32 to vector<16x16xf32>
      %681 = arith.mulf %680, %671 : vector<16x16xf32>
      %682 = arith.addf %670, %681 : vector<16x16xf32>
      %683 = vector.extract_strided_slice %658 {offsets = [0, 2], sizes = [16, 16], strides = [1, 1]} : vector<18x18xf32> to vector<16x16xf32>
      %c16_i32_224 = arith.constant 16 : i32
      %684 = arith.addi %c16_i32_224, %c5_i32 : i32
      %c0_225 = arith.constant 0 : index
      %685 = arith.index_cast %684 : i32 to index
      %686 = memref.load %arg4[%c0_225, %685] : memref<2x73xf32, #tpu.memory_space<smem>>
      %687 = vector.broadcast %686 : f32 to vector<16x16xf32>
      %688 = arith.mulf %687, %683 : vector<16x16xf32>
      %689 = arith.addf %677, %688 : vector<16x16xf32>
      %c1_226 = arith.constant 1 : index
      %690 = arith.index_cast %684 : i32 to index
      %691 = memref.load %arg4[%c1_226, %690] : memref<2x73xf32, #tpu.memory_space<smem>>
      %692 = vector.broadcast %691 : f32 to vector<16x16xf32>
      %693 = arith.mulf %692, %683 : vector<16x16xf32>
      %694 = arith.addf %682, %693 : vector<16x16xf32>
      %695 = vector.extract_strided_slice %658 {offsets = [1, 0], sizes = [16, 16], strides = [1, 1]} : vector<18x18xf32> to vector<16x16xf32>
      %c24_i32_227 = arith.constant 24 : i32
      %696 = arith.addi %c24_i32_227, %c5_i32 : i32
      %c0_228 = arith.constant 0 : index
      %697 = arith.index_cast %696 : i32 to index
      %698 = memref.load %arg4[%c0_228, %697] : memref<2x73xf32, #tpu.memory_space<smem>>
      %699 = vector.broadcast %698 : f32 to vector<16x16xf32>
      %700 = arith.mulf %699, %695 : vector<16x16xf32>
      %701 = arith.addf %689, %700 : vector<16x16xf32>
      %c1_229 = arith.constant 1 : index
      %702 = arith.index_cast %696 : i32 to index
      %703 = memref.load %arg4[%c1_229, %702] : memref<2x73xf32, #tpu.memory_space<smem>>
      %704 = vector.broadcast %703 : f32 to vector<16x16xf32>
      %705 = arith.mulf %704, %695 : vector<16x16xf32>
      %706 = arith.addf %694, %705 : vector<16x16xf32>
      %707 = vector.extract_strided_slice %658 {offsets = [1, 1], sizes = [16, 16], strides = [1, 1]} : vector<18x18xf32> to vector<16x16xf32>
      %c32_i32_230 = arith.constant 32 : i32
      %708 = arith.addi %c32_i32_230, %c5_i32 : i32
      %c0_231 = arith.constant 0 : index
      %709 = arith.index_cast %708 : i32 to index
      %710 = memref.load %arg4[%c0_231, %709] : memref<2x73xf32, #tpu.memory_space<smem>>
      %711 = vector.broadcast %710 : f32 to vector<16x16xf32>
      %712 = arith.mulf %711, %707 : vector<16x16xf32>
      %713 = arith.addf %701, %712 : vector<16x16xf32>
      %c1_232 = arith.constant 1 : index
      %714 = arith.index_cast %708 : i32 to index
      %715 = memref.load %arg4[%c1_232, %714] : memref<2x73xf32, #tpu.memory_space<smem>>
      %716 = vector.broadcast %715 : f32 to vector<16x16xf32>
      %717 = arith.mulf %716, %707 : vector<16x16xf32>
      %718 = arith.addf %706, %717 : vector<16x16xf32>
      %719 = vector.extract_strided_slice %658 {offsets = [1, 2], sizes = [16, 16], strides = [1, 1]} : vector<18x18xf32> to vector<16x16xf32>
      %c40_i32_233 = arith.constant 40 : i32
      %720 = arith.addi %c40_i32_233, %c5_i32 : i32
      %c0_234 = arith.constant 0 : index
      %721 = arith.index_cast %720 : i32 to index
      %722 = memref.load %arg4[%c0_234, %721] : memref<2x73xf32, #tpu.memory_space<smem>>
      %723 = vector.broadcast %722 : f32 to vector<16x16xf32>
      %724 = arith.mulf %723, %719 : vector<16x16xf32>
      %725 = arith.addf %713, %724 : vector<16x16xf32>
      %c1_235 = arith.constant 1 : index
      %726 = arith.index_cast %720 : i32 to index
      %727 = memref.load %arg4[%c1_235, %726] : memref<2x73xf32, #tpu.memory_space<smem>>
      %728 = vector.broadcast %727 : f32 to vector<16x16xf32>
      %729 = arith.mulf %728, %719 : vector<16x16xf32>
      %730 = arith.addf %718, %729 : vector<16x16xf32>
      %731 = vector.extract_strided_slice %658 {offsets = [2, 0], sizes = [16, 16], strides = [1, 1]} : vector<18x18xf32> to vector<16x16xf32>
      %c48_i32_236 = arith.constant 48 : i32
      %732 = arith.addi %c48_i32_236, %c5_i32 : i32
      %c0_237 = arith.constant 0 : index
      %733 = arith.index_cast %732 : i32 to index
      %734 = memref.load %arg4[%c0_237, %733] : memref<2x73xf32, #tpu.memory_space<smem>>
      %735 = vector.broadcast %734 : f32 to vector<16x16xf32>
      %736 = arith.mulf %735, %731 : vector<16x16xf32>
      %737 = arith.addf %725, %736 : vector<16x16xf32>
      %c1_238 = arith.constant 1 : index
      %738 = arith.index_cast %732 : i32 to index
      %739 = memref.load %arg4[%c1_238, %738] : memref<2x73xf32, #tpu.memory_space<smem>>
      %740 = vector.broadcast %739 : f32 to vector<16x16xf32>
      %741 = arith.mulf %740, %731 : vector<16x16xf32>
      %742 = arith.addf %730, %741 : vector<16x16xf32>
      %743 = vector.extract_strided_slice %658 {offsets = [2, 1], sizes = [16, 16], strides = [1, 1]} : vector<18x18xf32> to vector<16x16xf32>
      %c56_i32_239 = arith.constant 56 : i32
      %744 = arith.addi %c56_i32_239, %c5_i32 : i32
      %c0_240 = arith.constant 0 : index
      %745 = arith.index_cast %744 : i32 to index
      %746 = memref.load %arg4[%c0_240, %745] : memref<2x73xf32, #tpu.memory_space<smem>>
      %747 = vector.broadcast %746 : f32 to vector<16x16xf32>
      %748 = arith.mulf %747, %743 : vector<16x16xf32>
      %749 = arith.addf %737, %748 : vector<16x16xf32>
      %c1_241 = arith.constant 1 : index
      %750 = arith.index_cast %744 : i32 to index
      %751 = memref.load %arg4[%c1_241, %750] : memref<2x73xf32, #tpu.memory_space<smem>>
      %752 = vector.broadcast %751 : f32 to vector<16x16xf32>
      %753 = arith.mulf %752, %743 : vector<16x16xf32>
      %754 = arith.addf %742, %753 : vector<16x16xf32>
      %755 = vector.extract_strided_slice %658 {offsets = [2, 2], sizes = [16, 16], strides = [1, 1]} : vector<18x18xf32> to vector<16x16xf32>
      %c64_i32_242 = arith.constant 64 : i32
      %756 = arith.addi %c64_i32_242, %c5_i32 : i32
      %c0_243 = arith.constant 0 : index
      %757 = arith.index_cast %756 : i32 to index
      %758 = memref.load %arg4[%c0_243, %757] : memref<2x73xf32, #tpu.memory_space<smem>>
      %759 = vector.broadcast %758 : f32 to vector<16x16xf32>
      %760 = arith.mulf %759, %755 : vector<16x16xf32>
      %761 = arith.addf %749, %760 : vector<16x16xf32>
      %c1_244 = arith.constant 1 : index
      %762 = arith.index_cast %756 : i32 to index
      %763 = memref.load %arg4[%c1_244, %762] : memref<2x73xf32, #tpu.memory_space<smem>>
      %764 = vector.broadcast %763 : f32 to vector<16x16xf32>
      %765 = arith.mulf %764, %755 : vector<16x16xf32>
      %766 = arith.addf %754, %765 : vector<16x16xf32>
      %c6_i32 = arith.constant 6 : i32
      %767 = arith.index_cast %c6_i32 : i32 to index
      %c0_245 = arith.constant 0 : index
      %c0_246 = arith.constant 0 : index
      %768 = vector.load %arg7[%767, %c0_245, %c0_246] : memref<8x18x18xf32, #tpu.memory_space<vmem>>, vector<1x18x18xf32>
      %769 = vector.shape_cast %768 : vector<1x18x18xf32> to vector<18x18xf32>
      %770 = vector.extract_strided_slice %769 {offsets = [0, 0], sizes = [16, 16], strides = [1, 1]} : vector<18x18xf32> to vector<16x16xf32>
      %c0_i32_247 = arith.constant 0 : i32
      %771 = arith.addi %c0_i32_247, %c6_i32 : i32
      %c0_248 = arith.constant 0 : index
      %772 = arith.index_cast %771 : i32 to index
      %773 = memref.load %arg4[%c0_248, %772] : memref<2x73xf32, #tpu.memory_space<smem>>
      %774 = vector.broadcast %773 : f32 to vector<16x16xf32>
      %775 = arith.mulf %774, %770 : vector<16x16xf32>
      %776 = arith.addf %761, %775 : vector<16x16xf32>
      %c1_249 = arith.constant 1 : index
      %777 = arith.index_cast %771 : i32 to index
      %778 = memref.load %arg4[%c1_249, %777] : memref<2x73xf32, #tpu.memory_space<smem>>
      %779 = vector.broadcast %778 : f32 to vector<16x16xf32>
      %780 = arith.mulf %779, %770 : vector<16x16xf32>
      %781 = arith.addf %766, %780 : vector<16x16xf32>
      %782 = vector.extract_strided_slice %769 {offsets = [0, 1], sizes = [16, 16], strides = [1, 1]} : vector<18x18xf32> to vector<16x16xf32>
      %c8_i32_250 = arith.constant 8 : i32
      %783 = arith.addi %c8_i32_250, %c6_i32 : i32
      %c0_251 = arith.constant 0 : index
      %784 = arith.index_cast %783 : i32 to index
      %785 = memref.load %arg4[%c0_251, %784] : memref<2x73xf32, #tpu.memory_space<smem>>
      %786 = vector.broadcast %785 : f32 to vector<16x16xf32>
      %787 = arith.mulf %786, %782 : vector<16x16xf32>
      %788 = arith.addf %776, %787 : vector<16x16xf32>
      %c1_252 = arith.constant 1 : index
      %789 = arith.index_cast %783 : i32 to index
      %790 = memref.load %arg4[%c1_252, %789] : memref<2x73xf32, #tpu.memory_space<smem>>
      %791 = vector.broadcast %790 : f32 to vector<16x16xf32>
      %792 = arith.mulf %791, %782 : vector<16x16xf32>
      %793 = arith.addf %781, %792 : vector<16x16xf32>
      %794 = vector.extract_strided_slice %769 {offsets = [0, 2], sizes = [16, 16], strides = [1, 1]} : vector<18x18xf32> to vector<16x16xf32>
      %c16_i32_253 = arith.constant 16 : i32
      %795 = arith.addi %c16_i32_253, %c6_i32 : i32
      %c0_254 = arith.constant 0 : index
      %796 = arith.index_cast %795 : i32 to index
      %797 = memref.load %arg4[%c0_254, %796] : memref<2x73xf32, #tpu.memory_space<smem>>
      %798 = vector.broadcast %797 : f32 to vector<16x16xf32>
      %799 = arith.mulf %798, %794 : vector<16x16xf32>
      %800 = arith.addf %788, %799 : vector<16x16xf32>
      %c1_255 = arith.constant 1 : index
      %801 = arith.index_cast %795 : i32 to index
      %802 = memref.load %arg4[%c1_255, %801] : memref<2x73xf32, #tpu.memory_space<smem>>
      %803 = vector.broadcast %802 : f32 to vector<16x16xf32>
      %804 = arith.mulf %803, %794 : vector<16x16xf32>
      %805 = arith.addf %793, %804 : vector<16x16xf32>
      %806 = vector.extract_strided_slice %769 {offsets = [1, 0], sizes = [16, 16], strides = [1, 1]} : vector<18x18xf32> to vector<16x16xf32>
      %c24_i32_256 = arith.constant 24 : i32
      %807 = arith.addi %c24_i32_256, %c6_i32 : i32
      %c0_257 = arith.constant 0 : index
      %808 = arith.index_cast %807 : i32 to index
      %809 = memref.load %arg4[%c0_257, %808] : memref<2x73xf32, #tpu.memory_space<smem>>
      %810 = vector.broadcast %809 : f32 to vector<16x16xf32>
      %811 = arith.mulf %810, %806 : vector<16x16xf32>
      %812 = arith.addf %800, %811 : vector<16x16xf32>
      %c1_258 = arith.constant 1 : index
      %813 = arith.index_cast %807 : i32 to index
      %814 = memref.load %arg4[%c1_258, %813] : memref<2x73xf32, #tpu.memory_space<smem>>
      %815 = vector.broadcast %814 : f32 to vector<16x16xf32>
      %816 = arith.mulf %815, %806 : vector<16x16xf32>
      %817 = arith.addf %805, %816 : vector<16x16xf32>
      %818 = vector.extract_strided_slice %769 {offsets = [1, 1], sizes = [16, 16], strides = [1, 1]} : vector<18x18xf32> to vector<16x16xf32>
      %c32_i32_259 = arith.constant 32 : i32
      %819 = arith.addi %c32_i32_259, %c6_i32 : i32
      %c0_260 = arith.constant 0 : index
      %820 = arith.index_cast %819 : i32 to index
      %821 = memref.load %arg4[%c0_260, %820] : memref<2x73xf32, #tpu.memory_space<smem>>
      %822 = vector.broadcast %821 : f32 to vector<16x16xf32>
      %823 = arith.mulf %822, %818 : vector<16x16xf32>
      %824 = arith.addf %812, %823 : vector<16x16xf32>
      %c1_261 = arith.constant 1 : index
      %825 = arith.index_cast %819 : i32 to index
      %826 = memref.load %arg4[%c1_261, %825] : memref<2x73xf32, #tpu.memory_space<smem>>
      %827 = vector.broadcast %826 : f32 to vector<16x16xf32>
      %828 = arith.mulf %827, %818 : vector<16x16xf32>
      %829 = arith.addf %817, %828 : vector<16x16xf32>
      %830 = vector.extract_strided_slice %769 {offsets = [1, 2], sizes = [16, 16], strides = [1, 1]} : vector<18x18xf32> to vector<16x16xf32>
      %c40_i32_262 = arith.constant 40 : i32
      %831 = arith.addi %c40_i32_262, %c6_i32 : i32
      %c0_263 = arith.constant 0 : index
      %832 = arith.index_cast %831 : i32 to index
      %833 = memref.load %arg4[%c0_263, %832] : memref<2x73xf32, #tpu.memory_space<smem>>
      %834 = vector.broadcast %833 : f32 to vector<16x16xf32>
      %835 = arith.mulf %834, %830 : vector<16x16xf32>
      %836 = arith.addf %824, %835 : vector<16x16xf32>
      %c1_264 = arith.constant 1 : index
      %837 = arith.index_cast %831 : i32 to index
      %838 = memref.load %arg4[%c1_264, %837] : memref<2x73xf32, #tpu.memory_space<smem>>
      %839 = vector.broadcast %838 : f32 to vector<16x16xf32>
      %840 = arith.mulf %839, %830 : vector<16x16xf32>
      %841 = arith.addf %829, %840 : vector<16x16xf32>
      %842 = vector.extract_strided_slice %769 {offsets = [2, 0], sizes = [16, 16], strides = [1, 1]} : vector<18x18xf32> to vector<16x16xf32>
      %c48_i32_265 = arith.constant 48 : i32
      %843 = arith.addi %c48_i32_265, %c6_i32 : i32
      %c0_266 = arith.constant 0 : index
      %844 = arith.index_cast %843 : i32 to index
      %845 = memref.load %arg4[%c0_266, %844] : memref<2x73xf32, #tpu.memory_space<smem>>
      %846 = vector.broadcast %845 : f32 to vector<16x16xf32>
      %847 = arith.mulf %846, %842 : vector<16x16xf32>
      %848 = arith.addf %836, %847 : vector<16x16xf32>
      %c1_267 = arith.constant 1 : index
      %849 = arith.index_cast %843 : i32 to index
      %850 = memref.load %arg4[%c1_267, %849] : memref<2x73xf32, #tpu.memory_space<smem>>
      %851 = vector.broadcast %850 : f32 to vector<16x16xf32>
      %852 = arith.mulf %851, %842 : vector<16x16xf32>
      %853 = arith.addf %841, %852 : vector<16x16xf32>
      %854 = vector.extract_strided_slice %769 {offsets = [2, 1], sizes = [16, 16], strides = [1, 1]} : vector<18x18xf32> to vector<16x16xf32>
      %c56_i32_268 = arith.constant 56 : i32
      %855 = arith.addi %c56_i32_268, %c6_i32 : i32
      %c0_269 = arith.constant 0 : index
      %856 = arith.index_cast %855 : i32 to index
      %857 = memref.load %arg4[%c0_269, %856] : memref<2x73xf32, #tpu.memory_space<smem>>
      %858 = vector.broadcast %857 : f32 to vector<16x16xf32>
      %859 = arith.mulf %858, %854 : vector<16x16xf32>
      %860 = arith.addf %848, %859 : vector<16x16xf32>
      %c1_270 = arith.constant 1 : index
      %861 = arith.index_cast %855 : i32 to index
      %862 = memref.load %arg4[%c1_270, %861] : memref<2x73xf32, #tpu.memory_space<smem>>
      %863 = vector.broadcast %862 : f32 to vector<16x16xf32>
      %864 = arith.mulf %863, %854 : vector<16x16xf32>
      %865 = arith.addf %853, %864 : vector<16x16xf32>
      %866 = vector.extract_strided_slice %769 {offsets = [2, 2], sizes = [16, 16], strides = [1, 1]} : vector<18x18xf32> to vector<16x16xf32>
      %c64_i32_271 = arith.constant 64 : i32
      %867 = arith.addi %c64_i32_271, %c6_i32 : i32
      %c0_272 = arith.constant 0 : index
      %868 = arith.index_cast %867 : i32 to index
      %869 = memref.load %arg4[%c0_272, %868] : memref<2x73xf32, #tpu.memory_space<smem>>
      %870 = vector.broadcast %869 : f32 to vector<16x16xf32>
      %871 = arith.mulf %870, %866 : vector<16x16xf32>
      %872 = arith.addf %860, %871 : vector<16x16xf32>
      %c1_273 = arith.constant 1 : index
      %873 = arith.index_cast %867 : i32 to index
      %874 = memref.load %arg4[%c1_273, %873] : memref<2x73xf32, #tpu.memory_space<smem>>
      %875 = vector.broadcast %874 : f32 to vector<16x16xf32>
      %876 = arith.mulf %875, %866 : vector<16x16xf32>
      %877 = arith.addf %865, %876 : vector<16x16xf32>
      %c7_i32 = arith.constant 7 : i32
      %878 = arith.index_cast %c7_i32 : i32 to index
      %c0_274 = arith.constant 0 : index
      %c0_275 = arith.constant 0 : index
      %879 = vector.load %arg7[%878, %c0_274, %c0_275] : memref<8x18x18xf32, #tpu.memory_space<vmem>>, vector<1x18x18xf32>
      %880 = vector.shape_cast %879 : vector<1x18x18xf32> to vector<18x18xf32>
      %881 = vector.extract_strided_slice %880 {offsets = [0, 0], sizes = [16, 16], strides = [1, 1]} : vector<18x18xf32> to vector<16x16xf32>
      %c0_i32_276 = arith.constant 0 : i32
      %882 = arith.addi %c0_i32_276, %c7_i32 : i32
      %c0_277 = arith.constant 0 : index
      %883 = arith.index_cast %882 : i32 to index
      %884 = memref.load %arg4[%c0_277, %883] : memref<2x73xf32, #tpu.memory_space<smem>>
      %885 = vector.broadcast %884 : f32 to vector<16x16xf32>
      %886 = arith.mulf %885, %881 : vector<16x16xf32>
      %887 = arith.addf %872, %886 : vector<16x16xf32>
      %c1_278 = arith.constant 1 : index
      %888 = arith.index_cast %882 : i32 to index
      %889 = memref.load %arg4[%c1_278, %888] : memref<2x73xf32, #tpu.memory_space<smem>>
      %890 = vector.broadcast %889 : f32 to vector<16x16xf32>
      %891 = arith.mulf %890, %881 : vector<16x16xf32>
      %892 = arith.addf %877, %891 : vector<16x16xf32>
      %893 = vector.extract_strided_slice %880 {offsets = [0, 1], sizes = [16, 16], strides = [1, 1]} : vector<18x18xf32> to vector<16x16xf32>
      %c8_i32_279 = arith.constant 8 : i32
      %894 = arith.addi %c8_i32_279, %c7_i32 : i32
      %c0_280 = arith.constant 0 : index
      %895 = arith.index_cast %894 : i32 to index
      %896 = memref.load %arg4[%c0_280, %895] : memref<2x73xf32, #tpu.memory_space<smem>>
      %897 = vector.broadcast %896 : f32 to vector<16x16xf32>
      %898 = arith.mulf %897, %893 : vector<16x16xf32>
      %899 = arith.addf %887, %898 : vector<16x16xf32>
      %c1_281 = arith.constant 1 : index
      %900 = arith.index_cast %894 : i32 to index
      %901 = memref.load %arg4[%c1_281, %900] : memref<2x73xf32, #tpu.memory_space<smem>>
      %902 = vector.broadcast %901 : f32 to vector<16x16xf32>
      %903 = arith.mulf %902, %893 : vector<16x16xf32>
      %904 = arith.addf %892, %903 : vector<16x16xf32>
      %905 = vector.extract_strided_slice %880 {offsets = [0, 2], sizes = [16, 16], strides = [1, 1]} : vector<18x18xf32> to vector<16x16xf32>
      %c16_i32_282 = arith.constant 16 : i32
      %906 = arith.addi %c16_i32_282, %c7_i32 : i32
      %c0_283 = arith.constant 0 : index
      %907 = arith.index_cast %906 : i32 to index
      %908 = memref.load %arg4[%c0_283, %907] : memref<2x73xf32, #tpu.memory_space<smem>>
      %909 = vector.broadcast %908 : f32 to vector<16x16xf32>
      %910 = arith.mulf %909, %905 : vector<16x16xf32>
      %911 = arith.addf %899, %910 : vector<16x16xf32>
      %c1_284 = arith.constant 1 : index
      %912 = arith.index_cast %906 : i32 to index
      %913 = memref.load %arg4[%c1_284, %912] : memref<2x73xf32, #tpu.memory_space<smem>>
      %914 = vector.broadcast %913 : f32 to vector<16x16xf32>
      %915 = arith.mulf %914, %905 : vector<16x16xf32>
      %916 = arith.addf %904, %915 : vector<16x16xf32>
      %917 = vector.extract_strided_slice %880 {offsets = [1, 0], sizes = [16, 16], strides = [1, 1]} : vector<18x18xf32> to vector<16x16xf32>
      %c24_i32_285 = arith.constant 24 : i32
      %918 = arith.addi %c24_i32_285, %c7_i32 : i32
      %c0_286 = arith.constant 0 : index
      %919 = arith.index_cast %918 : i32 to index
      %920 = memref.load %arg4[%c0_286, %919] : memref<2x73xf32, #tpu.memory_space<smem>>
      %921 = vector.broadcast %920 : f32 to vector<16x16xf32>
      %922 = arith.mulf %921, %917 : vector<16x16xf32>
      %923 = arith.addf %911, %922 : vector<16x16xf32>
      %c1_287 = arith.constant 1 : index
      %924 = arith.index_cast %918 : i32 to index
      %925 = memref.load %arg4[%c1_287, %924] : memref<2x73xf32, #tpu.memory_space<smem>>
      %926 = vector.broadcast %925 : f32 to vector<16x16xf32>
      %927 = arith.mulf %926, %917 : vector<16x16xf32>
      %928 = arith.addf %916, %927 : vector<16x16xf32>
      %929 = vector.extract_strided_slice %880 {offsets = [1, 1], sizes = [16, 16], strides = [1, 1]} : vector<18x18xf32> to vector<16x16xf32>
      %c32_i32_288 = arith.constant 32 : i32
      %930 = arith.addi %c32_i32_288, %c7_i32 : i32
      %c0_289 = arith.constant 0 : index
      %931 = arith.index_cast %930 : i32 to index
      %932 = memref.load %arg4[%c0_289, %931] : memref<2x73xf32, #tpu.memory_space<smem>>
      %933 = vector.broadcast %932 : f32 to vector<16x16xf32>
      %934 = arith.mulf %933, %929 : vector<16x16xf32>
      %935 = arith.addf %923, %934 : vector<16x16xf32>
      %c1_290 = arith.constant 1 : index
      %936 = arith.index_cast %930 : i32 to index
      %937 = memref.load %arg4[%c1_290, %936] : memref<2x73xf32, #tpu.memory_space<smem>>
      %938 = vector.broadcast %937 : f32 to vector<16x16xf32>
      %939 = arith.mulf %938, %929 : vector<16x16xf32>
      %940 = arith.addf %928, %939 : vector<16x16xf32>
      %941 = vector.extract_strided_slice %880 {offsets = [1, 2], sizes = [16, 16], strides = [1, 1]} : vector<18x18xf32> to vector<16x16xf32>
      %c40_i32_291 = arith.constant 40 : i32
      %942 = arith.addi %c40_i32_291, %c7_i32 : i32
      %c0_292 = arith.constant 0 : index
      %943 = arith.index_cast %942 : i32 to index
      %944 = memref.load %arg4[%c0_292, %943] : memref<2x73xf32, #tpu.memory_space<smem>>
      %945 = vector.broadcast %944 : f32 to vector<16x16xf32>
      %946 = arith.mulf %945, %941 : vector<16x16xf32>
      %947 = arith.addf %935, %946 : vector<16x16xf32>
      %c1_293 = arith.constant 1 : index
      %948 = arith.index_cast %942 : i32 to index
      %949 = memref.load %arg4[%c1_293, %948] : memref<2x73xf32, #tpu.memory_space<smem>>
      %950 = vector.broadcast %949 : f32 to vector<16x16xf32>
      %951 = arith.mulf %950, %941 : vector<16x16xf32>
      %952 = arith.addf %940, %951 : vector<16x16xf32>
      %953 = vector.extract_strided_slice %880 {offsets = [2, 0], sizes = [16, 16], strides = [1, 1]} : vector<18x18xf32> to vector<16x16xf32>
      %c48_i32_294 = arith.constant 48 : i32
      %954 = arith.addi %c48_i32_294, %c7_i32 : i32
      %c0_295 = arith.constant 0 : index
      %955 = arith.index_cast %954 : i32 to index
      %956 = memref.load %arg4[%c0_295, %955] : memref<2x73xf32, #tpu.memory_space<smem>>
      %957 = vector.broadcast %956 : f32 to vector<16x16xf32>
      %958 = arith.mulf %957, %953 : vector<16x16xf32>
      %959 = arith.addf %947, %958 : vector<16x16xf32>
      %c1_296 = arith.constant 1 : index
      %960 = arith.index_cast %954 : i32 to index
      %961 = memref.load %arg4[%c1_296, %960] : memref<2x73xf32, #tpu.memory_space<smem>>
      %962 = vector.broadcast %961 : f32 to vector<16x16xf32>
      %963 = arith.mulf %962, %953 : vector<16x16xf32>
      %964 = arith.addf %952, %963 : vector<16x16xf32>
      %965 = vector.extract_strided_slice %880 {offsets = [2, 1], sizes = [16, 16], strides = [1, 1]} : vector<18x18xf32> to vector<16x16xf32>
      %c56_i32_297 = arith.constant 56 : i32
      %966 = arith.addi %c56_i32_297, %c7_i32 : i32
      %c0_298 = arith.constant 0 : index
      %967 = arith.index_cast %966 : i32 to index
      %968 = memref.load %arg4[%c0_298, %967] : memref<2x73xf32, #tpu.memory_space<smem>>
      %969 = vector.broadcast %968 : f32 to vector<16x16xf32>
      %970 = arith.mulf %969, %965 : vector<16x16xf32>
      %971 = arith.addf %959, %970 : vector<16x16xf32>
      %c1_299 = arith.constant 1 : index
      %972 = arith.index_cast %966 : i32 to index
      %973 = memref.load %arg4[%c1_299, %972] : memref<2x73xf32, #tpu.memory_space<smem>>
      %974 = vector.broadcast %973 : f32 to vector<16x16xf32>
      %975 = arith.mulf %974, %965 : vector<16x16xf32>
      %976 = arith.addf %964, %975 : vector<16x16xf32>
      %977 = vector.extract_strided_slice %880 {offsets = [2, 2], sizes = [16, 16], strides = [1, 1]} : vector<18x18xf32> to vector<16x16xf32>
      %c64_i32_300 = arith.constant 64 : i32
      %978 = arith.addi %c64_i32_300, %c7_i32 : i32
      %c0_301 = arith.constant 0 : index
      %979 = arith.index_cast %978 : i32 to index
      %980 = memref.load %arg4[%c0_301, %979] : memref<2x73xf32, #tpu.memory_space<smem>>
      %981 = vector.broadcast %980 : f32 to vector<16x16xf32>
      %982 = arith.mulf %981, %977 : vector<16x16xf32>
      %983 = arith.addf %971, %982 : vector<16x16xf32>
      %c1_302 = arith.constant 1 : index
      %984 = arith.index_cast %978 : i32 to index
      %985 = memref.load %arg4[%c1_302, %984] : memref<2x73xf32, #tpu.memory_space<smem>>
      %986 = vector.broadcast %985 : f32 to vector<16x16xf32>
      %987 = arith.mulf %986, %977 : vector<16x16xf32>
      %988 = arith.addf %976, %987 : vector<16x16xf32>
      %c8_i32_303 = arith.constant 8 : i32
      %c0_304 = arith.constant 0 : index
      %c72 = arith.constant 72 : index
      %989 = memref.load %arg4[%c0_304, %c72] : memref<2x73xf32, #tpu.memory_space<smem>>
      %990 = vector.broadcast %989 : f32 to vector<16x16xf32>
      %991 = arith.addf %983, %990 : vector<16x16xf32>
      %c1_305 = arith.constant 1 : index
      %c72_306 = arith.constant 72 : index
      %992 = memref.load %arg4[%c1_305, %c72_306] : memref<2x73xf32, #tpu.memory_space<smem>>
      %993 = vector.broadcast %992 : f32 to vector<16x16xf32>
      %994 = arith.addf %988, %993 : vector<16x16xf32>
      %c0_307 = arith.constant 0 : index
      %c0_308 = arith.constant 0 : index
      %995 = vector.load %arg8[%c0_307, %c0_308] : memref<32x16xf32, #tpu.memory_space<vmem>>, vector<16x16xf32>
      tpu.vector_store %arg8[%c0_307, %c0_308], %991 {strides = array<i32>} : memref<32x16xf32, #tpu.memory_space<vmem>>, vector<16x16xf32>,
      %c16 = arith.constant 16 : index
      %c0_309 = arith.constant 0 : index
      %996 = vector.load %arg8[%c16, %c0_309] : memref<32x16xf32, #tpu.memory_space<vmem>>, vector<16x16xf32>
      tpu.vector_store %arg8[%c16, %c0_309], %994 {strides = array<i32>} : memref<32x16xf32, #tpu.memory_space<vmem>>, vector<16x16xf32>,
    } else {
    }
    %c0 = arith.constant 0 : index
    %c0_1 = arith.constant 0 : index
    %c0_2 = arith.constant 0 : index
    %3 = vector.load %arg5[%c0, %c0_1, %c0_2] : memref<1x2x256xf32, #tpu.memory_space<vmem>>, vector<1x2x256xf32>
    %4 = vector.shape_cast %3 : vector<1x2x256xf32> to vector<2x256xf32>
    %5 = vector.extract_strided_slice %4 {offsets = [0, 0], sizes = [1, 256], strides = [1, 1]} : vector<2x256xf32> to vector<1x256xf32>
    %cst = arith.constant 1.500000e+01 : f32
    %6 = vector.broadcast %cst : f32 to vector<1x256xf32>
    %7 = arith.mulf %5, %6 : vector<1x256xf32>
    %cst_3 = arith.constant 0.000000e+00 : f32
    %cst_4 = arith.constant 1.500000e+01 : f32
    %8 = vector.broadcast %cst_3 : f32 to vector<1x256xf32>
    %9 = arith.maximumf %8, %7 : vector<1x256xf32>
    %10 = vector.broadcast %cst_4 : f32 to vector<1x256xf32>
    %11 = arith.minimumf %10, %9 : vector<1x256xf32>
    %12 = vector.extract_strided_slice %4 {offsets = [1, 0], sizes = [1, 256], strides = [1, 1]} : vector<2x256xf32> to vector<1x256xf32>
    %cst_5 = arith.constant 1.500000e+01 : f32
    %13 = vector.broadcast %cst_5 : f32 to vector<1x256xf32>
    %14 = arith.mulf %12, %13 : vector<1x256xf32>
    %cst_6 = arith.constant 0.000000e+00 : f32
    %cst_7 = arith.constant 1.500000e+01 : f32
    %15 = vector.broadcast %cst_6 : f32 to vector<1x256xf32>
    %16 = arith.maximumf %15, %14 : vector<1x256xf32>
    %17 = vector.broadcast %cst_7 : f32 to vector<1x256xf32>
    %18 = arith.minimumf %17, %16 : vector<1x256xf32>
    %19 = tpu.iota {dimensions = array<i32: 0>} : vector<16x256xi32>
    %20 = arith.sitofp %19 : vector<16x256xi32> to vector<16x256xf32>
    %21 = tpu.iota {dimensions = array<i32: 0>} : vector<16x256xi32>
    %22 = arith.sitofp %21 : vector<16x256xi32> to vector<16x256xf32>
    %23 = vector.broadcast %11 : vector<1x256xf32> to vector<16x256xf32>
    %24 = arith.subf %20, %23 : vector<16x256xf32>
    %25 = math.absf %24 : vector<16x256xf32>
    %cst_8 = arith.constant 1.000000e+00 : f32
    %26 = vector.broadcast %cst_8 : f32 to vector<16x256xf32>
    %27 = arith.subf %26, %25 : vector<16x256xf32>
    %cst_9 = arith.constant 0.000000e+00 : f32
    %28 = vector.broadcast %cst_9 : f32 to vector<16x256xf32>
    %29 = arith.maximumf %27, %28 : vector<16x256xf32>
    %30 = vector.broadcast %18 : vector<1x256xf32> to vector<16x256xf32>
    %31 = arith.subf %22, %30 : vector<16x256xf32>
    %32 = math.absf %31 : vector<16x256xf32>
    %cst_10 = arith.constant 1.000000e+00 : f32
    %33 = vector.broadcast %cst_10 : f32 to vector<16x256xf32>
    %34 = arith.subf %33, %32 : vector<16x256xf32>
    %cst_11 = arith.constant 0.000000e+00 : f32
    %35 = vector.broadcast %cst_11 : f32 to vector<16x256xf32>
    %36 = arith.maximumf %34, %35 : vector<16x256xf32>
    %c0_12 = arith.constant 0 : index
    %c0_13 = arith.constant 0 : index
    %37 = vector.load %arg8[%c0_12, %c0_13] : memref<32x16xf32, #tpu.memory_space<vmem>>, vector<32x16xf32>
    %cst_14 = arith.constant dense<0.000000e+00> : vector<32x256xf32>
    %38 = tpu.matmul %37, %36, %cst_14 {dimension_numbers = #tpu.dot_dimension_numbers<[1], [0], [0], [1], [0, 0, 1, 1], [], []>} : vector<32x16xf32>, vector<16x256xf32>, vector<32x256xf32> -> vector<32x256xf32>
    %39 = vector.extract_strided_slice %38 {offsets = [0, 0], sizes = [16, 256], strides = [1, 1]} : vector<32x256xf32> to vector<16x256xf32>
    %40 = arith.mulf %39, %29 : vector<16x256xf32>
    %cst_15 = arith.constant dense<0.000000e+00> : vector<256xf32>
    %41 = vector.multi_reduction <add>, %40, %cst_15 [0] : vector<16x256xf32> to vector<256xf32>
    %42 = vector.shape_cast %41 : vector<256xf32> to vector<1x256xf32>
    %43 = vector.extract_strided_slice %38 {offsets = [16, 0], sizes = [16, 256], strides = [1, 1]} : vector<32x256xf32> to vector<16x256xf32>
    %44 = arith.mulf %43, %29 : vector<16x256xf32>
    %cst_16 = arith.constant dense<0.000000e+00> : vector<256xf32>
    %45 = vector.multi_reduction <add>, %44, %cst_16 [0] : vector<16x256xf32> to vector<256xf32>
    %46 = vector.shape_cast %45 : vector<256xf32> to vector<1x256xf32>
    %47 = vector.extract_strided_slice %4 {offsets = [0, 0], sizes = [1, 256], strides = [1, 1]} : vector<2x256xf32> to vector<1x256xf32>
    %48 = arith.addf %47, %42 : vector<1x256xf32>
    %c0_17 = arith.constant 0 : index
    %c0_18 = arith.constant 0 : index
    %c0_19 = arith.constant 0 : index
    %49 = vector.load %arg6[%c0_17, %c0_18, %c0_19] : memref<1x2x256xf32, #tpu.memory_space<vmem>>, vector<1x1x256xf32>
    %50 = vector.shape_cast %49 : vector<1x1x256xf32> to vector<1x256xf32>
    %51 = vector.shape_cast %48 : vector<1x256xf32> to vector<1x1x256xf32>
    tpu.vector_store %arg6[%c0_17, %c0_18, %c0_19], %51 {strides = array<i32>} : memref<1x2x256xf32, #tpu.memory_space<vmem>>, vector<1x1x256xf32>,
    %52 = vector.extract_strided_slice %4 {offsets = [1, 0], sizes = [1, 256], strides = [1, 1]} : vector<2x256xf32> to vector<1x256xf32>
    %53 = arith.addf %52, %46 : vector<1x256xf32>
    %c0_20 = arith.constant 0 : index
    %c1 = arith.constant 1 : index
    %c0_21 = arith.constant 0 : index
    %54 = vector.load %arg6[%c0_20, %c1, %c0_21] : memref<1x2x256xf32, #tpu.memory_space<vmem>>, vector<1x1x256xf32>
    %55 = vector.shape_cast %54 : vector<1x1x256xf32> to vector<1x256xf32>
    %56 = vector.shape_cast %53 : vector<1x256xf32> to vector<1x1x256xf32>
    tpu.vector_store %arg6[%c0_20, %c1, %c0_21], %56 {strides = array<i32>} : memref<1x2x256xf32, #tpu.memory_space<vmem>>, vector<1x1x256xf32>,
    return
  }
  func.func @transform_0(%arg0: i32, %arg1: i32) -> (i32, i32, i32, i32) {
    %c0_i32 = arith.constant 0 : i32
    %c0_i32_0 = arith.constant 0 : i32
    %c0_i32_1 = arith.constant 0 : i32
    %c0_i32_2 = arith.constant 0 : i32
    return %arg0, %c0_i32, %c0_i32_0, %c0_i32_1 : i32, i32, i32, i32
  }
  func.func @transform_1(%arg0: i32, %arg1: i32) -> (i32, i32, i32, i32) {
    %c0_i32 = arith.constant 0 : i32
    %c0_i32_0 = arith.constant 0 : i32
    %c0_i32_1 = arith.constant 0 : i32
    %c0_i32_2 = arith.constant 0 : i32
    return %arg0, %c0_i32, %c0_i32_0, %c0_i32_1 : i32, i32, i32, i32
  }
  func.func @transform_2(%arg0: i32, %arg1: i32) -> (i32, i32) {
    %c0_i32 = arith.constant 0 : i32
    %c0_i32_0 = arith.constant 0 : i32
    %c0_i32_1 = arith.constant 0 : i32
    return %c0_i32, %c0_i32_0 : i32, i32
  }
  func.func @transform_3(%arg0: i32, %arg1: i32) -> (i32, i32, i32) {
    %c0_i32 = arith.constant 0 : i32
    %c0_i32_0 = arith.constant 0 : i32
    return %arg0, %c0_i32, %arg1 : i32, i32, i32
  }
  func.func @transform_4(%arg0: i32, %arg1: i32) -> (i32, i32, i32) {
    %c0_i32 = arith.constant 0 : i32
    %c0_i32_0 = arith.constant 0 : i32
    return %arg0, %c0_i32, %arg1 : i32, i32, i32
  }
}

</mosaic_0001>

<llo_original>
// kernel: phi_ab_apply.1
$region0: #{phi_ab_apply.1}
  #allocation0 [shape = 'u32[]', space=smem, size = 0x4, offset = 0x4, fixed_abs, tag = 'smem constant byte address 0x4 - core index']
  #allocation1 [shape = 'u32[144,128]{1,0:T(1,128)}', space=vmem, size = 0x12000, scoped, tag = 'internal scratch']
  #allocation2 [shape = 'f32[8,18,18]{2,1,0:T(8,128)}', space=vmem, size = 0x18000, scoped, tag = 'scratch operand']
  #allocation3 [shape = 'f32[32,16]{1,0:T(8,128)}', space=vmem, size = 0x4000, scoped, tag = 'scratch operand']
  %s0 = inlined_call_operand.vmem [shape: f32[2,4,16,16], index: 0, kind: input, shape index: {}]
  %s1 = inlined_call_operand.hbm [shape: f32[2,4,16,16], index: 1, kind: input, shape index: {}]
  %s2 = inlined_call_operand.vmem [shape: f32[2,73], index: 2, kind: input, shape index: {}]
  %s3 = inlined_call_operand.vmem [shape: f32[2,2,256], index: 3, kind: input, shape index: {}]
  %s4 = inlined_call_operand.vmem [shape: f32[2,2,256], index: 4, kind: output, shape index: {}]
  %s5 = sld [smem:[#allocation0]]
  $region61: #{phi_ab_apply.1} parent=0
    _
  %s7 = ssub.s32 1, %s5
  %s8 = scalar_select 0, %s7, %s5
  $region1: #{phi_ab_apply.1} parent=0
    #allocation4 [shape = 'u8[65536]{0}', space=vmem, size = 0x10000, scoped, tag = 'input window, operand 1']
    #allocation5 [shape = 's32[2]{0}', space=sflag, size = 0x8, scoped, tag = 'scoped memory for phi_ab_apply.1']
    #allocation6 [shape = 's32[2]{0}', space=sflag, size = 0x8, scoped, tag = 'scoped memory for phi_ab_apply.1']
    #allocation7 [shape = 'u8[1024]{0}', space=smem, size = 0x400, scoped, tag = 'input window, operand 2, single buffered']
    %9 = vsyncpa [#allocation5], 0
    %s10 = scalar_lea.sflag [#allocation5], 1
    %11 = vsyncpa %s10, 0
    %12 = vsyncpa [#allocation6], 0
    loop: start=0, step=1, limit=4
    $region2: #{phi_ab_apply.1} parent=1 // loop_pre_header
      _
    $region3: #{phi_ab_apply.1} parent=1 // loop_header
      %s14 = sphi 0, %s18
      %p15 = scmp.ge.s32.totalorder %s14, 4
      %s21 = sphi 0, %s33
      %s22 = sphi 0, %s29
      %s23 = sphi 0, %s21
      %s24 = sphi 0, %s22
      %s25 = sphi 0, %s23
      %s26 = sphi 0, %s24
      %s36 = sphi 0, %s38
      %s39 = sphi 0, %s36
      %s40 = sphi 0, %s39
      %s56 = sphi 0, %s40
      %s62 = sphi 0, %s64
      %s65 = sphi 0, %s62
      %s66 = sphi 0, %s65
      %s82 = sphi 0, %s66
      %s86 = sphi 0, %s86
      %s88 = sphi 0, %s86
      %s89 = sphi 0, %s88
      %s103 = sphi 0, %s89
      %s111 = sphi 0, %s113
      %s114 = sphi 0, %s111
      %s115 = sphi 0, %s114
      %s131 = sphi 0, %s115
      %s139 = sphi 0, %s141
      %s142 = sphi 0, %s139
      %s143 = sphi 0, %s142
      %s159 = sphi 0, %s143
    $region4: #{phi_ab_apply.1} parent=1 // loop_header_branch
      %17 = sbr.rel (%p15) target = $region8
    $region5: #{phi_ab_apply.1} parent=1 // loop_body
      %s19 = ssub.s32 %s14, 1
      %s20 = ssub.s32 %s14, 2
      %s27 = sadd.s32 1, %s22
      %p28 = scmp.ge.s32.totalorder %s27, 1
      %s29 = scalar_select %p28, 0, %s27
      %s30 = sadd.s32 1, %s21
      %s31 = scalar_select %p28, %s30, %s21
      %p32 = scmp.ge.s32.totalorder %s31, 2
      %s33 = scalar_select %p32, 0, %s31
      %s34 = ssub.s32 %s21, %s33
      %p35 = scmp.eq.s32.totalorder %s34, 0
      %s37 = sadd.s32 %s36, 1
      %s38 = scalar_select %p35, %s36, %s37
      %p41 = pneg %p35
      %p42 = scmp.eq.s32.totalorder %s14, 1
      %p43 = por %p41, %p42
      %p44 = scmp.ne.s32.totalorder %s36, %s39
      %p45 = scmp.eq.s32.totalorder %s14, 0
      %p46 = por %p44, %p45
      %p47 = scmp.ne.s32.totalorder %s36, %s39
      %p48 = scmp.eq.s32.totalorder %s19, 1
      %p49 = por %p47, %p48
      %p50 = scmp.ne.s32.totalorder %s39, %s40
      %p51 = scmp.eq.s32.totalorder %s19, 0
      %p52 = por %p50, %p51
      %p53 = scmp.ne.s32.totalorder %s39, %s40
      %p54 = scmp.eq.s32.totalorder %s20, 1
      %p55 = por %p53, %p54
      %p57 = scmp.ne.s32.totalorder %s40, %s56
      %p58 = scmp.eq.s32.totalorder %s20, 0
      %p59 = por %p57, %p58
      %s60 = ssub.s32 %s21, %s33
      %p61 = scmp.eq.s32.totalorder %s60, 0
      %s63 = sadd.s32 %s62, 1
      %s64 = scalar_select %p61, %s62, %s63
      %p67 = pneg %p61
      %p68 = scmp.eq.s32.totalorder %s14, 1
      %p69 = por %p67, %p68
      %p70 = scmp.ne.s32.totalorder %s62, %s65
      %p71 = scmp.eq.s32.totalorder %s14, 0
      %p72 = por %p70, %p71
      %p73 = scmp.ne.s32.totalorder %s62, %s65
      %p74 = scmp.eq.s32.totalorder %s19, 1
      %p75 = por %p73, %p74
      %p76 = scmp.ne.s32.totalorder %s65, %s66
      %p77 = scmp.eq.s32.totalorder %s19, 0
      %p78 = por %p76, %p77
      %p79 = scmp.ne.s32.totalorder %s65, %s66
      %p80 = scmp.eq.s32.totalorder %s20, 1
      %p81 = por %p79, %p80
      %p83 = scmp.ne.s32.totalorder %s66, %s82
      %p84 = scmp.eq.s32.totalorder %s20, 0
      %p85 = por %p83, %p84
      %s87 = sadd.s32 %s86, 1
      %p90 = scmp.eq.s32.totalorder %s14, 1
      %p91 = scmp.ne.s32.totalorder %s86, %s88
      %p92 = scmp.eq.s32.totalorder %s14, 0
      %p93 = por %p91, %p92
      %p94 = scmp.ne.s32.totalorder %s86, %s88
      %p95 = scmp.eq.s32.totalorder %s19, 1
      %p96 = por %p94, %p95
      %p97 = scmp.ne.s32.totalorder %s88, %s89
      %p98 = scmp.eq.s32.totalorder %s19, 0
      %p99 = por %p97, %p98
      %p100 = scmp.ne.s32.totalorder %s88, %s89
      %p101 = scmp.eq.s32.totalorder %s20, 1
      %p102 = por %p100, %p101
      %p104 = scmp.ne.s32.totalorder %s89, %s103
      %p105 = scmp.eq.s32.totalorder %s20, 0
      %p106 = por %p104, %p105
      %s107 = ssub.s32 %s21, %s33
      %s108 = ssub.s32 %s22, %s29
      %s109 = sor.u32 %s107, %s108
      %p110 = scmp.eq.s32.totalorder %s109, 0
      %s112 = sadd.s32 %s111, 1
      %s113 = scalar_select %p110, %s111, %s112
      %p116 = pneg %p110
      %p117 = scmp.eq.s32.totalorder %s14, 1
      %p118 = por %p116, %p117
      %p119 = scmp.ne.s32.totalorder %s111, %s114
      %p120 = scmp.eq.s32.totalorder %s14, 0
      %p121 = por %p119, %p120
      %p122 = scmp.ne.s32.totalorder %s111, %s114
      %p123 = scmp.eq.s32.totalorder %s19, 1
      %p124 = por %p122, %p123
      %p125 = scmp.ne.s32.totalorder %s114, %s115
      %p126 = scmp.eq.s32.totalorder %s19, 0
      %p127 = por %p125, %p126
      %p128 = scmp.ne.s32.totalorder %s114, %s115
      %p129 = scmp.eq.s32.totalorder %s20, 1
      %p130 = por %p128, %p129
      %p132 = scmp.ne.s32.totalorder %s115, %s131
      %p133 = scmp.eq.s32.totalorder %s20, 0
      %p134 = por %p132, %p133
      %s135 = ssub.s32 %s21, %s33
      %s136 = ssub.s32 %s22, %s29
      %s137 = sor.u32 %s135, %s136
      %p138 = scmp.eq.s32.totalorder %s137, 0
      %s140 = sadd.s32 %s139, 1
      %s141 = scalar_select %p138, %s139, %s140
      %p144 = pneg %p138
      %p145 = scmp.eq.s32.totalorder %s14, 1
      %p146 = por %p144, %p145
      %p147 = scmp.ne.s32.totalorder %s139, %s142
      %p148 = scmp.eq.s32.totalorder %s14, 0
      %p149 = por %p147, %p148
      %p150 = scmp.ne.s32.totalorder %s139, %s142
      %p151 = scmp.eq.s32.totalorder %s19, 1
      %p152 = por %p150, %p151
      %p153 = scmp.ne.s32.totalorder %s142, %s143
      %p154 = scmp.eq.s32.totalorder %s19, 0
      %p155 = por %p153, %p154
      %p156 = scmp.ne.s32.totalorder %s142, %s143
      %p157 = scmp.eq.s32.totalorder %s20, 1
      %p158 = por %p156, %p157
      %p160 = scmp.ne.s32.totalorder %s143, %s159
      %p161 = scmp.eq.s32.totalorder %s20, 0
      %p162 = por %p160, %p161
      %p163 = scmp.le.s32.totalorder 1, %s14
      %p164 = scmp.lt.s32.totalorder %s14, 3
      %p165 = pnand %p163, %p164
      %p166 = pneg %p165
      // Predicated region
      $region9: #{phi_ab_apply.1} parent=5 // pred_check
        _
      $region10: #{phi_ab_apply.1} parent=5 // pred_check_branch
        %168 = sbr.rel (%p165) target = $region12
      $region11: #{phi_ab_apply.1} parent=5 // pred_region
        %s169 = ssub.s32 %s14, 1
        // Predicated region
        $region13: #{phi_ab_apply.1} parent=11 // pred_check
          %p170 = pneg %p99
        $region14: #{phi_ab_apply.1} parent=11 // pred_check_branch
          %172 = sbr.rel (%p170) target = $region16
        $region15: #{phi_ab_apply.1} parent=11 // pred_region
          %s174 = ssub.s32 32, 32
          %175 = vsyncadd [#allocation6], %s174
          %s177 = sshll.u32 %s2, 4
          %s178 = int_to_ptr.vmem [resolvable:$true] %s177
          %180 = dma.vmem_to_smem %s178, 32, [#allocation7], [#allocation6]
        $region16: #{phi_ab_apply.1} parent=11 // pred_fallthru
          _
      $region12: #{phi_ab_apply.1} parent=5 // pred_fallthru
        _
      %p181 = scmp.lt.s32.totalorder %s14, 2
      // Predicated region
      $region17: #{phi_ab_apply.1} parent=5 // pred_check
        %p182 = pneg %p181
      $region18: #{phi_ab_apply.1} parent=5 // pred_check_branch
        %184 = sbr.rel (%p182) target = $region20
      $region19: #{phi_ab_apply.1} parent=5 // pred_region
        // Predicated region
        $region21: #{phi_ab_apply.1} parent=19 // pred_check
          %p185 = pneg %p46
        $region22: #{phi_ab_apply.1} parent=19 // pred_check_branch
          %187 = sbr.rel (%p185) target = $region24
        $region23: #{phi_ab_apply.1} parent=19 // pred_region
          %p188 = scmp.lt.s32.totalorder %s21, 1
          %s189 = scalar_select %p188, %s21, 1
          %s190 = smul.addr %s189, 8
          %s191 = smul.addr %s190, 8
          %s192 = scalar_lea.vmem %s0, %s191
        $region24: #{phi_ab_apply.1} parent=19 // pred_fallthru
          _
        // Predicated region
        $region25: #{phi_ab_apply.1} parent=19 // pred_check
          %p193 = pneg %p72
        $region26: #{phi_ab_apply.1} parent=19 // pred_check_branch
          %195 = sbr.rel (%p193) target = $region28
        $region27: #{phi_ab_apply.1} parent=19 // pred_region
          %s196 = sand.u32 %s62, 1
          %s197 = scalar_lea.sflag [#allocation5], %s196
          %s198 = sand.u32 %s62, 1
          %s199 = smul.addr %s198, 64
          %s200 = scalar_lea.vmem [#allocation4], %s199
          %s202 = ssub.s32 1024, 1024
          %203 = vsyncadd %s197, %s202
          %s204 = smul.addr %s21, 8
          %s205 = smul.addr %s204, 128
          %s206 = scalar_lea.hbm %s1, %s205
          %s207 = sshll.u32 %s200, 4
          %s208 = int_to_ptr.vmem [resolvable:$true] %s207
          %213 = dma.hbm_to_vmem [thread:$0]  %s206, 1024, %s208, %s197, 128, 128, 8
        $region28: #{phi_ab_apply.1} parent=19 // pred_fallthru
          _
        // Predicated region
        $region29: #{phi_ab_apply.1} parent=19 // pred_check
          %p214 = pneg %p121
        $region30: #{phi_ab_apply.1} parent=19 // pred_check_branch
          %216 = sbr.rel (%p214) target = $region32
        $region31: #{phi_ab_apply.1} parent=19 // pred_region
          %s217 = smul.u32 2, %s22
          %p218 = scmp.lt.s32.totalorder %s21, 1
          %s219 = scalar_select %p218, %s21, 1
          %p220 = scmp.lt.s32.totalorder %s217, 1
          %s221 = scalar_select %p220, %s217, 1
          %s222 = smul.addr %s219, 2
          %s223 = sadd.s32 %s221, %s222
          %s224 = smul.addr %s223, 2
          %s225 = scalar_lea.vmem %s3, %s224
          %s226 = smul.u32 2, %s22
        $region32: #{phi_ab_apply.1} parent=19 // pred_fallthru
          _
      $region20: #{phi_ab_apply.1} parent=5 // pred_fallthru
        _
      %p227 = scmp.le.s32.totalorder 1, %s14
      %p228 = scmp.lt.s32.totalorder %s14, 3
      %p229 = pnand %p227, %p228
      %p230 = pneg %p229
      // Predicated region
      $region33: #{phi_ab_apply.1} parent=5 // pred_check
        _
      $region34: #{phi_ab_apply.1} parent=5 // pred_check_branch
        %232 = sbr.rel (%p229) target = $region36
      $region35: #{phi_ab_apply.1} parent=5 // pred_region
        %s233 = ssub.s32 %s14, 1
        %s234 = sand.u32 %s65, 1
        %s235 = scalar_lea.sflag [#allocation5], %s234
        %s236 = sand.u32 %s65, 1
        %s237 = smul.addr %s236, 64
        %s238 = scalar_lea.vmem [#allocation4], %s237
        // Predicated region
        $region37: #{phi_ab_apply.1} parent=35 // pred_check
          %p239 = pneg %p78
        $region38: #{phi_ab_apply.1} parent=35 // pred_check_branch
          %241 = sbr.rel (%p239) target = $region40
        $region39: #{phi_ab_apply.1} parent=35 // pred_region
          %242 = dma.done %s235, 1024
        $region40: #{phi_ab_apply.1} parent=35 // pred_fallthru
          _
        // Predicated region
        $region41: #{phi_ab_apply.1} parent=35 // pred_check
          %p243 = pneg %p99
        $region42: #{phi_ab_apply.1} parent=35 // pred_check_branch
          %245 = sbr.rel (%p243) target = $region44
        $region43: #{phi_ab_apply.1} parent=35 // pred_region
          %246 = dma.done [#allocation6], 32
        $region44: #{phi_ab_apply.1} parent=35 // pred_fallthru
          _
        %247 = sfence
        %p248 = scmp.lt.s32.totalorder %s23, 1
        %s249 = scalar_select %p248, %s23, 1
        %s250 = smul.addr %s249, 8
        %s251 = smul.addr %s250, 8
        %s252 = scalar_lea.vmem %s0, %s251
        %p253 = pneg %p52
        %p254 = pneg %p49
        %s255 = sand.u32 %s65, 1
        %s256 = scalar_lea.sflag [#allocation5], %s255
        %s257 = sand.u32 %s65, 1
        %s258 = smul.addr %s257, 64
        %s259 = scalar_lea.vmem [#allocation4], %s258
        %p260 = pneg %p78
        %p261 = pneg %p75
        %p262 = pneg %p99
        %p263 = pneg %p96
        %s264 = smul.u32 2, %s24
        %p265 = scmp.lt.s32.totalorder %s23, 1
        %s266 = scalar_select %p265, %s23, 1
        %p267 = scmp.lt.s32.totalorder %s264, 1
        %s268 = scalar_select %p267, %s264, 1
        %s269 = smul.addr %s266, 2
        %s270 = sadd.s32 %s268, %s269
        %s271 = smul.addr %s270, 2
        %s272 = scalar_lea.vmem %s3, %s271
        %p273 = pneg %p127
        %p274 = pneg %p124
        %p275 = pneg %p155
        %p276 = pneg %p152
        %s277 = smul.u32 2, %s24
        %p278 = scmp.lt.s32.totalorder %s23, 1
        %s279 = scalar_select %p278, %s23, 1
        %p280 = scmp.lt.s32.totalorder %s277, 1
        %s281 = scalar_select %p280, %s277, 1
        %s282 = smul.addr %s279, 2
        %s283 = sadd.s32 %s281, %s282
        %s284 = smul.addr %s283, 2
        %s285 = scalar_lea.vmem %s4, %s284
        %p286 = scmp.lt.s32.totalorder %s23, 1
        %s287 = scalar_select %p286, %s23, 1
        %s288 = smul.addr %s287, 8
        %s289 = smul.addr %s288, 8
        %s290 = scalar_lea.vmem %s0, %s289
        %s291 = smul.u32 2, %s24
        %p292 = scmp.lt.s32.totalorder %s23, 1
        %s293 = scalar_select %p292, %s23, 1
        %p294 = scmp.lt.s32.totalorder %s291, 1
        %s295 = scalar_select %p294, %s291, 1
        %s296 = smul.addr %s293, 2
        %s297 = sadd.s32 %s295, %s296
        %s298 = smul.addr %s297, 2
        %s299 = scalar_lea.vmem %s3, %s298
        %s300 = smul.u32 2, %s24
        %s301 = smul.u32 2, %s24
        %p302 = scmp.lt.s32.totalorder %s23, 1
        %s303 = scalar_select %p302, %s23, 1
        %p304 = scmp.lt.s32.totalorder %s301, 1
        %s305 = scalar_select %p304, %s301, 1
        %s306 = smul.addr %s303, 2
        %s307 = sadd.s32 %s305, %s306
        %s308 = smul.addr %s307, 2
        %s309 = scalar_lea.vmem %s4, %s308
        %s310 = smul.u32 2, %s24
        %p311 = scmp.eq.s32.totalorder %s24, 0
        // Predicated region
        $region45: #{phi_ab_apply.1} parent=35 // pred_check
          %p312 = pneg %p311
        $region46: #{phi_ab_apply.1} parent=35 // pred_check_branch
          %314 = sbr.rel (%p312) target = $region48
        $region47: #{phi_ab_apply.1} parent=35 // pred_region
          %vm315 = vcmask 146432
          %316 = vst.msk [vmem:[#allocation2] sm:$0xff] %vm315, 0.0
          %317 = vst.msk [vmem:[#allocation2 + $0x8] sm:$0xff] %vm315, 0.0
          %vm318 = vcmask 140288
          %319 = vst.msk [vmem:[#allocation2 + $0x10] sm:$0x3] %vm318, 0.0
          %320 = vst.msk [vmem:[#allocation2 + $0x18] sm:$0xff] %vm315, 0.0
          %321 = vst.msk [vmem:[#allocation2 + $0x20] sm:$0xff] %vm315, 0.0
          %322 = vst.msk [vmem:[#allocation2 + $0x28] sm:$0x3] %vm318, 0.0
          %323 = vst.msk [vmem:[#allocation2 + $0x30] sm:$0xff] %vm315, 0.0
          %324 = vst.msk [vmem:[#allocation2 + $0x38] sm:$0xff] %vm315, 0.0
          %325 = vst.msk [vmem:[#allocation2 + $0x40] sm:$0x3] %vm318, 0.0
          %326 = vst.msk [vmem:[#allocation2 + $0x48] sm:$0xff] %vm315, 0.0
          %327 = vst.msk [vmem:[#allocation2 + $0x50] sm:$0xff] %vm315, 0.0
          %328 = vst.msk [vmem:[#allocation2 + $0x58] sm:$0x3] %vm318, 0.0
          %329 = vst.msk [vmem:[#allocation2 + $0x60] sm:$0xff] %vm315, 0.0
          %330 = vst.msk [vmem:[#allocation2 + $0x68] sm:$0xff] %vm315, 0.0
          %331 = vst.msk [vmem:[#allocation2 + $0x70] sm:$0x3] %vm318, 0.0
          %332 = vst.msk [vmem:[#allocation2 + $0x78] sm:$0xff] %vm315, 0.0
          %333 = vst.msk [vmem:[#allocation2 + $0x80] sm:$0xff] %vm315, 0.0
          %334 = vst.msk [vmem:[#allocation2 + $0x88] sm:$0x3] %vm318, 0.0
          %335 = vst.msk [vmem:[#allocation2 + $0x90] sm:$0xff] %vm315, 0.0
          %336 = vst.msk [vmem:[#allocation2 + $0x98] sm:$0xff] %vm315, 0.0
          %337 = vst.msk [vmem:[#allocation2 + $0xa0] sm:$0x3] %vm318, 0.0
          %338 = vst.msk [vmem:[#allocation2 + $0xa8] sm:$0xff] %vm315, 0.0
          %339 = vst.msk [vmem:[#allocation2 + $0xb0] sm:$0xff] %vm315, 0.0
          %340 = vst.msk [vmem:[#allocation2 + $0xb8] sm:$0x3] %vm318, 0.0
          %v341 = vld [vmem:[%s290] sm:$0xff]
          %v342 = vld [vmem:[%s290 + $0x8] sm:$0xff]
          %345 = vrot.lane.b32.xlu0 %v341, 1
          %v346 = vpop.permute.xlu0 %345
          %347 = vrot.lane.b32.xlu0 %v342, 1
          %v348 = vpop.permute.xlu0 %347
          %vm351 = vcmask 138248
          %352 = vst.msk [vmem:[#allocation2 + $0x1] sm:$0xff] %vm351, %v346
          %353 = vst.msk [vmem:[#allocation2 + $0x9] sm:$0xff] %vm351, %v348
          %v354 = vld [vmem:[%s238] sm:$0xff]
          %v355 = vld [vmem:[%s238 + $0x8] sm:$0xff]
          %358 = vrot.lane.b32.xlu0 %v354, 1
          %v359 = vpop.permute.xlu0 %358
          %360 = vrot.lane.b32.xlu0 %v355, 1
          %v361 = vpop.permute.xlu0 %360
          %s364 = scalar_lea.vmem [#allocation2], 96
          %365 = vst.msk [vmem:[%s364 + $0x1] sm:$0xff] %vm351, %v359
          %366 = vst.msk [vmem:[%s364 + $0x9] sm:$0xff] %vm351, %v361
          %s367 = scalar_lea.vmem %s290, 16
          %v368 = vld [vmem:[%s367] sm:$0xff]
          %v369 = vld [vmem:[%s367 + $0x8] sm:$0xff]
          %372 = vrot.lane.b32.xlu0 %v368, 1
          %v373 = vpop.permute.xlu0 %372
          %374 = vrot.lane.b32.xlu0 %v369, 1
          %v375 = vpop.permute.xlu0 %374
          %s378 = scalar_lea.vmem [#allocation2], 24
          %379 = vst.msk [vmem:[%s378 + $0x1] sm:$0xff] %vm351, %v373
          %380 = vst.msk [vmem:[%s378 + $0x9] sm:$0xff] %vm351, %v375
          %s381 = scalar_lea.vmem %s238, 16 [#allocation4]
          %v382 = vld [vmem:[%s381] sm:$0xff]
          %v383 = vld [vmem:[%s381 + $0x8] sm:$0xff]
          %386 = vrot.lane.b32.xlu0 %v382, 1
          %v387 = vpop.permute.xlu0 %386
          %388 = vrot.lane.b32.xlu0 %v383, 1
          %v389 = vpop.permute.xlu0 %388
          %s392 = scalar_lea.vmem [#allocation2], 120
          %393 = vst.msk [vmem:[%s392 + $0x1] sm:$0xff] %vm351, %v387
          %394 = vst.msk [vmem:[%s392 + $0x9] sm:$0xff] %vm351, %v389
          %s395 = scalar_lea.vmem %s290, 32
          %v396 = vld [vmem:[%s395] sm:$0xff]
          %v397 = vld [vmem:[%s395 + $0x8] sm:$0xff]
          %400 = vrot.lane.b32.xlu0 %v396, 1
          %v401 = vpop.permute.xlu0 %400
          %402 = vrot.lane.b32.xlu0 %v397, 1
          %v403 = vpop.permute.xlu0 %402
          %s406 = scalar_lea.vmem [#allocation2], 48
          %407 = vst.msk [vmem:[%s406 + $0x1] sm:$0xff] %vm351, %v401
          %408 = vst.msk [vmem:[%s406 + $0x9] sm:$0xff] %vm351, %v403
          %s409 = scalar_lea.vmem %s238, 32 [#allocation4]
          %v410 = vld [vmem:[%s409] sm:$0xff]
          %v411 = vld [vmem:[%s409 + $0x8] sm:$0xff]
          %414 = vrot.lane.b32.xlu0 %v410, 1
          %v415 = vpop.permute.xlu0 %414
          %416 = vrot.lane.b32.xlu0 %v411, 1
          %v417 = vpop.permute.xlu0 %416
          %s420 = scalar_lea.vmem [#allocation2], 144
          %421 = vst.msk [vmem:[%s420 + $0x1] sm:$0xff] %vm351, %v415
          %422 = vst.msk [vmem:[%s420 + $0x9] sm:$0xff] %vm351, %v417
          %s423 = scalar_lea.vmem %s290, 48
          %v424 = vld [vmem:[%s423] sm:$0xff]
          %v425 = vld [vmem:[%s423 + $0x8] sm:$0xff]
          %428 = vrot.lane.b32.xlu0 %v424, 1
          %v429 = vpop.permute.xlu0 %428
          %430 = vrot.lane.b32.xlu0 %v425, 1
          %v431 = vpop.permute.xlu0 %430
          %s434 = scalar_lea.vmem [#allocation2], 72
          %435 = vst.msk [vmem:[%s434 + $0x1] sm:$0xff] %vm351, %v429
          %436 = vst.msk [vmem:[%s434 + $0x9] sm:$0xff] %vm351, %v431
          %s437 = scalar_lea.vmem %s238, 48 [#allocation4]
          %v438 = vld [vmem:[%s437] sm:$0xff]
          %v439 = vld [vmem:[%s437 + $0x8] sm:$0xff]
          %442 = vrot.lane.b32.xlu0 %v438, 1
          %v443 = vpop.permute.xlu0 %442
          %444 = vrot.lane.b32.xlu0 %v439, 1
          %v445 = vpop.permute.xlu0 %444
          %s448 = scalar_lea.vmem [#allocation2], 168
          %449 = vst.msk [vmem:[%s448 + $0x1] sm:$0xff] %vm351, %v443
          %450 = vst.msk [vmem:[%s448 + $0x9] sm:$0xff] %vm351, %v445
          %v451 = vld [vmem:[#allocation2] sm:$0xff]
          %v452 = vld [vmem:[#allocation2 + $0x8] sm:$0xff]
          %v453 = vld [vmem:[#allocation2 + $0x10] sm:$0x3]
          %s454 = sld [smem:[#allocation7]]
          %v455 = vstv %s454
          %v456 = vmul.f32 %v455, %v451
          %v457 = vmul.f32 %v455, %v452
          %v458 = vadd.f32 %v456, 0.0
          %v459 = vadd.f32 %v457, 0.0
          %s460 = sld [smem:[#allocation7 + $0x80]]
          %v461 = vstv %s460
          %v462 = vmul.f32 %v461, %v451
          %v463 = vmul.f32 %v461, %v452
          %v464 = vadd.f32 %v462, 0.0
          %v465 = vadd.f32 %v463, 0.0
          %s466 = sld [smem:[#allocation7 + $0x8]]
          %v467 = vstv %s466
          %v468 = vmul.f32 %v467, %v451
          %v469 = vmul.f32 %v467, %v452
          %472 = vrot.lane.b32.xlu0 %v468, 127
          %v473 = vpop.permute.xlu0 %472
          %474 = vrot.lane.b32.xlu0 %v469, 127
          %v475 = vpop.permute.xlu0 %474
          %v478 = vadd.f32 %v458, %v473
          %v479 = vadd.f32 %v459, %v475
          %s480 = sld [smem:[#allocation7 + $0x88]]
          %v481 = vstv %s480
          %v482 = vmul.f32 %v481, %v451
          %v483 = vmul.f32 %v481, %v452
          %486 = vrot.lane.b32.xlu0 %v482, 127
          %v487 = vpop.permute.xlu0 %486
          %488 = vrot.lane.b32.xlu0 %v483, 127
          %v489 = vpop.permute.xlu0 %488
          %v492 = vadd.f32 %v464, %v487
          %v493 = vadd.f32 %v465, %v489
          %s494 = sld [smem:[#allocation7 + $0x10]]
          %v495 = vstv %s494
          %v496 = vmul.f32 %v495, %v451
          %v497 = vmul.f32 %v495, %v452
          %500 = vrot.lane.b32.xlu0 %v496, 126
          %v501 = vpop.permute.xlu0 %500
          %502 = vrot.lane.b32.xlu0 %v497, 126
          %v503 = vpop.permute.xlu0 %502
          %v506 = vadd.f32 %v478, %v501
          %v507 = vadd.f32 %v479, %v503
          %s508 = sld [smem:[#allocation7 + $0x90]]
          %v509 = vstv %s508
          %v510 = vmul.f32 %v509, %v451
          %v511 = vmul.f32 %v509, %v452
          %514 = vrot.lane.b32.xlu0 %v510, 126
          %v515 = vpop.permute.xlu0 %514
          %516 = vrot.lane.b32.xlu0 %v511, 126
          %v517 = vpop.permute.xlu0 %516
          %v520 = vadd.f32 %v492, %v515
          %v521 = vadd.f32 %v493, %v517
          %s522 = sld [smem:[#allocation7 + $0x18]]
          %v523 = vstv %s522
          %v524 = vmul.f32 %v523, %v451
          %v525 = vmul.f32 %v523, %v452
          %v526 = vmul.f32 %v523, %v453
          %vm530 = vcmask 1046528
          %v531 = vrot.slane %v524, 1
          %v532 = vrot.slane %v525, 1
          %v533 = vsel %vm530, %v531, %v532
          %v534 = vrot.slane %v526, 1
          %v535 = vsel %vm530, %v532, %v534
          %v538 = vadd.f32 %v506, %v533
          %v539 = vadd.f32 %v507, %v535
          %s540 = sld [smem:[#allocation7 + $0x98]]
          %v541 = vstv %s540
          %v542 = vmul.f32 %v541, %v451
          %v543 = vmul.f32 %v541, %v452
          %v544 = vmul.f32 %v541, %v453
          %v548 = vrot.slane %v542, 1
          %v549 = vrot.slane %v543, 1
          %v550 = vsel %vm530, %v548, %v549
          %v551 = vrot.slane %v544, 1
          %v552 = vsel %vm530, %v549, %v551
          %v555 = vadd.f32 %v520, %v550
          %v556 = vadd.f32 %v521, %v552
          %s557 = sld [smem:[#allocation7 + $0x20]]
          %v558 = vstv %s557
          %v559 = vmul.f32 %v558, %v451
          %v560 = vmul.f32 %v558, %v452
          %v561 = vmul.f32 %v558, %v453
          %v565 = vrot.slane %v559, 1
          %v566 = vrot.slane %v560, 1
          %v567 = vsel %vm530, %v565, %v566
          %v568 = vrot.slane %v561, 1
          %v569 = vsel %vm530, %v566, %v568
          %570 = vrot.lane.b32.xlu0 %v567, 127
          %v571 = vpop.permute.xlu0 %570
          %572 = vrot.lane.b32.xlu0 %v569, 127
          %v573 = vpop.permute.xlu0 %572
          %v576 = vadd.f32 %v538, %v571
          %v577 = vadd.f32 %v539, %v573
          %s578 = sld [smem:[#allocation7 + $0xa0]]
          %v579 = vstv %s578
          %v580 = vmul.f32 %v579, %v451
          %v581 = vmul.f32 %v579, %v452
          %v582 = vmul.f32 %v579, %v453
          %v586 = vrot.slane %v580, 1
          %v587 = vrot.slane %v581, 1
          %v588 = vsel %vm530, %v586, %v587
          %v589 = vrot.slane %v582, 1
          %v590 = vsel %vm530, %v587, %v589
          %591 = vrot.lane.b32.xlu0 %v588, 127
          %v592 = vpop.permute.xlu0 %591
          %593 = vrot.lane.b32.xlu0 %v590, 127
          %v594 = vpop.permute.xlu0 %593
          %v597 = vadd.f32 %v555, %v592
          %v598 = vadd.f32 %v556, %v594
          %s599 = sld [smem:[#allocation7 + $0x28]]
          %v600 = vstv %s599
          %v601 = vmul.f32 %v600, %v451
          %v602 = vmul.f32 %v600, %v452
          %v603 = vmul.f32 %v600, %v453
          %v607 = vrot.slane %v601, 1
          %v608 = vrot.slane %v602, 1
          %v609 = vsel %vm530, %v607, %v608
          %v610 = vrot.slane %v603, 1
          %v611 = vsel %vm530, %v608, %v610
          %612 = vrot.lane.b32.xlu0 %v609, 126
          %v613 = vpop.permute.xlu0 %612
          %614 = vrot.lane.b32.xlu0 %v611, 126
          %v615 = vpop.permute.xlu0 %614
          %v618 = vadd.f32 %v576, %v613
          %v619 = vadd.f32 %v577, %v615
          %s620 = sld [smem:[#allocation7 + $0xa8]]
          %v621 = vstv %s620
          %v622 = vmul.f32 %v621, %v451
          %v623 = vmul.f32 %v621, %v452
          %v624 = vmul.f32 %v621, %v453
          %v628 = vrot.slane %v622, 1
          %v629 = vrot.slane %v623, 1
          %v630 = vsel %vm530, %v628, %v629
          %v631 = vrot.slane %v624, 1
          %v632 = vsel %vm530, %v629, %v631
          %633 = vrot.lane.b32.xlu0 %v630, 126
          %v634 = vpop.permute.xlu0 %633
          %635 = vrot.lane.b32.xlu0 %v632, 126
          %v636 = vpop.permute.xlu0 %635
          %v639 = vadd.f32 %v597, %v634
          %v640 = vadd.f32 %v598, %v636
          %s641 = sld [smem:[#allocation7 + $0x30]]
          %v642 = vstv %s641
          %v643 = vmul.f32 %v642, %v451
          %v644 = vmul.f32 %v642, %v452
          %v645 = vmul.f32 %v642, %v453
          %vm649 = vcmask 1045504
          %v650 = vrot.slane %v643, 2
          %v651 = vrot.slane %v644, 2
          %v652 = vsel %vm649, %v650, %v651
          %v653 = vrot.slane %v645, 2
          %v654 = vsel %vm649, %v651, %v653
          %v657 = vadd.f32 %v618, %v652
          %v658 = vadd.f32 %v619, %v654
          %s659 = sld [smem:[#allocation7 + $0xb0]]
          %v660 = vstv %s659
          %v661 = vmul.f32 %v660, %v451
          %v662 = vmul.f32 %v660, %v452
          %v663 = vmul.f32 %v660, %v453
          %v667 = vrot.slane %v661, 2
          %v668 = vrot.slane %v662, 2
          %v669 = vsel %vm649, %v667, %v668
          %v670 = vrot.slane %v663, 2
          %v671 = vsel %vm649, %v668, %v670
          %v674 = vadd.f32 %v639, %v669
          %v675 = vadd.f32 %v640, %v671
          %s676 = sld [smem:[#allocation7 + $0x38]]
          %v677 = vstv %s676
          %v678 = vmul.f32 %v677, %v451
          %v679 = vmul.f32 %v677, %v452
          %v680 = vmul.f32 %v677, %v453
          %v684 = vrot.slane %v678, 2
          %v685 = vrot.slane %v679, 2
          %v686 = vsel %vm649, %v684, %v685
          %v687 = vrot.slane %v680, 2
          %v688 = vsel %vm649, %v685, %v687
          %689 = vrot.lane.b32.xlu0 %v686, 127
          %v690 = vpop.permute.xlu0 %689
          %691 = vrot.lane.b32.xlu0 %v688, 127
          %v692 = vpop.permute.xlu0 %691
          %v695 = vadd.f32 %v657, %v690
          %v696 = vadd.f32 %v658, %v692
          %s697 = sld [smem:[#allocation7 + $0xb8]]
          %v698 = vstv %s697
          %v699 = vmul.f32 %v698, %v451
          %v700 = vmul.f32 %v698, %v452
          %v701 = vmul.f32 %v698, %v453
          %v705 = vrot.slane %v699, 2
          %v706 = vrot.slane %v700, 2
          %v707 = vsel %vm649, %v705, %v706
          %v708 = vrot.slane %v701, 2
          %v709 = vsel %vm649, %v706, %v708
          %710 = vrot.lane.b32.xlu0 %v707, 127
          %v711 = vpop.permute.xlu0 %710
          %712 = vrot.lane.b32.xlu0 %v709, 127
          %v713 = vpop.permute.xlu0 %712
          %v716 = vadd.f32 %v674, %v711
          %v717 = vadd.f32 %v675, %v713
          %s718 = sld [smem:[#allocation7 + $0x40]]
          %v719 = vstv %s718
          %v720 = vmul.f32 %v719, %v451
          %v721 = vmul.f32 %v719, %v452
          %v722 = vmul.f32 %v719, %v453
          %v726 = vrot.slane %v720, 2
          %v727 = vrot.slane %v721, 2
          %v728 = vsel %vm649, %v726, %v727
          %v729 = vrot.slane %v722, 2
          %v730 = vsel %vm649, %v727, %v729
          %731 = vrot.lane.b32.xlu0 %v728, 126
          %v732 = vpop.permute.xlu0 %731
          %733 = vrot.lane.b32.xlu0 %v730, 126
          %v734 = vpop.permute.xlu0 %733
          %v737 = vadd.f32 %v695, %v732
          %v738 = vadd.f32 %v696, %v734
          %s739 = sld [smem:[#allocation7 + $0xc0]]
          %v740 = vstv %s739
          %v741 = vmul.f32 %v740, %v451
          %v742 = vmul.f32 %v740, %v452
          %v743 = vmul.f32 %v740, %v453
          %v747 = vrot.slane %v741, 2
          %v748 = vrot.slane %v742, 2
          %v749 = vsel %vm649, %v747, %v748
          %v750 = vrot.slane %v743, 2
          %v751 = vsel %vm649, %v748, %v750
          %752 = vrot.lane.b32.xlu0 %v749, 126
          %v753 = vpop.permute.xlu0 %752
          %754 = vrot.lane.b32.xlu0 %v751, 126
          %v755 = vpop.permute.xlu0 %754
          %v758 = vadd.f32 %v716, %v753
          %v759 = vadd.f32 %v717, %v755
          %v760 = vld [vmem:[%s378] sm:$0xff]
          %v761 = vld [vmem:[%s378 + $0x8] sm:$0xff]
          %v762 = vld [vmem:[%s378 + $0x10] sm:$0x3]
          %s763 = sld [smem:[#allocation7 + $0x1]]
          %v764 = vstv %s763
          %v765 = vmul.f32 %v764, %v760
          %v766 = vmul.f32 %v764, %v761
          %v767 = vadd.f32 %v737, %v765
          %v768 = vadd.f32 %v738, %v766
          %s769 = sld [smem:[#allocation7 + $0x81]]
          %v770 = vstv %s769
          %v771 = vmul.f32 %v770, %v760
          %v772 = vmul.f32 %v770, %v761
          %v773 = vadd.f32 %v758, %v771
          %v774 = vadd.f32 %v759, %v772
          %s775 = sld [smem:[#allocation7 + $0x9]]
          %v776 = vstv %s775
          %v777 = vmul.f32 %v776, %v760
          %v778 = vmul.f32 %v776, %v761
          %781 = vrot.lane.b32.xlu0 %v777, 127
          %v782 = vpop.permute.xlu0 %781
          %783 = vrot.lane.b32.xlu0 %v778, 127
          %v784 = vpop.permute.xlu0 %783
          %v787 = vadd.f32 %v767, %v782
          %v788 = vadd.f32 %v768, %v784
          %s789 = sld [smem:[#allocation7 + $0x89]]
          %v790 = vstv %s789
          %v791 = vmul.f32 %v790, %v760
          %v792 = vmul.f32 %v790, %v761
          %795 = vrot.lane.b32.xlu0 %v791, 127
          %v796 = vpop.permute.xlu0 %795
          %797 = vrot.lane.b32.xlu0 %v792, 127
          %v798 = vpop.permute.xlu0 %797
          %v801 = vadd.f32 %v773, %v796
          %v802 = vadd.f32 %v774, %v798
          %s803 = sld [smem:[#allocation7 + $0x11]]
          %v804 = vstv %s803
          %v805 = vmul.f32 %v804, %v760
          %v806 = vmul.f32 %v804, %v761
          %809 = vrot.lane.b32.xlu0 %v805, 126
          %v810 = vpop.permute.xlu0 %809
          %811 = vrot.lane.b32.xlu0 %v806, 126
          %v812 = vpop.permute.xlu0 %811
          %v815 = vadd.f32 %v787, %v810
          %v816 = vadd.f32 %v788, %v812
          %s817 = sld [smem:[#allocation7 + $0x91]]
          %v818 = vstv %s817
          %v819 = vmul.f32 %v818, %v760
          %v820 = vmul.f32 %v818, %v761
          %823 = vrot.lane.b32.xlu0 %v819, 126
          %v824 = vpop.permute.xlu0 %823
          %825 = vrot.lane.b32.xlu0 %v820, 126
          %v826 = vpop.permute.xlu0 %825
          %v829 = vadd.f32 %v801, %v824
          %v830 = vadd.f32 %v802, %v826
          %s831 = sld [smem:[#allocation7 + $0x19]]
          %v832 = vstv %s831
          %v833 = vmul.f32 %v832, %v760
          %v834 = vmul.f32 %v832, %v761
          %v835 = vmul.f32 %v832, %v762
          %v839 = vrot.slane %v833, 1
          %v840 = vrot.slane %v834, 1
          %v841 = vsel %vm530, %v839, %v840
          %v842 = vrot.slane %v835, 1
          %v843 = vsel %vm530, %v840, %v842
          %v846 = vadd.f32 %v815, %v841
          %v847 = vadd.f32 %v816, %v843
          %s848 = sld [smem:[#allocation7 + $0x99]]
          %v849 = vstv %s848
          %v850 = vmul.f32 %v849, %v760
          %v851 = vmul.f32 %v849, %v761
          %v852 = vmul.f32 %v849, %v762
          %v856 = vrot.slane %v850, 1
          %v857 = vrot.slane %v851, 1
          %v858 = vsel %vm530, %v856, %v857
          %v859 = vrot.slane %v852, 1
          %v860 = vsel %vm530, %v857, %v859
          %v863 = vadd.f32 %v829, %v858
          %v864 = vadd.f32 %v830, %v860
          %s865 = sld [smem:[#allocation7 + $0x21]]
          %v866 = vstv %s865
          %v867 = vmul.f32 %v866, %v760
          %v868 = vmul.f32 %v866, %v761
          %v869 = vmul.f32 %v866, %v762
          %v873 = vrot.slane %v867, 1
          %v874 = vrot.slane %v868, 1
          %v875 = vsel %vm530, %v873, %v874
          %v876 = vrot.slane %v869, 1
          %v877 = vsel %vm530, %v874, %v876
          %878 = vrot.lane.b32.xlu0 %v875, 127
          %v879 = vpop.permute.xlu0 %878
          %880 = vrot.lane.b32.xlu0 %v877, 127
          %v881 = vpop.permute.xlu0 %880
          %v884 = vadd.f32 %v846, %v879
          %v885 = vadd.f32 %v847, %v881
          %s886 = sld [smem:[#allocation7 + $0xa1]]
          %v887 = vstv %s886
          %v888 = vmul.f32 %v887, %v760
          %v889 = vmul.f32 %v887, %v761
          %v890 = vmul.f32 %v887, %v762
          %v894 = vrot.slane %v888, 1
          %v895 = vrot.slane %v889, 1
          %v896 = vsel %vm530, %v894, %v895
          %v897 = vrot.slane %v890, 1
          %v898 = vsel %vm530, %v895, %v897
          %899 = vrot.lane.b32.xlu0 %v896, 127
          %v900 = vpop.permute.xlu0 %899
          %901 = vrot.lane.b32.xlu0 %v898, 127
          %v902 = vpop.permute.xlu0 %901
          %v905 = vadd.f32 %v863, %v900
          %v906 = vadd.f32 %v864, %v902
          %s907 = sld [smem:[#allocation7 + $0x29]]
          %v908 = vstv %s907
          %v909 = vmul.f32 %v908, %v760
          %v910 = vmul.f32 %v908, %v761
          %v911 = vmul.f32 %v908, %v762
          %v915 = vrot.slane %v909, 1
          %v916 = vrot.slane %v910, 1
          %v917 = vsel %vm530, %v915, %v916
          %v918 = vrot.slane %v911, 1
          %v919 = vsel %vm530, %v916, %v918
          %920 = vrot.lane.b32.xlu0 %v917, 126
          %v921 = vpop.permute.xlu0 %920
          %922 = vrot.lane.b32.xlu0 %v919, 126
          %v923 = vpop.permute.xlu0 %922
          %v926 = vadd.f32 %v884, %v921
          %v927 = vadd.f32 %v885, %v923
          %s928 = sld [smem:[#allocation7 + $0xa9]]
          %v929 = vstv %s928
          %v930 = vmul.f32 %v929, %v760
          %v931 = vmul.f32 %v929, %v761
          %v932 = vmul.f32 %v929, %v762
          %v936 = vrot.slane %v930, 1
          %v937 = vrot.slane %v931, 1
          %v938 = vsel %vm530, %v936, %v937
          %v939 = vrot.slane %v932, 1
          %v940 = vsel %vm530, %v937, %v939
          %941 = vrot.lane.b32.xlu0 %v938, 126
          %v942 = vpop.permute.xlu0 %941
          %943 = vrot.lane.b32.xlu0 %v940, 126
          %v944 = vpop.permute.xlu0 %943
          %v947 = vadd.f32 %v905, %v942
          %v948 = vadd.f32 %v906, %v944
          %s949 = sld [smem:[#allocation7 + $0x31]]
          %v950 = vstv %s949
          %v951 = vmul.f32 %v950, %v760
          %v952 = vmul.f32 %v950, %v761
          %v953 = vmul.f32 %v950, %v762
          %v957 = vrot.slane %v951, 2
          %v958 = vrot.slane %v952, 2
          %v959 = vsel %vm649, %v957, %v958
          %v960 = vrot.slane %v953, 2
          %v961 = vsel %vm649, %v958, %v960
          %v964 = vadd.f32 %v926, %v959
          %v965 = vadd.f32 %v927, %v961
          %s966 = sld [smem:[#allocation7 + $0xb1]]
          %v967 = vstv %s966
          %v968 = vmul.f32 %v967, %v760
          %v969 = vmul.f32 %v967, %v761
          %v970 = vmul.f32 %v967, %v762
          %v974 = vrot.slane %v968, 2
          %v975 = vrot.slane %v969, 2
          %v976 = vsel %vm649, %v974, %v975
          %v977 = vrot.slane %v970, 2
          %v978 = vsel %vm649, %v975, %v977
          %v981 = vadd.f32 %v947, %v976
          %v982 = vadd.f32 %v948, %v978
          %s983 = sld [smem:[#allocation7 + $0x39]]
          %v984 = vstv %s983
          %v985 = vmul.f32 %v984, %v760
          %v986 = vmul.f32 %v984, %v761
          %v987 = vmul.f32 %v984, %v762
          %v991 = vrot.slane %v985, 2
          %v992 = vrot.slane %v986, 2
          %v993 = vsel %vm649, %v991, %v992
          %v994 = vrot.slane %v987, 2
          %v995 = vsel %vm649, %v992, %v994
          %996 = vrot.lane.b32.xlu0 %v993, 127
          %v997 = vpop.permute.xlu0 %996
          %998 = vrot.lane.b32.xlu0 %v995, 127
          %v999 = vpop.permute.xlu0 %998
          %v1002 = vadd.f32 %v964, %v997
          %v1003 = vadd.f32 %v965, %v999
          %s1004 = sld [smem:[#allocation7 + $0xb9]]
          %v1005 = vstv %s1004
          %v1006 = vmul.f32 %v1005, %v760
          %v1007 = vmul.f32 %v1005, %v761
          %v1008 = vmul.f32 %v1005, %v762
          %v1012 = vrot.slane %v1006, 2
          %v1013 = vrot.slane %v1007, 2
          %v1014 = vsel %vm649, %v1012, %v1013
          %v1015 = vrot.slane %v1008, 2
          %v1016 = vsel %vm649, %v1013, %v1015
          %1017 = vrot.lane.b32.xlu0 %v1014, 127
          %v1018 = vpop.permute.xlu0 %1017
          %1019 = vrot.lane.b32.xlu0 %v1016, 127
          %v1020 = vpop.permute.xlu0 %1019
          %v1023 = vadd.f32 %v981, %v1018
          %v1024 = vadd.f32 %v982, %v1020
          %s1025 = sld [smem:[#allocation7 + $0x41]]
          %v1026 = vstv %s1025
          %v1027 = vmul.f32 %v1026, %v760
          %v1028 = vmul.f32 %v1026, %v761
          %v1029 = vmul.f32 %v1026, %v762
          %v1033 = vrot.slane %v1027, 2
          %v1034 = vrot.slane %v1028, 2
          %v1035 = vsel %vm649, %v1033, %v1034
          %v1036 = vrot.slane %v1029, 2
          %v1037 = vsel %vm649, %v1034, %v1036
          %1038 = vrot.lane.b32.xlu0 %v1035, 126
          %v1039 = vpop.permute.xlu0 %1038
          %1040 = vrot.lane.b32.xlu0 %v1037, 126
          %v1041 = vpop.permute.xlu0 %1040
          %v1044 = vadd.f32 %v1002, %v1039
          %v1045 = vadd.f32 %v1003, %v1041
          %s1046 = sld [smem:[#allocation7 + $0xc1]]
          %v1047 = vstv %s1046
          %v1048 = vmul.f32 %v1047, %v760
          %v1049 = vmul.f32 %v1047, %v761
          %v1050 = vmul.f32 %v1047, %v762
          %v1054 = vrot.slane %v1048, 2
          %v1055 = vrot.slane %v1049, 2
          %v1056 = vsel %vm649, %v1054, %v1055
          %v1057 = vrot.slane %v1050, 2
          %v1058 = vsel %vm649, %v1055, %v1057
          %1059 = vrot.lane.b32.xlu0 %v1056, 126
          %v1060 = vpop.permute.xlu0 %1059
          %1061 = vrot.lane.b32.xlu0 %v1058, 126
          %v1062 = vpop.permute.xlu0 %1061
          %v1065 = vadd.f32 %v1023, %v1060
          %v1066 = vadd.f32 %v1024, %v1062
          %v1067 = vld [vmem:[%s406] sm:$0xff]
          %v1068 = vld [vmem:[%s406 + $0x8] sm:$0xff]
          %v1069 = vld [vmem:[%s406 + $0x10] sm:$0x3]
          %s1070 = sld [smem:[#allocation7 + $0x2]]
          %v1071 = vstv %s1070
          %v1072 = vmul.f32 %v1071, %v1067
          %v1073 = vmul.f32 %v1071, %v1068
          %v1074 = vadd.f32 %v1044, %v1072
          %v1075 = vadd.f32 %v1045, %v1073
          %s1076 = sld [smem:[#allocation7 + $0x82]]
          %v1077 = vstv %s1076
          %v1078 = vmul.f32 %v1077, %v1067
          %v1079 = vmul.f32 %v1077, %v1068
          %v1080 = vadd.f32 %v1065, %v1078
          %v1081 = vadd.f32 %v1066, %v1079
          %s1082 = sld [smem:[#allocation7 + $0xa]]
          %v1083 = vstv %s1082
          %v1084 = vmul.f32 %v1083, %v1067
          %v1085 = vmul.f32 %v1083, %v1068
          %1088 = vrot.lane.b32.xlu0 %v1084, 127
          %v1089 = vpop.permute.xlu0 %1088
          %1090 = vrot.lane.b32.xlu0 %v1085, 127
          %v1091 = vpop.permute.xlu0 %1090
          %v1094 = vadd.f32 %v1074, %v1089
          %v1095 = vadd.f32 %v1075, %v1091
          %s1096 = sld [smem:[#allocation7 + $0x8a]]
          %v1097 = vstv %s1096
          %v1098 = vmul.f32 %v1097, %v1067
          %v1099 = vmul.f32 %v1097, %v1068
          %1102 = vrot.lane.b32.xlu0 %v1098, 127
          %v1103 = vpop.permute.xlu0 %1102
          %1104 = vrot.lane.b32.xlu0 %v1099, 127
          %v1105 = vpop.permute.xlu0 %1104
          %v1108 = vadd.f32 %v1080, %v1103
          %v1109 = vadd.f32 %v1081, %v1105
          %s1110 = sld [smem:[#allocation7 + $0x12]]
          %v1111 = vstv %s1110
          %v1112 = vmul.f32 %v1111, %v1067
          %v1113 = vmul.f32 %v1111, %v1068
          %1116 = vrot.lane.b32.xlu0 %v1112, 126
          %v1117 = vpop.permute.xlu0 %1116
          %1118 = vrot.lane.b32.xlu0 %v1113, 126
          %v1119 = vpop.permute.xlu0 %1118
          %v1122 = vadd.f32 %v1094, %v1117
          %v1123 = vadd.f32 %v1095, %v1119
          %s1124 = sld [smem:[#allocation7 + $0x92]]
          %v1125 = vstv %s1124
          %v1126 = vmul.f32 %v1125, %v1067
          %v1127 = vmul.f32 %v1125, %v1068
          %1130 = vrot.lane.b32.xlu0 %v1126, 126
          %v1131 = vpop.permute.xlu0 %1130
          %1132 = vrot.lane.b32.xlu0 %v1127, 126
          %v1133 = vpop.permute.xlu0 %1132
          %v1136 = vadd.f32 %v1108, %v1131
          %v1137 = vadd.f32 %v1109, %v1133
          %s1138 = sld [smem:[#allocation7 + $0x1a]]
          %v1139 = vstv %s1138
          %v1140 = vmul.f32 %v1139, %v1067
          %v1141 = vmul.f32 %v1139, %v1068
          %v1142 = vmul.f32 %v1139, %v1069
          %v1146 = vrot.slane %v1140, 1
          %v1147 = vrot.slane %v1141, 1
          %v1148 = vsel %vm530, %v1146, %v1147
          %v1149 = vrot.slane %v1142, 1
          %v1150 = vsel %vm530, %v1147, %v1149
          %v1153 = vadd.f32 %v1122, %v1148
          %v1154 = vadd.f32 %v1123, %v1150
          %s1155 = sld [smem:[#allocation7 + $0x9a]]
          %v1156 = vstv %s1155
          %v1157 = vmul.f32 %v1156, %v1067
          %v1158 = vmul.f32 %v1156, %v1068
          %v1159 = vmul.f32 %v1156, %v1069
          %v1163 = vrot.slane %v1157, 1
          %v1164 = vrot.slane %v1158, 1
          %v1165 = vsel %vm530, %v1163, %v1164
          %v1166 = vrot.slane %v1159, 1
          %v1167 = vsel %vm530, %v1164, %v1166
          %v1170 = vadd.f32 %v1136, %v1165
          %v1171 = vadd.f32 %v1137, %v1167
          %s1172 = sld [smem:[#allocation7 + $0x22]]
          %v1173 = vstv %s1172
          %v1174 = vmul.f32 %v1173, %v1067
          %v1175 = vmul.f32 %v1173, %v1068
          %v1176 = vmul.f32 %v1173, %v1069
          %v1180 = vrot.slane %v1174, 1
          %v1181 = vrot.slane %v1175, 1
          %v1182 = vsel %vm530, %v1180, %v1181
          %v1183 = vrot.slane %v1176, 1
          %v1184 = vsel %vm530, %v1181, %v1183
          %1185 = vrot.lane.b32.xlu0 %v1182, 127
          %v1186 = vpop.permute.xlu0 %1185
          %1187 = vrot.lane.b32.xlu0 %v1184, 127
          %v1188 = vpop.permute.xlu0 %1187
          %v1191 = vadd.f32 %v1153, %v1186
          %v1192 = vadd.f32 %v1154, %v1188
          %s1193 = sld [smem:[#allocation7 + $0xa2]]
          %v1194 = vstv %s1193
          %v1195 = vmul.f32 %v1194, %v1067
          %v1196 = vmul.f32 %v1194, %v1068
          %v1197 = vmul.f32 %v1194, %v1069
          %v1201 = vrot.slane %v1195, 1
          %v1202 = vrot.slane %v1196, 1
          %v1203 = vsel %vm530, %v1201, %v1202
          %v1204 = vrot.slane %v1197, 1
          %v1205 = vsel %vm530, %v1202, %v1204
          %1206 = vrot.lane.b32.xlu0 %v1203, 127
          %v1207 = vpop.permute.xlu0 %1206
          %1208 = vrot.lane.b32.xlu0 %v1205, 127
          %v1209 = vpop.permute.xlu0 %1208
          %v1212 = vadd.f32 %v1170, %v1207
          %v1213 = vadd.f32 %v1171, %v1209
          %s1214 = sld [smem:[#allocation7 + $0x2a]]
          %v1215 = vstv %s1214
          %v1216 = vmul.f32 %v1215, %v1067
          %v1217 = vmul.f32 %v1215, %v1068
          %v1218 = vmul.f32 %v1215, %v1069
          %v1222 = vrot.slane %v1216, 1
          %v1223 = vrot.slane %v1217, 1
          %v1224 = vsel %vm530, %v1222, %v1223
          %v1225 = vrot.slane %v1218, 1
          %v1226 = vsel %vm530, %v1223, %v1225
          %1227 = vrot.lane.b32.xlu0 %v1224, 126
          %v1228 = vpop.permute.xlu0 %1227
          %1229 = vrot.lane.b32.xlu0 %v1226, 126
          %v1230 = vpop.permute.xlu0 %1229
          %v1233 = vadd.f32 %v1191, %v1228
          %v1234 = vadd.f32 %v1192, %v1230
          %s1235 = sld [smem:[#allocation7 + $0xaa]]
          %v1236 = vstv %s1235
          %v1237 = vmul.f32 %v1236, %v1067
          %v1238 = vmul.f32 %v1236, %v1068
          %v1239 = vmul.f32 %v1236, %v1069
          %v1243 = vrot.slane %v1237, 1
          %v1244 = vrot.slane %v1238, 1
          %v1245 = vsel %vm530, %v1243, %v1244
          %v1246 = vrot.slane %v1239, 1
          %v1247 = vsel %vm530, %v1244, %v1246
          %1248 = vrot.lane.b32.xlu0 %v1245, 126
          %v1249 = vpop.permute.xlu0 %1248
          %1250 = vrot.lane.b32.xlu0 %v1247, 126
          %v1251 = vpop.permute.xlu0 %1250
          %v1254 = vadd.f32 %v1212, %v1249
          %v1255 = vadd.f32 %v1213, %v1251
          %s1256 = sld [smem:[#allocation7 + $0x32]]
          %v1257 = vstv %s1256
          %v1258 = vmul.f32 %v1257, %v1067
          %v1259 = vmul.f32 %v1257, %v1068
          %v1260 = vmul.f32 %v1257, %v1069
          %v1264 = vrot.slane %v1258, 2
          %v1265 = vrot.slane %v1259, 2
          %v1266 = vsel %vm649, %v1264, %v1265
          %v1267 = vrot.slane %v1260, 2
          %v1268 = vsel %vm649, %v1265, %v1267
          %v1271 = vadd.f32 %v1233, %v1266
          %v1272 = vadd.f32 %v1234, %v1268
          %s1273 = sld [smem:[#allocation7 + $0xb2]]
          %v1274 = vstv %s1273
          %v1275 = vmul.f32 %v1274, %v1067
          %v1276 = vmul.f32 %v1274, %v1068
          %v1277 = vmul.f32 %v1274, %v1069
          %v1281 = vrot.slane %v1275, 2
          %v1282 = vrot.slane %v1276, 2
          %v1283 = vsel %vm649, %v1281, %v1282
          %v1284 = vrot.slane %v1277, 2
          %v1285 = vsel %vm649, %v1282, %v1284
          %v1288 = vadd.f32 %v1254, %v1283
          %v1289 = vadd.f32 %v1255, %v1285
          %s1290 = sld [smem:[#allocation7 + $0x3a]]
          %v1291 = vstv %s1290
          %v1292 = vmul.f32 %v1291, %v1067
          %v1293 = vmul.f32 %v1291, %v1068
          %v1294 = vmul.f32 %v1291, %v1069
          %v1298 = vrot.slane %v1292, 2
          %v1299 = vrot.slane %v1293, 2
          %v1300 = vsel %vm649, %v1298, %v1299
          %v1301 = vrot.slane %v1294, 2
          %v1302 = vsel %vm649, %v1299, %v1301
          %1303 = vrot.lane.b32.xlu0 %v1300, 127
          %v1304 = vpop.permute.xlu0 %1303
          %1305 = vrot.lane.b32.xlu0 %v1302, 127
          %v1306 = vpop.permute.xlu0 %1305
          %v1309 = vadd.f32 %v1271, %v1304
          %v1310 = vadd.f32 %v1272, %v1306
          %s1311 = sld [smem:[#allocation7 + $0xba]]
          %v1312 = vstv %s1311
          %v1313 = vmul.f32 %v1312, %v1067
          %v1314 = vmul.f32 %v1312, %v1068
          %v1315 = vmul.f32 %v1312, %v1069
          %v1319 = vrot.slane %v1313, 2
          %v1320 = vrot.slane %v1314, 2
          %v1321 = vsel %vm649, %v1319, %v1320
          %v1322 = vrot.slane %v1315, 2
          %v1323 = vsel %vm649, %v1320, %v1322
          %1324 = vrot.lane.b32.xlu0 %v1321, 127
          %v1325 = vpop.permute.xlu0 %1324
          %1326 = vrot.lane.b32.xlu0 %v1323, 127
          %v1327 = vpop.permute.xlu0 %1326
          %v1330 = vadd.f32 %v1288, %v1325
          %v1331 = vadd.f32 %v1289, %v1327
          %s1332 = sld [smem:[#allocation7 + $0x42]]
          %v1333 = vstv %s1332
          %v1334 = vmul.f32 %v1333, %v1067
          %v1335 = vmul.f32 %v1333, %v1068
          %v1336 = vmul.f32 %v1333, %v1069
          %v1340 = vrot.slane %v1334, 2
          %v1341 = vrot.slane %v1335, 2
          %v1342 = vsel %vm649, %v1340, %v1341
          %v1343 = vrot.slane %v1336, 2
          %v1344 = vsel %vm649, %v1341, %v1343
          %1345 = vrot.lane.b32.xlu0 %v1342, 126
          %v1346 = vpop.permute.xlu0 %1345
          %1347 = vrot.lane.b32.xlu0 %v1344, 126
          %v1348 = vpop.permute.xlu0 %1347
          %v1351 = vadd.f32 %v1309, %v1346
          %v1352 = vadd.f32 %v1310, %v1348
          %s1353 = sld [smem:[#allocation7 + $0xc2]]
          %v1354 = vstv %s1353
          %v1355 = vmul.f32 %v1354, %v1067
          %v1356 = vmul.f32 %v1354, %v1068
          %v1357 = vmul.f32 %v1354, %v1069
          %v1361 = vrot.slane %v1355, 2
          %v1362 = vrot.slane %v1356, 2
          %v1363 = vsel %vm649, %v1361, %v1362
          %v1364 = vrot.slane %v1357, 2
          %v1365 = vsel %vm649, %v1362, %v1364
          %1366 = vrot.lane.b32.xlu0 %v1363, 126
          %v1367 = vpop.permute.xlu0 %1366
          %1368 = vrot.lane.b32.xlu0 %v1365, 126
          %v1369 = vpop.permute.xlu0 %1368
          %v1372 = vadd.f32 %v1330, %v1367
          %v1373 = vadd.f32 %v1331, %v1369
          %v1374 = vld [vmem:[%s434] sm:$0xff]
          %v1375 = vld [vmem:[%s434 + $0x8] sm:$0xff]
          %v1376 = vld [vmem:[%s434 + $0x10] sm:$0x3]
          %s1377 = sld [smem:[#allocation7 + $0x3]]
          %v1378 = vstv %s1377
          %v1379 = vmul.f32 %v1378, %v1374
          %v1380 = vmul.f32 %v1378, %v1375
          %v1381 = vadd.f32 %v1351, %v1379
          %v1382 = vadd.f32 %v1352, %v1380
          %s1383 = sld [smem:[#allocation7 + $0x83]]
          %v1384 = vstv %s1383
          %v1385 = vmul.f32 %v1384, %v1374
          %v1386 = vmul.f32 %v1384, %v1375
          %v1387 = vadd.f32 %v1372, %v1385
          %v1388 = vadd.f32 %v1373, %v1386
          %s1389 = sld [smem:[#allocation7 + $0xb]]
          %v1390 = vstv %s1389
          %v1391 = vmul.f32 %v1390, %v1374
          %v1392 = vmul.f32 %v1390, %v1375
          %1395 = vrot.lane.b32.xlu0 %v1391, 127
          %v1396 = vpop.permute.xlu0 %1395
          %1397 = vrot.lane.b32.xlu0 %v1392, 127
          %v1398 = vpop.permute.xlu0 %1397
          %v1401 = vadd.f32 %v1381, %v1396
          %v1402 = vadd.f32 %v1382, %v1398
          %s1403 = sld [smem:[#allocation7 + $0x8b]]
          %v1404 = vstv %s1403
          %v1405 = vmul.f32 %v1404, %v1374
          %v1406 = vmul.f32 %v1404, %v1375
          %1409 = vrot.lane.b32.xlu0 %v1405, 127
          %v1410 = vpop.permute.xlu0 %1409
          %1411 = vrot.lane.b32.xlu0 %v1406, 127
          %v1412 = vpop.permute.xlu0 %1411
          %v1415 = vadd.f32 %v1387, %v1410
          %v1416 = vadd.f32 %v1388, %v1412
          %s1417 = sld [smem:[#allocation7 + $0x13]]
          %v1418 = vstv %s1417
          %v1419 = vmul.f32 %v1418, %v1374
          %v1420 = vmul.f32 %v1418, %v1375
          %1423 = vrot.lane.b32.xlu0 %v1419, 126
          %v1424 = vpop.permute.xlu0 %1423
          %1425 = vrot.lane.b32.xlu0 %v1420, 126
          %v1426 = vpop.permute.xlu0 %1425
          %v1429 = vadd.f32 %v1401, %v1424
          %v1430 = vadd.f32 %v1402, %v1426
          %s1431 = sld [smem:[#allocation7 + $0x93]]
          %v1432 = vstv %s1431
          %v1433 = vmul.f32 %v1432, %v1374
          %v1434 = vmul.f32 %v1432, %v1375
          %1437 = vrot.lane.b32.xlu0 %v1433, 126
          %v1438 = vpop.permute.xlu0 %1437
          %1439 = vrot.lane.b32.xlu0 %v1434, 126
          %v1440 = vpop.permute.xlu0 %1439
          %v1443 = vadd.f32 %v1415, %v1438
          %v1444 = vadd.f32 %v1416, %v1440
          %s1445 = sld [smem:[#allocation7 + $0x1b]]
          %v1446 = vstv %s1445
          %v1447 = vmul.f32 %v1446, %v1374
          %v1448 = vmul.f32 %v1446, %v1375
          %v1449 = vmul.f32 %v1446, %v1376
          %v1453 = vrot.slane %v1447, 1
          %v1454 = vrot.slane %v1448, 1
          %v1455 = vsel %vm530, %v1453, %v1454
          %v1456 = vrot.slane %v1449, 1
          %v1457 = vsel %vm530, %v1454, %v1456
          %v1460 = vadd.f32 %v1429, %v1455
          %v1461 = vadd.f32 %v1430, %v1457
          %s1462 = sld [smem:[#allocation7 + $0x9b]]
          %v1463 = vstv %s1462
          %v1464 = vmul.f32 %v1463, %v1374
          %v1465 = vmul.f32 %v1463, %v1375
          %v1466 = vmul.f32 %v1463, %v1376
          %v1470 = vrot.slane %v1464, 1
          %v1471 = vrot.slane %v1465, 1
          %v1472 = vsel %vm530, %v1470, %v1471
          %v1473 = vrot.slane %v1466, 1
          %v1474 = vsel %vm530, %v1471, %v1473
          %v1477 = vadd.f32 %v1443, %v1472
          %v1478 = vadd.f32 %v1444, %v1474
          %s1479 = sld [smem:[#allocation7 + $0x23]]
          %v1480 = vstv %s1479
          %v1481 = vmul.f32 %v1480, %v1374
          %v1482 = vmul.f32 %v1480, %v1375
          %v1483 = vmul.f32 %v1480, %v1376
          %v1487 = vrot.slane %v1481, 1
          %v1488 = vrot.slane %v1482, 1
          %v1489 = vsel %vm530, %v1487, %v1488
          %v1490 = vrot.slane %v1483, 1
          %v1491 = vsel %vm530, %v1488, %v1490
          %1492 = vrot.lane.b32.xlu0 %v1489, 127
          %v1493 = vpop.permute.xlu0 %1492
          %1494 = vrot.lane.b32.xlu0 %v1491, 127
          %v1495 = vpop.permute.xlu0 %1494
          %v1498 = vadd.f32 %v1460, %v1493
          %v1499 = vadd.f32 %v1461, %v1495
          %s1500 = sld [smem:[#allocation7 + $0xa3]]
          %v1501 = vstv %s1500
          %v1502 = vmul.f32 %v1501, %v1374
          %v1503 = vmul.f32 %v1501, %v1375
          %v1504 = vmul.f32 %v1501, %v1376
          %v1508 = vrot.slane %v1502, 1
          %v1509 = vrot.slane %v1503, 1
          %v1510 = vsel %vm530, %v1508, %v1509
          %v1511 = vrot.slane %v1504, 1
          %v1512 = vsel %vm530, %v1509, %v1511
          %1513 = vrot.lane.b32.xlu0 %v1510, 127
          %v1514 = vpop.permute.xlu0 %1513
          %1515 = vrot.lane.b32.xlu0 %v1512, 127
          %v1516 = vpop.permute.xlu0 %1515
          %v1519 = vadd.f32 %v1477, %v1514
          %v1520 = vadd.f32 %v1478, %v1516
          %s1521 = sld [smem:[#allocation7 + $0x2b]]
          %v1522 = vstv %s1521
          %v1523 = vmul.f32 %v1522, %v1374
          %v1524 = vmul.f32 %v1522, %v1375
          %v1525 = vmul.f32 %v1522, %v1376
          %v1529 = vrot.slane %v1523, 1
          %v1530 = vrot.slane %v1524, 1
          %v1531 = vsel %vm530, %v1529, %v1530
          %v1532 = vrot.slane %v1525, 1
          %v1533 = vsel %vm530, %v1530, %v1532
          %1534 = vrot.lane.b32.xlu0 %v1531, 126
          %v1535 = vpop.permute.xlu0 %1534
          %1536 = vrot.lane.b32.xlu0 %v1533, 126
          %v1537 = vpop.permute.xlu0 %1536
          %v1540 = vadd.f32 %v1498, %v1535
          %v1541 = vadd.f32 %v1499, %v1537
          %s1542 = sld [smem:[#allocation7 + $0xab]]
          %v1543 = vstv %s1542
          %v1544 = vmul.f32 %v1543, %v1374
          %v1545 = vmul.f32 %v1543, %v1375
          %v1546 = vmul.f32 %v1543, %v1376
          %v1550 = vrot.slane %v1544, 1
          %v1551 = vrot.slane %v1545, 1
          %v1552 = vsel %vm530, %v1550, %v1551
          %v1553 = vrot.slane %v1546, 1
          %v1554 = vsel %vm530, %v1551, %v1553
          %1555 = vrot.lane.b32.xlu0 %v1552, 126
          %v1556 = vpop.permute.xlu0 %1555
          %1557 = vrot.lane.b32.xlu0 %v1554, 126
          %v1558 = vpop.permute.xlu0 %1557
          %v1561 = vadd.f32 %v1519, %v1556
          %v1562 = vadd.f32 %v1520, %v1558
          %s1563 = sld [smem:[#allocation7 + $0x33]]
          %v1564 = vstv %s1563
          %v1565 = vmul.f32 %v1564, %v1374
          %v1566 = vmul.f32 %v1564, %v1375
          %v1567 = vmul.f32 %v1564, %v1376
          %v1571 = vrot.slane %v1565, 2
          %v1572 = vrot.slane %v1566, 2
          %v1573 = vsel %vm649, %v1571, %v1572
          %v1574 = vrot.slane %v1567, 2
          %v1575 = vsel %vm649, %v1572, %v1574
          %v1578 = vadd.f32 %v1540, %v1573
          %v1579 = vadd.f32 %v1541, %v1575
          %s1580 = sld [smem:[#allocation7 + $0xb3]]
          %v1581 = vstv %s1580
          %v1582 = vmul.f32 %v1581, %v1374
          %v1583 = vmul.f32 %v1581, %v1375
          %v1584 = vmul.f32 %v1581, %v1376
          %v1588 = vrot.slane %v1582, 2
          %v1589 = vrot.slane %v1583, 2
          %v1590 = vsel %vm649, %v1588, %v1589
          %v1591 = vrot.slane %v1584, 2
          %v1592 = vsel %vm649, %v1589, %v1591
          %v1595 = vadd.f32 %v1561, %v1590
          %v1596 = vadd.f32 %v1562, %v1592
          %s1597 = sld [smem:[#allocation7 + $0x3b]]
          %v1598 = vstv %s1597
          %v1599 = vmul.f32 %v1598, %v1374
          %v1600 = vmul.f32 %v1598, %v1375
          %v1601 = vmul.f32 %v1598, %v1376
          %v1605 = vrot.slane %v1599, 2
          %v1606 = vrot.slane %v1600, 2
          %v1607 = vsel %vm649, %v1605, %v1606
          %v1608 = vrot.slane %v1601, 2
          %v1609 = vsel %vm649, %v1606, %v1608
          %1610 = vrot.lane.b32.xlu0 %v1607, 127
          %v1611 = vpop.permute.xlu0 %1610
          %1612 = vrot.lane.b32.xlu0 %v1609, 127
          %v1613 = vpop.permute.xlu0 %1612
          %v1616 = vadd.f32 %v1578, %v1611
          %v1617 = vadd.f32 %v1579, %v1613
          %s1618 = sld [smem:[#allocation7 + $0xbb]]
          %v1619 = vstv %s1618
          %v1620 = vmul.f32 %v1619, %v1374
          %v1621 = vmul.f32 %v1619, %v1375
          %v1622 = vmul.f32 %v1619, %v1376
          %v1626 = vrot.slane %v1620, 2
          %v1627 = vrot.slane %v1621, 2
          %v1628 = vsel %vm649, %v1626, %v1627
          %v1629 = vrot.slane %v1622, 2
          %v1630 = vsel %vm649, %v1627, %v1629
          %1631 = vrot.lane.b32.xlu0 %v1628, 127
          %v1632 = vpop.permute.xlu0 %1631
          %1633 = vrot.lane.b32.xlu0 %v1630, 127
          %v1634 = vpop.permute.xlu0 %1633
          %v1637 = vadd.f32 %v1595, %v1632
          %v1638 = vadd.f32 %v1596, %v1634
          %s1639 = sld [smem:[#allocation7 + $0x43]]
          %v1640 = vstv %s1639
          %v1641 = vmul.f32 %v1640, %v1374
          %v1642 = vmul.f32 %v1640, %v1375
          %v1643 = vmul.f32 %v1640, %v1376
          %v1647 = vrot.slane %v1641, 2
          %v1648 = vrot.slane %v1642, 2
          %v1649 = vsel %vm649, %v1647, %v1648
          %v1650 = vrot.slane %v1643, 2
          %v1651 = vsel %vm649, %v1648, %v1650
          %1652 = vrot.lane.b32.xlu0 %v1649, 126
          %v1653 = vpop.permute.xlu0 %1652
          %1654 = vrot.lane.b32.xlu0 %v1651, 126
          %v1655 = vpop.permute.xlu0 %1654
          %v1658 = vadd.f32 %v1616, %v1653
          %v1659 = vadd.f32 %v1617, %v1655
          %s1660 = sld [smem:[#allocation7 + $0xc3]]
          %v1661 = vstv %s1660
          %v1662 = vmul.f32 %v1661, %v1374
          %v1663 = vmul.f32 %v1661, %v1375
          %v1664 = vmul.f32 %v1661, %v1376
          %v1668 = vrot.slane %v1662, 2
          %v1669 = vrot.slane %v1663, 2
          %v1670 = vsel %vm649, %v1668, %v1669
          %v1671 = vrot.slane %v1664, 2
          %v1672 = vsel %vm649, %v1669, %v1671
          %1673 = vrot.lane.b32.xlu0 %v1670, 126
          %v1674 = vpop.permute.xlu0 %1673
          %1675 = vrot.lane.b32.xlu0 %v1672, 126
          %v1676 = vpop.permute.xlu0 %1675
          %v1679 = vadd.f32 %v1637, %v1674
          %v1680 = vadd.f32 %v1638, %v1676
          %v1681 = vld [vmem:[%s364] sm:$0xff]
          %v1682 = vld [vmem:[%s364 + $0x8] sm:$0xff]
          %v1683 = vld [vmem:[%s364 + $0x10] sm:$0x3]
          %s1684 = sld [smem:[#allocation7 + $0x4]]
          %v1685 = vstv %s1684
          %v1686 = vmul.f32 %v1685, %v1681
          %v1687 = vmul.f32 %v1685, %v1682
          %v1688 = vadd.f32 %v1658, %v1686
          %v1689 = vadd.f32 %v1659, %v1687
          %s1690 = sld [smem:[#allocation7 + $0x84]]
          %v1691 = vstv %s1690
          %v1692 = vmul.f32 %v1691, %v1681
          %v1693 = vmul.f32 %v1691, %v1682
          %v1694 = vadd.f32 %v1679, %v1692
          %v1695 = vadd.f32 %v1680, %v1693
          %s1696 = sld [smem:[#allocation7 + $0xc]]
          %v1697 = vstv %s1696
          %v1698 = vmul.f32 %v1697, %v1681
          %v1699 = vmul.f32 %v1697, %v1682
          %1702 = vrot.lane.b32.xlu0 %v1698, 127
          %v1703 = vpop.permute.xlu0 %1702
          %1704 = vrot.lane.b32.xlu0 %v1699, 127
          %v1705 = vpop.permute.xlu0 %1704
          %v1708 = vadd.f32 %v1688, %v1703
          %v1709 = vadd.f32 %v1689, %v1705
          %s1710 = sld [smem:[#allocation7 + $0x8c]]
          %v1711 = vstv %s1710
          %v1712 = vmul.f32 %v1711, %v1681
          %v1713 = vmul.f32 %v1711, %v1682
          %1716 = vrot.lane.b32.xlu0 %v1712, 127
          %v1717 = vpop.permute.xlu0 %1716
          %1718 = vrot.lane.b32.xlu0 %v1713, 127
          %v1719 = vpop.permute.xlu0 %1718
          %v1722 = vadd.f32 %v1694, %v1717
          %v1723 = vadd.f32 %v1695, %v1719
          %s1724 = sld [smem:[#allocation7 + $0x14]]
          %v1725 = vstv %s1724
          %v1726 = vmul.f32 %v1725, %v1681
          %v1727 = vmul.f32 %v1725, %v1682
          %1730 = vrot.lane.b32.xlu0 %v1726, 126
          %v1731 = vpop.permute.xlu0 %1730
          %1732 = vrot.lane.b32.xlu0 %v1727, 126
          %v1733 = vpop.permute.xlu0 %1732
          %v1736 = vadd.f32 %v1708, %v1731
          %v1737 = vadd.f32 %v1709, %v1733
          %s1738 = sld [smem:[#allocation7 + $0x94]]
          %v1739 = vstv %s1738
          %v1740 = vmul.f32 %v1739, %v1681
          %v1741 = vmul.f32 %v1739, %v1682
          %1744 = vrot.lane.b32.xlu0 %v1740, 126
          %v1745 = vpop.permute.xlu0 %1744
          %1746 = vrot.lane.b32.xlu0 %v1741, 126
          %v1747 = vpop.permute.xlu0 %1746
          %v1750 = vadd.f32 %v1722, %v1745
          %v1751 = vadd.f32 %v1723, %v1747
          %s1752 = sld [smem:[#allocation7 + $0x1c]]
          %v1753 = vstv %s1752
          %v1754 = vmul.f32 %v1753, %v1681
          %v1755 = vmul.f32 %v1753, %v1682
          %v1756 = vmul.f32 %v1753, %v1683
          %v1760 = vrot.slane %v1754, 1
          %v1761 = vrot.slane %v1755, 1
          %v1762 = vsel %vm530, %v1760, %v1761
          %v1763 = vrot.slane %v1756, 1
          %v1764 = vsel %vm530, %v1761, %v1763
          %v1767 = vadd.f32 %v1736, %v1762
          %v1768 = vadd.f32 %v1737, %v1764
          %s1769 = sld [smem:[#allocation7 + $0x9c]]
          %v1770 = vstv %s1769
          %v1771 = vmul.f32 %v1770, %v1681
          %v1772 = vmul.f32 %v1770, %v1682
          %v1773 = vmul.f32 %v1770, %v1683
          %v1777 = vrot.slane %v1771, 1
          %v1778 = vrot.slane %v1772, 1
          %v1779 = vsel %vm530, %v1777, %v1778
          %v1780 = vrot.slane %v1773, 1
          %v1781 = vsel %vm530, %v1778, %v1780
          %v1784 = vadd.f32 %v1750, %v1779
          %v1785 = vadd.f32 %v1751, %v1781
          %s1786 = sld [smem:[#allocation7 + $0x24]]
          %v1787 = vstv %s1786
          %v1788 = vmul.f32 %v1787, %v1681
          %v1789 = vmul.f32 %v1787, %v1682
          %v1790 = vmul.f32 %v1787, %v1683
          %v1794 = vrot.slane %v1788, 1
          %v1795 = vrot.slane %v1789, 1
          %v1796 = vsel %vm530, %v1794, %v1795
          %v1797 = vrot.slane %v1790, 1
          %v1798 = vsel %vm530, %v1795, %v1797
          %1799 = vrot.lane.b32.xlu0 %v1796, 127
          %v1800 = vpop.permute.xlu0 %1799
          %1801 = vrot.lane.b32.xlu0 %v1798, 127
          %v1802 = vpop.permute.xlu0 %1801
          %v1805 = vadd.f32 %v1767, %v1800
          %v1806 = vadd.f32 %v1768, %v1802
          %s1807 = sld [smem:[#allocation7 + $0xa4]]
          %v1808 = vstv %s1807
          %v1809 = vmul.f32 %v1808, %v1681
          %v1810 = vmul.f32 %v1808, %v1682
          %v1811 = vmul.f32 %v1808, %v1683
          %v1815 = vrot.slane %v1809, 1
          %v1816 = vrot.slane %v1810, 1
          %v1817 = vsel %vm530, %v1815, %v1816
          %v1818 = vrot.slane %v1811, 1
          %v1819 = vsel %vm530, %v1816, %v1818
          %1820 = vrot.lane.b32.xlu0 %v1817, 127
          %v1821 = vpop.permute.xlu0 %1820
          %1822 = vrot.lane.b32.xlu0 %v1819, 127
          %v1823 = vpop.permute.xlu0 %1822
          %v1826 = vadd.f32 %v1784, %v1821
          %v1827 = vadd.f32 %v1785, %v1823
          %s1828 = sld [smem:[#allocation7 + $0x2c]]
          %v1829 = vstv %s1828
          %v1830 = vmul.f32 %v1829, %v1681
          %v1831 = vmul.f32 %v1829, %v1682
          %v1832 = vmul.f32 %v1829, %v1683
          %v1836 = vrot.slane %v1830, 1
          %v1837 = vrot.slane %v1831, 1
          %v1838 = vsel %vm530, %v1836, %v1837
          %v1839 = vrot.slane %v1832, 1
          %v1840 = vsel %vm530, %v1837, %v1839
          %1841 = vrot.lane.b32.xlu0 %v1838, 126
          %v1842 = vpop.permute.xlu0 %1841
          %1843 = vrot.lane.b32.xlu0 %v1840, 126
          %v1844 = vpop.permute.xlu0 %1843
          %v1847 = vadd.f32 %v1805, %v1842
          %v1848 = vadd.f32 %v1806, %v1844
          %s1849 = sld [smem:[#allocation7 + $0xac]]
          %v1850 = vstv %s1849
          %v1851 = vmul.f32 %v1850, %v1681
          %v1852 = vmul.f32 %v1850, %v1682
          %v1853 = vmul.f32 %v1850, %v1683
          %v1857 = vrot.slane %v1851, 1
          %v1858 = vrot.slane %v1852, 1
          %v1859 = vsel %vm530, %v1857, %v1858
          %v1860 = vrot.slane %v1853, 1
          %v1861 = vsel %vm530, %v1858, %v1860
          %1862 = vrot.lane.b32.xlu0 %v1859, 126
          %v1863 = vpop.permute.xlu0 %1862
          %1864 = vrot.lane.b32.xlu0 %v1861, 126
          %v1865 = vpop.permute.xlu0 %1864
          %v1868 = vadd.f32 %v1826, %v1863
          %v1869 = vadd.f32 %v1827, %v1865
          %s1870 = sld [smem:[#allocation7 + $0x34]]
          %v1871 = vstv %s1870
          %v1872 = vmul.f32 %v1871, %v1681
          %v1873 = vmul.f32 %v1871, %v1682
          %v1874 = vmul.f32 %v1871, %v1683
          %v1878 = vrot.slane %v1872, 2
          %v1879 = vrot.slane %v1873, 2
          %v1880 = vsel %vm649, %v1878, %v1879
          %v1881 = vrot.slane %v1874, 2
          %v1882 = vsel %vm649, %v1879, %v1881
          %v1885 = vadd.f32 %v1847, %v1880
          %v1886 = vadd.f32 %v1848, %v1882
          %s1887 = sld [smem:[#allocation7 + $0xb4]]
          %v1888 = vstv %s1887
          %v1889 = vmul.f32 %v1888, %v1681
          %v1890 = vmul.f32 %v1888, %v1682
          %v1891 = vmul.f32 %v1888, %v1683
          %v1895 = vrot.slane %v1889, 2
          %v1896 = vrot.slane %v1890, 2
          %v1897 = vsel %vm649, %v1895, %v1896
          %v1898 = vrot.slane %v1891, 2
          %v1899 = vsel %vm649, %v1896, %v1898
          %v1902 = vadd.f32 %v1868, %v1897
          %v1903 = vadd.f32 %v1869, %v1899
          %s1904 = sld [smem:[#allocation7 + $0x3c]]
          %v1905 = vstv %s1904
          %v1906 = vmul.f32 %v1905, %v1681
          %v1907 = vmul.f32 %v1905, %v1682
          %v1908 = vmul.f32 %v1905, %v1683
          %v1912 = vrot.slane %v1906, 2
          %v1913 = vrot.slane %v1907, 2
          %v1914 = vsel %vm649, %v1912, %v1913
          %v1915 = vrot.slane %v1908, 2
          %v1916 = vsel %vm649, %v1913, %v1915
          %1917 = vrot.lane.b32.xlu0 %v1914, 127
          %v1918 = vpop.permute.xlu0 %1917
          %1919 = vrot.lane.b32.xlu0 %v1916, 127
          %v1920 = vpop.permute.xlu0 %1919
          %v1923 = vadd.f32 %v1885, %v1918
          %v1924 = vadd.f32 %v1886, %v1920
          %s1925 = sld [smem:[#allocation7 + $0xbc]]
          %v1926 = vstv %s1925
          %v1927 = vmul.f32 %v1926, %v1681
          %v1928 = vmul.f32 %v1926, %v1682
          %v1929 = vmul.f32 %v1926, %v1683
          %v1933 = vrot.slane %v1927, 2
          %v1934 = vrot.slane %v1928, 2
          %v1935 = vsel %vm649, %v1933, %v1934
          %v1936 = vrot.slane %v1929, 2
          %v1937 = vsel %vm649, %v1934, %v1936
          %1938 = vrot.lane.b32.xlu0 %v1935, 127
          %v1939 = vpop.permute.xlu0 %1938
          %1940 = vrot.lane.b32.xlu0 %v1937, 127
          %v1941 = vpop.permute.xlu0 %1940
          %v1944 = vadd.f32 %v1902, %v1939
          %v1945 = vadd.f32 %v1903, %v1941
          %s1946 = sld [smem:[#allocation7 + $0x44]]
          %v1947 = vstv %s1946
          %v1948 = vmul.f32 %v1947, %v1681
          %v1949 = vmul.f32 %v1947, %v1682
          %v1950 = vmul.f32 %v1947, %v1683
          %v1954 = vrot.slane %v1948, 2
          %v1955 = vrot.slane %v1949, 2
          %v1956 = vsel %vm649, %v1954, %v1955
          %v1957 = vrot.slane %v1950, 2
          %v1958 = vsel %vm649, %v1955, %v1957
          %1959 = vrot.lane.b32.xlu0 %v1956, 126
          %v1960 = vpop.permute.xlu0 %1959
          %1961 = vrot.lane.b32.xlu0 %v1958, 126
          %v1962 = vpop.permute.xlu0 %1961
          %v1965 = vadd.f32 %v1923, %v1960
          %v1966 = vadd.f32 %v1924, %v1962
          %s1967 = sld [smem:[#allocation7 + $0xc4]]
          %v1968 = vstv %s1967
          %v1969 = vmul.f32 %v1968, %v1681
          %v1970 = vmul.f32 %v1968, %v1682
          %v1971 = vmul.f32 %v1968, %v1683
          %v1975 = vrot.slane %v1969, 2
          %v1976 = vrot.slane %v1970, 2
          %v1977 = vsel %vm649, %v1975, %v1976
          %v1978 = vrot.slane %v1971, 2
          %v1979 = vsel %vm649, %v1976, %v1978
          %1980 = vrot.lane.b32.xlu0 %v1977, 126
          %v1981 = vpop.permute.xlu0 %1980
          %1982 = vrot.lane.b32.xlu0 %v1979, 126
          %v1983 = vpop.permute.xlu0 %1982
          %v1986 = vadd.f32 %v1944, %v1981
          %v1987 = vadd.f32 %v1945, %v1983
          %v1988 = vld [vmem:[%s392] sm:$0xff]
          %v1989 = vld [vmem:[%s392 + $0x8] sm:$0xff]
          %v1990 = vld [vmem:[%s392 + $0x10] sm:$0x3]
          %s1991 = sld [smem:[#allocation7 + $0x5]]
          %v1992 = vstv %s1991
          %v1993 = vmul.f32 %v1992, %v1988
          %v1994 = vmul.f32 %v1992, %v1989
          %v1995 = vadd.f32 %v1965, %v1993
          %v1996 = vadd.f32 %v1966, %v1994
          %s1997 = sld [smem:[#allocation7 + $0x85]]
          %v1998 = vstv %s1997
          %v1999 = vmul.f32 %v1998, %v1988
          %v2000 = vmul.f32 %v1998, %v1989
          %v2001 = vadd.f32 %v1986, %v1999
          %v2002 = vadd.f32 %v1987, %v2000
          %s2003 = sld [smem:[#allocation7 + $0xd]]
          %v2004 = vstv %s2003
          %v2005 = vmul.f32 %v2004, %v1988
          %v2006 = vmul.f32 %v2004, %v1989
          %2009 = vrot.lane.b32.xlu0 %v2005, 127
          %v2010 = vpop.permute.xlu0 %2009
          %2011 = vrot.lane.b32.xlu0 %v2006, 127
          %v2012 = vpop.permute.xlu0 %2011
          %v2015 = vadd.f32 %v1995, %v2010
          %v2016 = vadd.f32 %v1996, %v2012
          %s2017 = sld [smem:[#allocation7 + $0x8d]]
          %v2018 = vstv %s2017
          %v2019 = vmul.f32 %v2018, %v1988
          %v2020 = vmul.f32 %v2018, %v1989
          %2023 = vrot.lane.b32.xlu0 %v2019, 127
          %v2024 = vpop.permute.xlu0 %2023
          %2025 = vrot.lane.b32.xlu0 %v2020, 127
          %v2026 = vpop.permute.xlu0 %2025
          %v2029 = vadd.f32 %v2001, %v2024
          %v2030 = vadd.f32 %v2002, %v2026
          %s2031 = sld [smem:[#allocation7 + $0x15]]
          %v2032 = vstv %s2031
          %v2033 = vmul.f32 %v2032, %v1988
          %v2034 = vmul.f32 %v2032, %v1989
          %2037 = vrot.lane.b32.xlu0 %v2033, 126
          %v2038 = vpop.permute.xlu0 %2037
          %2039 = vrot.lane.b32.xlu0 %v2034, 126
          %v2040 = vpop.permute.xlu0 %2039
          %v2043 = vadd.f32 %v2015, %v2038
          %v2044 = vadd.f32 %v2016, %v2040
          %s2045 = sld [smem:[#allocation7 + $0x95]]
          %v2046 = vstv %s2045
          %v2047 = vmul.f32 %v2046, %v1988
          %v2048 = vmul.f32 %v2046, %v1989
          %2051 = vrot.lane.b32.xlu0 %v2047, 126
          %v2052 = vpop.permute.xlu0 %2051
          %2053 = vrot.lane.b32.xlu0 %v2048, 126
          %v2054 = vpop.permute.xlu0 %2053
          %v2057 = vadd.f32 %v2029, %v2052
          %v2058 = vadd.f32 %v2030, %v2054
          %s2059 = sld [smem:[#allocation7 + $0x1d]]
          %v2060 = vstv %s2059
          %v2061 = vmul.f32 %v2060, %v1988
          %v2062 = vmul.f32 %v2060, %v1989
          %v2063 = vmul.f32 %v2060, %v1990
          %v2067 = vrot.slane %v2061, 1
          %v2068 = vrot.slane %v2062, 1
          %v2069 = vsel %vm530, %v2067, %v2068
          %v2070 = vrot.slane %v2063, 1
          %v2071 = vsel %vm530, %v2068, %v2070
          %v2074 = vadd.f32 %v2043, %v2069
          %v2075 = vadd.f32 %v2044, %v2071
          %s2076 = sld [smem:[#allocation7 + $0x9d]]
          %v2077 = vstv %s2076
          %v2078 = vmul.f32 %v2077, %v1988
          %v2079 = vmul.f32 %v2077, %v1989
          %v2080 = vmul.f32 %v2077, %v1990
          %v2084 = vrot.slane %v2078, 1
          %v2085 = vrot.slane %v2079, 1
          %v2086 = vsel %vm530, %v2084, %v2085
          %v2087 = vrot.slane %v2080, 1
          %v2088 = vsel %vm530, %v2085, %v2087
          %v2091 = vadd.f32 %v2057, %v2086
          %v2092 = vadd.f32 %v2058, %v2088
          %s2093 = sld [smem:[#allocation7 + $0x25]]
          %v2094 = vstv %s2093
          %v2095 = vmul.f32 %v2094, %v1988
          %v2096 = vmul.f32 %v2094, %v1989
          %v2097 = vmul.f32 %v2094, %v1990
          %v2101 = vrot.slane %v2095, 1
          %v2102 = vrot.slane %v2096, 1
          %v2103 = vsel %vm530, %v2101, %v2102
          %v2104 = vrot.slane %v2097, 1
          %v2105 = vsel %vm530, %v2102, %v2104
          %2106 = vrot.lane.b32.xlu0 %v2103, 127
          %v2107 = vpop.permute.xlu0 %2106
          %2108 = vrot.lane.b32.xlu0 %v2105, 127
          %v2109 = vpop.permute.xlu0 %2108
          %v2112 = vadd.f32 %v2074, %v2107
          %v2113 = vadd.f32 %v2075, %v2109
          %s2114 = sld [smem:[#allocation7 + $0xa5]]
          %v2115 = vstv %s2114
          %v2116 = vmul.f32 %v2115, %v1988
          %v2117 = vmul.f32 %v2115, %v1989
          %v2118 = vmul.f32 %v2115, %v1990
          %v2122 = vrot.slane %v2116, 1
          %v2123 = vrot.slane %v2117, 1
          %v2124 = vsel %vm530, %v2122, %v2123
          %v2125 = vrot.slane %v2118, 1
          %v2126 = vsel %vm530, %v2123, %v2125
          %2127 = vrot.lane.b32.xlu0 %v2124, 127
          %v2128 = vpop.permute.xlu0 %2127
          %2129 = vrot.lane.b32.xlu0 %v2126, 127
          %v2130 = vpop.permute.xlu0 %2129
          %v2133 = vadd.f32 %v2091, %v2128
          %v2134 = vadd.f32 %v2092, %v2130
          %s2135 = sld [smem:[#allocation7 + $0x2d]]
          %v2136 = vstv %s2135
          %v2137 = vmul.f32 %v2136, %v1988
          %v2138 = vmul.f32 %v2136, %v1989
          %v2139 = vmul.f32 %v2136, %v1990
          %v2143 = vrot.slane %v2137, 1
          %v2144 = vrot.slane %v2138, 1
          %v2145 = vsel %vm530, %v2143, %v2144
          %v2146 = vrot.slane %v2139, 1
          %v2147 = vsel %vm530, %v2144, %v2146
          %2148 = vrot.lane.b32.xlu0 %v2145, 126
          %v2149 = vpop.permute.xlu0 %2148
          %2150 = vrot.lane.b32.xlu0 %v2147, 126
          %v2151 = vpop.permute.xlu0 %2150
          %v2154 = vadd.f32 %v2112, %v2149
          %v2155 = vadd.f32 %v2113, %v2151
          %s2156 = sld [smem:[#allocation7 + $0xad]]
          %v2157 = vstv %s2156
          %v2158 = vmul.f32 %v2157, %v1988
          %v2159 = vmul.f32 %v2157, %v1989
          %v2160 = vmul.f32 %v2157, %v1990
          %v2164 = vrot.slane %v2158, 1
          %v2165 = vrot.slane %v2159, 1
          %v2166 = vsel %vm530, %v2164, %v2165
          %v2167 = vrot.slane %v2160, 1
          %v2168 = vsel %vm530, %v2165, %v2167
          %2169 = vrot.lane.b32.xlu0 %v2166, 126
          %v2170 = vpop.permute.xlu0 %2169
          %2171 = vrot.lane.b32.xlu0 %v2168, 126
          %v2172 = vpop.permute.xlu0 %2171
          %v2175 = vadd.f32 %v2133, %v2170
          %v2176 = vadd.f32 %v2134, %v2172
          %s2177 = sld [smem:[#allocation7 + $0x35]]
          %v2178 = vstv %s2177
          %v2179 = vmul.f32 %v2178, %v1988
          %v2180 = vmul.f32 %v2178, %v1989
          %v2181 = vmul.f32 %v2178, %v1990
          %v2185 = vrot.slane %v2179, 2
          %v2186 = vrot.slane %v2180, 2
          %v2187 = vsel %vm649, %v2185, %v2186
          %v2188 = vrot.slane %v2181, 2
          %v2189 = vsel %vm649, %v2186, %v2188
          %v2192 = vadd.f32 %v2154, %v2187
          %v2193 = vadd.f32 %v2155, %v2189
          %s2194 = sld [smem:[#allocation7 + $0xb5]]
          %v2195 = vstv %s2194
          %v2196 = vmul.f32 %v2195, %v1988
          %v2197 = vmul.f32 %v2195, %v1989
          %v2198 = vmul.f32 %v2195, %v1990
          %v2202 = vrot.slane %v2196, 2
          %v2203 = vrot.slane %v2197, 2
          %v2204 = vsel %vm649, %v2202, %v2203
          %v2205 = vrot.slane %v2198, 2
          %v2206 = vsel %vm649, %v2203, %v2205
          %v2209 = vadd.f32 %v2175, %v2204
          %v2210 = vadd.f32 %v2176, %v2206
          %s2211 = sld [smem:[#allocation7 + $0x3d]]
          %v2212 = vstv %s2211
          %v2213 = vmul.f32 %v2212, %v1988
          %v2214 = vmul.f32 %v2212, %v1989
          %v2215 = vmul.f32 %v2212, %v1990
          %v2219 = vrot.slane %v2213, 2
          %v2220 = vrot.slane %v2214, 2
          %v2221 = vsel %vm649, %v2219, %v2220
          %v2222 = vrot.slane %v2215, 2
          %v2223 = vsel %vm649, %v2220, %v2222
          %2224 = vrot.lane.b32.xlu0 %v2221, 127
          %v2225 = vpop.permute.xlu0 %2224
          %2226 = vrot.lane.b32.xlu0 %v2223, 127
          %v2227 = vpop.permute.xlu0 %2226
          %v2230 = vadd.f32 %v2192, %v2225
          %v2231 = vadd.f32 %v2193, %v2227
          %s2232 = sld [smem:[#allocation7 + $0xbd]]
          %v2233 = vstv %s2232
          %v2234 = vmul.f32 %v2233, %v1988
          %v2235 = vmul.f32 %v2233, %v1989
          %v2236 = vmul.f32 %v2233, %v1990
          %v2240 = vrot.slane %v2234, 2
          %v2241 = vrot.slane %v2235, 2
          %v2242 = vsel %vm649, %v2240, %v2241
          %v2243 = vrot.slane %v2236, 2
          %v2244 = vsel %vm649, %v2241, %v2243
          %2245 = vrot.lane.b32.xlu0 %v2242, 127
          %v2246 = vpop.permute.xlu0 %2245
          %2247 = vrot.lane.b32.xlu0 %v2244, 127
          %v2248 = vpop.permute.xlu0 %2247
          %v2251 = vadd.f32 %v2209, %v2246
          %v2252 = vadd.f32 %v2210, %v2248
          %s2253 = sld [smem:[#allocation7 + $0x45]]
          %v2254 = vstv %s2253
          %v2255 = vmul.f32 %v2254, %v1988
          %v2256 = vmul.f32 %v2254, %v1989
          %v2257 = vmul.f32 %v2254, %v1990
          %v2261 = vrot.slane %v2255, 2
          %v2262 = vrot.slane %v2256, 2
          %v2263 = vsel %vm649, %v2261, %v2262
          %v2264 = vrot.slane %v2257, 2
          %v2265 = vsel %vm649, %v2262, %v2264
          %2266 = vrot.lane.b32.xlu0 %v2263, 126
          %v2267 = vpop.permute.xlu0 %2266
          %2268 = vrot.lane.b32.xlu0 %v2265, 126
          %v2269 = vpop.permute.xlu0 %2268
          %v2272 = vadd.f32 %v2230, %v2267
          %v2273 = vadd.f32 %v2231, %v2269
          %s2274 = sld [smem:[#allocation7 + $0xc5]]
          %v2275 = vstv %s2274
          %v2276 = vmul.f32 %v2275, %v1988
          %v2277 = vmul.f32 %v2275, %v1989
          %v2278 = vmul.f32 %v2275, %v1990
          %v2282 = vrot.slane %v2276, 2
          %v2283 = vrot.slane %v2277, 2
          %v2284 = vsel %vm649, %v2282, %v2283
          %v2285 = vrot.slane %v2278, 2
          %v2286 = vsel %vm649, %v2283, %v2285
          %2287 = vrot.lane.b32.xlu0 %v2284, 126
          %v2288 = vpop.permute.xlu0 %2287
          %2289 = vrot.lane.b32.xlu0 %v2286, 126
          %v2290 = vpop.permute.xlu0 %2289
          %v2293 = vadd.f32 %v2251, %v2288
          %v2294 = vadd.f32 %v2252, %v2290
          %v2295 = vld [vmem:[%s420] sm:$0xff]
          %v2296 = vld [vmem:[%s420 + $0x8] sm:$0xff]
          %v2297 = vld [vmem:[%s420 + $0x10] sm:$0x3]
          %s2298 = sld [smem:[#allocation7 + $0x6]]
          %v2299 = vstv %s2298
          %v2300 = vmul.f32 %v2299, %v2295
          %v2301 = vmul.f32 %v2299, %v2296
          %v2302 = vadd.f32 %v2272, %v2300
          %v2303 = vadd.f32 %v2273, %v2301
          %s2304 = sld [smem:[#allocation7 + $0x86]]
          %v2305 = vstv %s2304
          %v2306 = vmul.f32 %v2305, %v2295
          %v2307 = vmul.f32 %v2305, %v2296
          %v2308 = vadd.f32 %v2293, %v2306
          %v2309 = vadd.f32 %v2294, %v2307
          %s2310 = sld [smem:[#allocation7 + $0xe]]
          %v2311 = vstv %s2310
          %v2312 = vmul.f32 %v2311, %v2295
          %v2313 = vmul.f32 %v2311, %v2296
          %2316 = vrot.lane.b32.xlu0 %v2312, 127
          %v2317 = vpop.permute.xlu0 %2316
          %2318 = vrot.lane.b32.xlu0 %v2313, 127
          %v2319 = vpop.permute.xlu0 %2318
          %v2322 = vadd.f32 %v2302, %v2317
          %v2323 = vadd.f32 %v2303, %v2319
          %s2324 = sld [smem:[#allocation7 + $0x8e]]
          %v2325 = vstv %s2324
          %v2326 = vmul.f32 %v2325, %v2295
          %v2327 = vmul.f32 %v2325, %v2296
          %2330 = vrot.lane.b32.xlu0 %v2326, 127
          %v2331 = vpop.permute.xlu0 %2330
          %2332 = vrot.lane.b32.xlu0 %v2327, 127
          %v2333 = vpop.permute.xlu0 %2332
          %v2336 = vadd.f32 %v2308, %v2331
          %v2337 = vadd.f32 %v2309, %v2333
          %s2338 = sld [smem:[#allocation7 + $0x16]]
          %v2339 = vstv %s2338
          %v2340 = vmul.f32 %v2339, %v2295
          %v2341 = vmul.f32 %v2339, %v2296
          %2344 = vrot.lane.b32.xlu0 %v2340, 126
          %v2345 = vpop.permute.xlu0 %2344
          %2346 = vrot.lane.b32.xlu0 %v2341, 126
          %v2347 = vpop.permute.xlu0 %2346
          %v2350 = vadd.f32 %v2322, %v2345
          %v2351 = vadd.f32 %v2323, %v2347
          %s2352 = sld [smem:[#allocation7 + $0x96]]
          %v2353 = vstv %s2352
          %v2354 = vmul.f32 %v2353, %v2295
          %v2355 = vmul.f32 %v2353, %v2296
          %2358 = vrot.lane.b32.xlu0 %v2354, 126
          %v2359 = vpop.permute.xlu0 %2358
          %2360 = vrot.lane.b32.xlu0 %v2355, 126
          %v2361 = vpop.permute.xlu0 %2360
          %v2364 = vadd.f32 %v2336, %v2359
          %v2365 = vadd.f32 %v2337, %v2361
          %s2366 = sld [smem:[#allocation7 + $0x1e]]
          %v2367 = vstv %s2366
          %v2368 = vmul.f32 %v2367, %v2295
          %v2369 = vmul.f32 %v2367, %v2296
          %v2370 = vmul.f32 %v2367, %v2297
          %v2374 = vrot.slane %v2368, 1
          %v2375 = vrot.slane %v2369, 1
          %v2376 = vsel %vm530, %v2374, %v2375
          %v2377 = vrot.slane %v2370, 1
          %v2378 = vsel %vm530, %v2375, %v2377
          %v2381 = vadd.f32 %v2350, %v2376
          %v2382 = vadd.f32 %v2351, %v2378
          %s2383 = sld [smem:[#allocation7 + $0x9e]]
          %v2384 = vstv %s2383
          %v2385 = vmul.f32 %v2384, %v2295
          %v2386 = vmul.f32 %v2384, %v2296
          %v2387 = vmul.f32 %v2384, %v2297
          %v2391 = vrot.slane %v2385, 1
          %v2392 = vrot.slane %v2386, 1
          %v2393 = vsel %vm530, %v2391, %v2392
          %v2394 = vrot.slane %v2387, 1
          %v2395 = vsel %vm530, %v2392, %v2394
          %v2398 = vadd.f32 %v2364, %v2393
          %v2399 = vadd.f32 %v2365, %v2395
          %s2400 = sld [smem:[#allocation7 + $0x26]]
          %v2401 = vstv %s2400
          %v2402 = vmul.f32 %v2401, %v2295
          %v2403 = vmul.f32 %v2401, %v2296
          %v2404 = vmul.f32 %v2401, %v2297
          %v2408 = vrot.slane %v2402, 1
          %v2409 = vrot.slane %v2403, 1
          %v2410 = vsel %vm530, %v2408, %v2409
          %v2411 = vrot.slane %v2404, 1
          %v2412 = vsel %vm530, %v2409, %v2411
          %2413 = vrot.lane.b32.xlu0 %v2410, 127
          %v2414 = vpop.permute.xlu0 %2413
          %2415 = vrot.lane.b32.xlu0 %v2412, 127
          %v2416 = vpop.permute.xlu0 %2415
          %v2419 = vadd.f32 %v2381, %v2414
          %v2420 = vadd.f32 %v2382, %v2416
          %s2421 = sld [smem:[#allocation7 + $0xa6]]
          %v2422 = vstv %s2421
          %v2423 = vmul.f32 %v2422, %v2295
          %v2424 = vmul.f32 %v2422, %v2296
          %v2425 = vmul.f32 %v2422, %v2297
          %v2429 = vrot.slane %v2423, 1
          %v2430 = vrot.slane %v2424, 1
          %v2431 = vsel %vm530, %v2429, %v2430
          %v2432 = vrot.slane %v2425, 1
          %v2433 = vsel %vm530, %v2430, %v2432
          %2434 = vrot.lane.b32.xlu0 %v2431, 127
          %v2435 = vpop.permute.xlu0 %2434
          %2436 = vrot.lane.b32.xlu0 %v2433, 127
          %v2437 = vpop.permute.xlu0 %2436
          %v2440 = vadd.f32 %v2398, %v2435
          %v2441 = vadd.f32 %v2399, %v2437
          %s2442 = sld [smem:[#allocation7 + $0x2e]]
          %v2443 = vstv %s2442
          %v2444 = vmul.f32 %v2443, %v2295
          %v2445 = vmul.f32 %v2443, %v2296
          %v2446 = vmul.f32 %v2443, %v2297
          %v2450 = vrot.slane %v2444, 1
          %v2451 = vrot.slane %v2445, 1
          %v2452 = vsel %vm530, %v2450, %v2451
          %v2453 = vrot.slane %v2446, 1
          %v2454 = vsel %vm530, %v2451, %v2453
          %2455 = vrot.lane.b32.xlu0 %v2452, 126
          %v2456 = vpop.permute.xlu0 %2455
          %2457 = vrot.lane.b32.xlu0 %v2454, 126
          %v2458 = vpop.permute.xlu0 %2457
          %v2461 = vadd.f32 %v2419, %v2456
          %v2462 = vadd.f32 %v2420, %v2458
          %s2463 = sld [smem:[#allocation7 + $0xae]]
          %v2464 = vstv %s2463
          %v2465 = vmul.f32 %v2464, %v2295
          %v2466 = vmul.f32 %v2464, %v2296
          %v2467 = vmul.f32 %v2464, %v2297
          %v2471 = vrot.slane %v2465, 1
          %v2472 = vrot.slane %v2466, 1
          %v2473 = vsel %vm530, %v2471, %v2472
          %v2474 = vrot.slane %v2467, 1
          %v2475 = vsel %vm530, %v2472, %v2474
          %2476 = vrot.lane.b32.xlu0 %v2473, 126
          %v2477 = vpop.permute.xlu0 %2476
          %2478 = vrot.lane.b32.xlu0 %v2475, 126
          %v2479 = vpop.permute.xlu0 %2478
          %v2482 = vadd.f32 %v2440, %v2477
          %v2483 = vadd.f32 %v2441, %v2479
          %s2484 = sld [smem:[#allocation7 + $0x36]]
          %v2485 = vstv %s2484
          %v2486 = vmul.f32 %v2485, %v2295
          %v2487 = vmul.f32 %v2485, %v2296
          %v2488 = vmul.f32 %v2485, %v2297
          %v2492 = vrot.slane %v2486, 2
          %v2493 = vrot.slane %v2487, 2
          %v2494 = vsel %vm649, %v2492, %v2493
          %v2495 = vrot.slane %v2488, 2
          %v2496 = vsel %vm649, %v2493, %v2495
          %v2499 = vadd.f32 %v2461, %v2494
          %v2500 = vadd.f32 %v2462, %v2496
          %s2501 = sld [smem:[#allocation7 + $0xb6]]
          %v2502 = vstv %s2501
          %v2503 = vmul.f32 %v2502, %v2295
          %v2504 = vmul.f32 %v2502, %v2296
          %v2505 = vmul.f32 %v2502, %v2297
          %v2509 = vrot.slane %v2503, 2
          %v2510 = vrot.slane %v2504, 2
          %v2511 = vsel %vm649, %v2509, %v2510
          %v2512 = vrot.slane %v2505, 2
          %v2513 = vsel %vm649, %v2510, %v2512
          %v2516 = vadd.f32 %v2482, %v2511
          %v2517 = vadd.f32 %v2483, %v2513
          %s2518 = sld [smem:[#allocation7 + $0x3e]]
          %v2519 = vstv %s2518
          %v2520 = vmul.f32 %v2519, %v2295
          %v2521 = vmul.f32 %v2519, %v2296
          %v2522 = vmul.f32 %v2519, %v2297
          %v2526 = vrot.slane %v2520, 2
          %v2527 = vrot.slane %v2521, 2
          %v2528 = vsel %vm649, %v2526, %v2527
          %v2529 = vrot.slane %v2522, 2
          %v2530 = vsel %vm649, %v2527, %v2529
          %2531 = vrot.lane.b32.xlu0 %v2528, 127
          %v2532 = vpop.permute.xlu0 %2531
          %2533 = vrot.lane.b32.xlu0 %v2530, 127
          %v2534 = vpop.permute.xlu0 %2533
          %v2537 = vadd.f32 %v2499, %v2532
          %v2538 = vadd.f32 %v2500, %v2534
          %s2539 = sld [smem:[#allocation7 + $0xbe]]
          %v2540 = vstv %s2539
          %v2541 = vmul.f32 %v2540, %v2295
          %v2542 = vmul.f32 %v2540, %v2296
          %v2543 = vmul.f32 %v2540, %v2297
          %v2547 = vrot.slane %v2541, 2
          %v2548 = vrot.slane %v2542, 2
          %v2549 = vsel %vm649, %v2547, %v2548
          %v2550 = vrot.slane %v2543, 2
          %v2551 = vsel %vm649, %v2548, %v2550
          %2552 = vrot.lane.b32.xlu0 %v2549, 127
          %v2553 = vpop.permute.xlu0 %2552
          %2554 = vrot.lane.b32.xlu0 %v2551, 127
          %v2555 = vpop.permute.xlu0 %2554
          %v2558 = vadd.f32 %v2516, %v2553
          %v2559 = vadd.f32 %v2517, %v2555
          %s2560 = sld [smem:[#allocation7 + $0x46]]
          %v2561 = vstv %s2560
          %v2562 = vmul.f32 %v2561, %v2295
          %v2563 = vmul.f32 %v2561, %v2296
          %v2564 = vmul.f32 %v2561, %v2297
          %v2568 = vrot.slane %v2562, 2
          %v2569 = vrot.slane %v2563, 2
          %v2570 = vsel %vm649, %v2568, %v2569
          %v2571 = vrot.slane %v2564, 2
          %v2572 = vsel %vm649, %v2569, %v2571
          %2573 = vrot.lane.b32.xlu0 %v2570, 126
          %v2574 = vpop.permute.xlu0 %2573
          %2575 = vrot.lane.b32.xlu0 %v2572, 126
          %v2576 = vpop.permute.xlu0 %2575
          %v2579 = vadd.f32 %v2537, %v2574
          %v2580 = vadd.f32 %v2538, %v2576
          %s2581 = sld [smem:[#allocation7 + $0xc6]]
          %v2582 = vstv %s2581
          %v2583 = vmul.f32 %v2582, %v2295
          %v2584 = vmul.f32 %v2582, %v2296
          %v2585 = vmul.f32 %v2582, %v2297
          %v2589 = vrot.slane %v2583, 2
          %v2590 = vrot.slane %v2584, 2
          %v2591 = vsel %vm649, %v2589, %v2590
          %v2592 = vrot.slane %v2585, 2
          %v2593 = vsel %vm649, %v2590, %v2592
          %2594 = vrot.lane.b32.xlu0 %v2591, 126
          %v2595 = vpop.permute.xlu0 %2594
          %2596 = vrot.lane.b32.xlu0 %v2593, 126
          %v2597 = vpop.permute.xlu0 %2596
          %v2600 = vadd.f32 %v2558, %v2595
          %v2601 = vadd.f32 %v2559, %v2597
          %v2602 = vld [vmem:[%s448] sm:$0xff]
          %v2603 = vld [vmem:[%s448 + $0x8] sm:$0xff]
          %v2604 = vld [vmem:[%s448 + $0x10] sm:$0x3]
          %s2605 = sld [smem:[#allocation7 + $0x7]]
          %v2606 = vstv %s2605
          %v2607 = vmul.f32 %v2606, %v2602
          %v2608 = vmul.f32 %v2606, %v2603
          %v2609 = vadd.f32 %v2579, %v2607
          %v2610 = vadd.f32 %v2580, %v2608
          %s2611 = sld [smem:[#allocation7 + $0x87]]
          %v2612 = vstv %s2611
          %v2613 = vmul.f32 %v2612, %v2602
          %v2614 = vmul.f32 %v2612, %v2603
          %v2615 = vadd.f32 %v2600, %v2613
          %v2616 = vadd.f32 %v2601, %v2614
          %s2617 = sld [smem:[#allocation7 + $0xf]]
          %v2618 = vstv %s2617
          %v2619 = vmul.f32 %v2618, %v2602
          %v2620 = vmul.f32 %v2618, %v2603
          %2623 = vrot.lane.b32.xlu0 %v2619, 127
          %v2624 = vpop.permute.xlu0 %2623
          %2625 = vrot.lane.b32.xlu0 %v2620, 127
          %v2626 = vpop.permute.xlu0 %2625
          %v2629 = vadd.f32 %v2609, %v2624
          %v2630 = vadd.f32 %v2610, %v2626
          %s2631 = sld [smem:[#allocation7 + $0x8f]]
          %v2632 = vstv %s2631
          %v2633 = vmul.f32 %v2632, %v2602
          %v2634 = vmul.f32 %v2632, %v2603
          %2637 = vrot.lane.b32.xlu0 %v2633, 127
          %v2638 = vpop.permute.xlu0 %2637
          %2639 = vrot.lane.b32.xlu0 %v2634, 127
          %v2640 = vpop.permute.xlu0 %2639
          %v2643 = vadd.f32 %v2615, %v2638
          %v2644 = vadd.f32 %v2616, %v2640
          %s2645 = sld [smem:[#allocation7 + $0x17]]
          %v2646 = vstv %s2645
          %v2647 = vmul.f32 %v2646, %v2602
          %v2648 = vmul.f32 %v2646, %v2603
          %2651 = vrot.lane.b32.xlu0 %v2647, 126
          %v2652 = vpop.permute.xlu0 %2651
          %2653 = vrot.lane.b32.xlu0 %v2648, 126
          %v2654 = vpop.permute.xlu0 %2653
          %v2657 = vadd.f32 %v2629, %v2652
          %v2658 = vadd.f32 %v2630, %v2654
          %s2659 = sld [smem:[#allocation7 + $0x97]]
          %v2660 = vstv %s2659
          %v2661 = vmul.f32 %v2660, %v2602
          %v2662 = vmul.f32 %v2660, %v2603
          %2665 = vrot.lane.b32.xlu0 %v2661, 126
          %v2666 = vpop.permute.xlu0 %2665
          %2667 = vrot.lane.b32.xlu0 %v2662, 126
          %v2668 = vpop.permute.xlu0 %2667
          %v2671 = vadd.f32 %v2643, %v2666
          %v2672 = vadd.f32 %v2644, %v2668
          %s2673 = sld [smem:[#allocation7 + $0x1f]]
          %v2674 = vstv %s2673
          %v2675 = vmul.f32 %v2674, %v2602
          %v2676 = vmul.f32 %v2674, %v2603
          %v2677 = vmul.f32 %v2674, %v2604
          %v2681 = vrot.slane %v2675, 1
          %v2682 = vrot.slane %v2676, 1
          %v2683 = vsel %vm530, %v2681, %v2682
          %v2684 = vrot.slane %v2677, 1
          %v2685 = vsel %vm530, %v2682, %v2684
          %v2688 = vadd.f32 %v2657, %v2683
          %v2689 = vadd.f32 %v2658, %v2685
          %s2690 = sld [smem:[#allocation7 + $0x9f]]
          %v2691 = vstv %s2690
          %v2692 = vmul.f32 %v2691, %v2602
          %v2693 = vmul.f32 %v2691, %v2603
          %v2694 = vmul.f32 %v2691, %v2604
          %v2698 = vrot.slane %v2692, 1
          %v2699 = vrot.slane %v2693, 1
          %v2700 = vsel %vm530, %v2698, %v2699
          %v2701 = vrot.slane %v2694, 1
          %v2702 = vsel %vm530, %v2699, %v2701
          %v2705 = vadd.f32 %v2671, %v2700
          %v2706 = vadd.f32 %v2672, %v2702
          %s2707 = sld [smem:[#allocation7 + $0x27]]
          %v2708 = vstv %s2707
          %v2709 = vmul.f32 %v2708, %v2602
          %v2710 = vmul.f32 %v2708, %v2603
          %v2711 = vmul.f32 %v2708, %v2604
          %v2715 = vrot.slane %v2709, 1
          %v2716 = vrot.slane %v2710, 1
          %v2717 = vsel %vm530, %v2715, %v2716
          %v2718 = vrot.slane %v2711, 1
          %v2719 = vsel %vm530, %v2716, %v2718
          %2720 = vrot.lane.b32.xlu0 %v2717, 127
          %v2721 = vpop.permute.xlu0 %2720
          %2722 = vrot.lane.b32.xlu0 %v2719, 127
          %v2723 = vpop.permute.xlu0 %2722
          %v2726 = vadd.f32 %v2688, %v2721
          %v2727 = vadd.f32 %v2689, %v2723
          %s2728 = sld [smem:[#allocation7 + $0xa7]]
          %v2729 = vstv %s2728
          %v2730 = vmul.f32 %v2729, %v2602
          %v2731 = vmul.f32 %v2729, %v2603
          %v2732 = vmul.f32 %v2729, %v2604
          %v2736 = vrot.slane %v2730, 1
          %v2737 = vrot.slane %v2731, 1
          %v2738 = vsel %vm530, %v2736, %v2737
          %v2739 = vrot.slane %v2732, 1
          %v2740 = vsel %vm530, %v2737, %v2739
          %2741 = vrot.lane.b32.xlu0 %v2738, 127
          %v2742 = vpop.permute.xlu0 %2741
          %2743 = vrot.lane.b32.xlu0 %v2740, 127
          %v2744 = vpop.permute.xlu0 %2743
          %v2747 = vadd.f32 %v2705, %v2742
          %v2748 = vadd.f32 %v2706, %v2744
          %s2749 = sld [smem:[#allocation7 + $0x2f]]
          %v2750 = vstv %s2749
          %v2751 = vmul.f32 %v2750, %v2602
          %v2752 = vmul.f32 %v2750, %v2603
          %v2753 = vmul.f32 %v2750, %v2604
          %v2757 = vrot.slane %v2751, 1
          %v2758 = vrot.slane %v2752, 1
          %v2759 = vsel %vm530, %v2757, %v2758
          %v2760 = vrot.slane %v2753, 1
          %v2761 = vsel %vm530, %v2758, %v2760
          %2762 = vrot.lane.b32.xlu0 %v2759, 126
          %v2763 = vpop.permute.xlu0 %2762
          %2764 = vrot.lane.b32.xlu0 %v2761, 126
          %v2765 = vpop.permute.xlu0 %2764
          %v2768 = vadd.f32 %v2726, %v2763
          %v2769 = vadd.f32 %v2727, %v2765
          %s2770 = sld [smem:[#allocation7 + $0xaf]]
          %v2771 = vstv %s2770
          %v2772 = vmul.f32 %v2771, %v2602
          %v2773 = vmul.f32 %v2771, %v2603
          %v2774 = vmul.f32 %v2771, %v2604
          %v2778 = vrot.slane %v2772, 1
          %v2779 = vrot.slane %v2773, 1
          %v2780 = vsel %vm530, %v2778, %v2779
          %v2781 = vrot.slane %v2774, 1
          %v2782 = vsel %vm530, %v2779, %v2781
          %2783 = vrot.lane.b32.xlu0 %v2780, 126
          %v2784 = vpop.permute.xlu0 %2783
          %2785 = vrot.lane.b32.xlu0 %v2782, 126
          %v2786 = vpop.permute.xlu0 %2785
          %v2789 = vadd.f32 %v2747, %v2784
          %v2790 = vadd.f32 %v2748, %v2786
          %s2791 = sld [smem:[#allocation7 + $0x37]]
          %v2792 = vstv %s2791
          %v2793 = vmul.f32 %v2792, %v2602
          %v2794 = vmul.f32 %v2792, %v2603
          %v2795 = vmul.f32 %v2792, %v2604
          %v2799 = vrot.slane %v2793, 2
          %v2800 = vrot.slane %v2794, 2
          %v2801 = vsel %vm649, %v2799, %v2800
          %v2802 = vrot.slane %v2795, 2
          %v2803 = vsel %vm649, %v2800, %v2802
          %v2806 = vadd.f32 %v2768, %v2801
          %v2807 = vadd.f32 %v2769, %v2803
          %s2808 = sld [smem:[#allocation7 + $0xb7]]
          %v2809 = vstv %s2808
          %v2810 = vmul.f32 %v2809, %v2602
          %v2811 = vmul.f32 %v2809, %v2603
          %v2812 = vmul.f32 %v2809, %v2604
          %v2816 = vrot.slane %v2810, 2
          %v2817 = vrot.slane %v2811, 2
          %v2818 = vsel %vm649, %v2816, %v2817
          %v2819 = vrot.slane %v2812, 2
          %v2820 = vsel %vm649, %v2817, %v2819
          %v2823 = vadd.f32 %v2789, %v2818
          %v2824 = vadd.f32 %v2790, %v2820
          %s2825 = sld [smem:[#allocation7 + $0x3f]]
          %v2826 = vstv %s2825
          %v2827 = vmul.f32 %v2826, %v2602
          %v2828 = vmul.f32 %v2826, %v2603
          %v2829 = vmul.f32 %v2826, %v2604
          %v2833 = vrot.slane %v2827, 2
          %v2834 = vrot.slane %v2828, 2
          %v2835 = vsel %vm649, %v2833, %v2834
          %v2836 = vrot.slane %v2829, 2
          %v2837 = vsel %vm649, %v2834, %v2836
          %2838 = vrot.lane.b32.xlu0 %v2835, 127
          %v2839 = vpop.permute.xlu0 %2838
          %2840 = vrot.lane.b32.xlu0 %v2837, 127
          %v2841 = vpop.permute.xlu0 %2840
          %v2844 = vadd.f32 %v2806, %v2839
          %v2845 = vadd.f32 %v2807, %v2841
          %s2846 = sld [smem:[#allocation7 + $0xbf]]
          %v2847 = vstv %s2846
          %v2848 = vmul.f32 %v2847, %v2602
          %v2849 = vmul.f32 %v2847, %v2603
          %v2850 = vmul.f32 %v2847, %v2604
          %v2854 = vrot.slane %v2848, 2
          %v2855 = vrot.slane %v2849, 2
          %v2856 = vsel %vm649, %v2854, %v2855
          %v2857 = vrot.slane %v2850, 2
          %v2858 = vsel %vm649, %v2855, %v2857
          %2859 = vrot.lane.b32.xlu0 %v2856, 127
          %v2860 = vpop.permute.xlu0 %2859
          %2861 = vrot.lane.b32.xlu0 %v2858, 127
          %v2862 = vpop.permute.xlu0 %2861
          %v2865 = vadd.f32 %v2823, %v2860
          %v2866 = vadd.f32 %v2824, %v2862
          %s2867 = sld [smem:[#allocation7 + $0x47]]
          %v2868 = vstv %s2867
          %v2869 = vmul.f32 %v2868, %v2602
          %v2870 = vmul.f32 %v2868, %v2603
          %v2871 = vmul.f32 %v2868, %v2604
          %v2875 = vrot.slane %v2869, 2
          %v2876 = vrot.slane %v2870, 2
          %v2877 = vsel %vm649, %v2875, %v2876
          %v2878 = vrot.slane %v2871, 2
          %v2879 = vsel %vm649, %v2876, %v2878
          %2880 = vrot.lane.b32.xlu0 %v2877, 126
          %v2881 = vpop.permute.xlu0 %2880
          %2882 = vrot.lane.b32.xlu0 %v2879, 126
          %v2883 = vpop.permute.xlu0 %2882
          %v2886 = vadd.f32 %v2844, %v2881
          %v2887 = vadd.f32 %v2845, %v2883
          %s2888 = sld [smem:[#allocation7 + $0xc7]]
          %v2889 = vstv %s2888
          %v2890 = vmul.f32 %v2889, %v2602
          %v2891 = vmul.f32 %v2889, %v2603
          %v2892 = vmul.f32 %v2889, %v2604
          %v2896 = vrot.slane %v2890, 2
          %v2897 = vrot.slane %v2891, 2
          %v2898 = vsel %vm649, %v2896, %v2897
          %v2899 = vrot.slane %v2892, 2
          %v2900 = vsel %vm649, %v2897, %v2899
          %2901 = vrot.lane.b32.xlu0 %v2898, 126
          %v2902 = vpop.permute.xlu0 %2901
          %2903 = vrot.lane.b32.xlu0 %v2900, 126
          %v2904 = vpop.permute.xlu0 %2903
          %v2907 = vadd.f32 %v2865, %v2902
          %v2908 = vadd.f32 %v2866, %v2904
          %s2909 = sld [smem:[#allocation7 + $0x48]]
          %v2910 = vstv %s2909
          %v2911 = vadd.f32 %v2886, %v2910
          %v2912 = vadd.f32 %v2887, %v2910
          %s2913 = sld [smem:[#allocation7 + $0xc8]]
          %v2914 = vstv %s2913
          %v2915 = vadd.f32 %v2907, %v2914
          %v2916 = vadd.f32 %v2908, %v2914
          %vm2917 = vcmask 130048
          %2918 = vst.msk [vmem:[#allocation3] sm:$0xff] %vm2917, %v2911
          %2919 = vst.msk [vmem:[#allocation3 + $0x8] sm:$0xff] %vm2917, %v2912
          %2920 = vst.msk [vmem:[#allocation3 + $0x10] sm:$0xff] %vm2917, %v2915
          %2921 = vst.msk [vmem:[#allocation3 + $0x18] sm:$0xff] %vm2917, %v2916
        $region48: #{phi_ab_apply.1} parent=35 // pred_fallthru
          _
        %v2922 = vld [vmem:[%s299] sm:$0xf]
        %v2923 = vmul.f32 %v2922, 15.0
        %v2924 = vmax.f32 %v2923, 0.0
        %v2925 = vmin.f32 %v2924, 15.0
        %v2926 = vlaneseq
        %v2927 = vshrl.u32 %v2926, 7
        %v2928 = vadd.s32 %v2927, 8
        %v2929 = vcvt.s32.f32 %v2927
        %v2930 = vcvt.s32.f32 %v2928
        %v2932 = vlaneseq
        %v2933 = vshrl.u32 %v2932, 7
        %v2934 = vsub.s32 0, %v2933
        %v2935 = vrot.slane %v2925, %v2934
        %v2936 = vlaneseq
        %v2937 = vshrl.u32 %v2936, 7
        %v2938 = vsub.s32 2, %v2937
        %v2939 = vrot.slane %v2925, %v2938
        %v2942 = vlaneseq
        %v2943 = vshrl.u32 %v2942, 7
        %v2944 = vsub.s32 0, %v2943
        %v2945 = vrot.slane %v2935, %v2944
        %v2946 = vlaneseq
        %v2947 = vshrl.u32 %v2946, 7
        %v2948 = vsub.s32 0, %v2947
        %v2949 = vrot.slane %v2939, %v2948
        %v2950 = vsub.f32 %v2929, %v2945
        %v2951 = vsub.f32 %v2929, %v2949
        %v2952 = vsub.f32 %v2930, %v2945
        %v2953 = vsub.f32 %v2930, %v2949
        %v2954 = vand.u32 2147483647, %v2950
        %v2955 = vand.u32 2147483647, %v2951
        %v2956 = vand.u32 2147483647, %v2952
        %v2957 = vand.u32 2147483647, %v2953
        %v2958 = vsub.f32 1.0, %v2954
        %v2959 = vsub.f32 1.0, %v2955
        %v2960 = vsub.f32 1.0, %v2956
        %v2961 = vsub.f32 1.0, %v2957
        %v2962 = vmax.f32 %v2958, 0.0
        %v2963 = vmax.f32 %v2959, 0.0
        %v2964 = vmax.f32 %v2960, 0.0
        %v2965 = vmax.f32 %v2961, 0.0
        %v2966 = vlaneseq
        %v2967 = vshrl.u32 %v2966, 7
        %v2968 = vsub.s32 1, %v2967
        %v2969 = vrot.slane %v2925, %v2968
        %v2970 = vlaneseq
        %v2971 = vshrl.u32 %v2970, 7
        %v2972 = vsub.s32 3, %v2971
        %v2973 = vrot.slane %v2925, %v2972
        %v2976 = vlaneseq
        %v2977 = vshrl.u32 %v2976, 7
        %v2978 = vsub.s32 1, %v2977
        %v2979 = vrot.slane %v2969, %v2978
        %v2980 = vlaneseq
        %v2981 = vshrl.u32 %v2980, 7
        %v2982 = vsub.s32 1, %v2981
        %v2983 = vrot.slane %v2973, %v2982
        %v2984 = vsub.f32 %v2929, %v2979
        %v2985 = vsub.f32 %v2929, %v2983
        %v2986 = vsub.f32 %v2930, %v2979
        %v2987 = vsub.f32 %v2930, %v2983
        %v2988 = vand.u32 2147483647, %v2984
        %v2989 = vand.u32 2147483647, %v2985
        %v2990 = vand.u32 2147483647, %v2986
        %v2991 = vand.u32 2147483647, %v2987
        %v2992 = vsub.f32 1.0, %v2988
        %v2993 = vsub.f32 1.0, %v2989
        %v2994 = vsub.f32 1.0, %v2990
        %v2995 = vsub.f32 1.0, %v2991
        %v2996 = vmax.f32 %v2992, 0.0
        %v2997 = vmax.f32 %v2993, 0.0
        %v2998 = vmax.f32 %v2994, 0.0
        %v2999 = vmax.f32 %v2995, 0.0
        %v3000 = vld [vmem:[#allocation3] sm:$0xff]
        %v3001 = vld [vmem:[#allocation3 + $0x8] sm:$0xff]
        %v3002 = vld [vmem:[#allocation3 + $0x10] sm:$0xff]
        %v3003 = vld [vmem:[#allocation3 + $0x18] sm:$0xff]
        %vm3004 = vcmask 130048
        %v3006 = vsel %vm3004, %v3000, 0
        %v3009 = vsel %vm3004, %v3001, 0
        %v3012 = vsel %vm3004, %v3002, 0
        %v3015 = vsel %vm3004, %v3003, 0
        %3017 = vmatprep.subr.mxu0 %v2997
        %3018 = vmatpush1.msra.mxu0 %v2996
        %3019 = vmatprep.subr.mxu0 %v2999
        %3020 = vmatpush1.msra.mxu0 %v2998
        %3021 = vmatprep.subr.mxu0 0.0
        %3022 = vmatpush1.msra.mxu0 0.0
        %3023 = vmatprep.subr.mxu0 0.0
        %3024 = vmatpush1.msra.mxu0 0.0
        %3025 = vmatprep.subr.mxu0 0.0
        %3026 = vmatpush1.msra.mxu0 0.0
        %3027 = vmatprep.subr.mxu0 0.0
        %3028 = vmatpush1.msra.mxu0 0.0
        %3029 = vmatprep.subr.mxu0 0.0
        %3030 = vmatpush1.msra.mxu0 0.0
        %3031 = vmatprep.subr.mxu0 0.0
        %3032 = vmatpush1.msra.mxu0 0.0
        %3033 = vmatprep.subr.mxu0 0.0
        %3034 = vmatpush1.msra.mxu0 0.0
        %3035 = vmatprep.subr.mxu0 0.0
        %3036 = vmatpush1.msra.mxu0 0.0
        %3037 = vmatprep.subr.mxu0 0.0
        %3038 = vmatpush1.msra.mxu0 0.0
        %3039 = vmatprep.subr.mxu0 0.0
        %3040 = vmatpush1.msra.mxu0 0.0
        %3041 = vmatprep.subr.mxu0 0.0
        %3042 = vmatpush1.msra.mxu0 0.0
        %3043 = vmatprep.subr.mxu0 0.0
        %3044 = vmatpush1.msra.mxu0 0.0
        %3045 = vmatprep.subr.mxu0 0.0
        %3046 = vmatpush1.msra.mxu0 0.0
        %3047 = vmatprep.subr.mxu0 0.0
        %3048 = vmatpush1.msra.mxu0 0.0
        %3049 = vmatprep.subr.mxu0 0.0
        %3050 = vmatpush1.msra.mxu0 0.0
        %3051 = vmatprep.subr.mxu0 0.0
        %3052 = vmatpush1.msra.mxu0 0.0
        %3053 = vmatprep.subr.mxu0 0.0
        %3054 = vmatpush1.msra.mxu0 0.0
        %3055 = vmatprep.subr.mxu0 0.0
        %3056 = vmatpush1.msra.mxu0 0.0
        %3057 = vmatprep.subr.mxu0 0.0
        %3058 = vmatpush1.msra.mxu0 0.0
        %3059 = vmatprep.subr.mxu0 0.0
        %3060 = vmatpush1.msra.mxu0 0.0
        %3061 = vmatprep.subr.mxu0 0.0
        %3062 = vmatpush1.msra.mxu0 0.0
        %3063 = vmatprep.subr.mxu0 0.0
        %3064 = vmatpush1.msra.mxu0 0.0
        %3065 = vmatprep.subr.mxu0 0.0
        %3066 = vmatpush1.msra.mxu0 0.0
        %3067 = vmatprep.subr.mxu0 0.0
        %3068 = vmatpush1.msra.mxu0 0.0
        %3069 = vmatprep.subr.mxu0 0.0
        %3070 = vmatpush1.msra.mxu0 0.0
        %3071 = vmatprep.subr.mxu0 0.0
        %3072 = vmatpush1.msra.mxu0 0.0
        %3073 = vmatprep.subr.mxu0 0.0
        %3074 = vmatpush1.msra.mxu0 0.0
        %3075 = vmatprep.subr.mxu0 0.0
        %3076 = vmatpush1.msra.mxu0 0.0
        %3077 = vmatprep.subr.mxu0 0.0
        %3078 = vmatpush1.msra.mxu0 0.0
        %3079 = vmatprep.subr.mxu0 0.0
        %3080 = vmatpush1.msra.mxu0 0.0
        %3081 = vmatprep.mubr.f32.mxu0 0.0
        %3082 = vmatmul.mubr.f32.gmra.mrb[0].mxu0 %v3006
        %v3083 = vpop.f32.mrb[0].mxu0
        %v3084 = vadd.f32 0.0, %v3083
        %v3085 = vpop.f32.mrb[0].mxu0
        %v3086 = vadd.f32 0.0, %v3085
        %3087 = vmatprep.mubr.f32.mxu0 0.0
        %3088 = vmatmul.mubr.f32.gmra.mrb[0].mxu0 %v3009
        %v3089 = vpop.f32.mrb[0].mxu0
        %v3090 = vadd.f32 0.0, %v3089
        %v3091 = vpop.f32.mrb[0].mxu0
        %v3092 = vadd.f32 0.0, %v3091
        %3093 = vmatprep.mubr.f32.mxu0 0.0
        %3094 = vmatmul.mubr.f32.gmra.mrb[0].mxu0 %v3012
        %v3095 = vpop.f32.mrb[0].mxu0
        %v3096 = vadd.f32 0.0, %v3095
        %v3097 = vpop.f32.mrb[0].mxu0
        %v3098 = vadd.f32 0.0, %v3097
        %3099 = vmatprep.mubr.f32.mxu0 0.0
        %3100 = vmatmul.mubr.f32.gmra.mrb[0].mxu0 %v3015
        %v3101 = vpop.f32.mrb[0].mxu0
        %v3102 = vadd.f32 0.0, %v3101
        %v3103 = vpop.f32.mrb[0].mxu0
        %v3104 = vadd.f32 0.0, %v3103
        %3105 = vdwg.mxu0
        %v3106 = vmul.f32 %v3084, %v2962
        %v3107 = vmul.f32 %v3086, %v2963
        %v3108 = vmul.f32 %v3090, %v2964
        %v3109 = vmul.f32 %v3092, %v2965
        %v3110 = vadd.f32 %v3106, %v3108
        %v3111 = vrot.slane %v3110, 4
        %v3112 = vadd.f32 %v3110, %v3111
        %v3113 = vrot.slane %v3112, 2
        %v3114 = vadd.f32 %v3112, %v3113
        %v3115 = vrot.slane %v3114, 1
        %v3116 = vadd.f32 %v3114, %v3115
        %v3117 = vadd.f32 %v3107, %v3109
        %v3118 = vrot.slane %v3117, 4
        %v3119 = vadd.f32 %v3117, %v3118
        %v3120 = vrot.slane %v3119, 2
        %v3121 = vadd.f32 %v3119, %v3120
        %v3122 = vrot.slane %v3121, 1
        %v3123 = vadd.f32 %v3121, %v3122
        %v3124 = vmul.f32 %v3096, %v2962
        %v3125 = vmul.f32 %v3098, %v2963
        %v3126 = vmul.f32 %v3102, %v2964
        %v3127 = vmul.f32 %v3104, %v2965
        %v3128 = vadd.f32 %v3124, %v3126
        %v3129 = vrot.slane %v3128, 4
        %v3130 = vadd.f32 %v3128, %v3129
        %v3131 = vrot.slane %v3130, 2
        %v3132 = vadd.f32 %v3130, %v3131
        %v3133 = vrot.slane %v3132, 1
        %v3134 = vadd.f32 %v3132, %v3133
        %v3135 = vadd.f32 %v3125, %v3127
        %v3136 = vrot.slane %v3135, 4
        %v3137 = vadd.f32 %v3135, %v3136
        %v3138 = vrot.slane %v3137, 2
        %v3139 = vadd.f32 %v3137, %v3138
        %v3140 = vrot.slane %v3139, 1
        %v3141 = vadd.f32 %v3139, %v3140
        %v3144 = vcombine.low %v3116, %v3123
        %v3146 = vunpack.c.l.s4 1983009808
        %v3147 = vunpack.c.0.s8 %v3146
        %v3148 = vlaneseq
        %v3149 = vshrl.u32 %v3148, 7
        %v3150 = vsub.s32 %v3147, %v3149
        %v3151 = vrot.slane %v3144, %v3150
        %v3153 = vadd.f32 %v2922, %v3151
        %v3156 = vunpack.c.l.s4 1966171168
        %v3157 = vunpack.c.0.s8 %v3156
        %v3158 = vlaneseq
        %v3159 = vshrl.u32 %v3158, 7
        %v3160 = vsub.s32 %v3157, %v3159
        %v3161 = vrot.slane %v3153, %v3160
        %v3163 = vlaneseq
        %vm3164 = vcmp.ge.s32.totalorder %v3163, 0
        %vm3165 = vcmp.lt.s32.totalorder %v3163, 256
        %vm3166 = vmand %vm3164, %vm3165
        %3167 = vst.msk [vmem:[%s309] ss:$2 sm:$0x3] %vm3166, %v3161
        %v3170 = vcombine.low %v3134, %v3141
        %v3172 = vunpack.c.l.s4 1983009808
        %v3173 = vunpack.c.0.s8 %v3172
        %v3174 = vlaneseq
        %v3175 = vshrl.u32 %v3174, 7
        %v3176 = vsub.s32 %v3173, %v3175
        %v3177 = vrot.slane %v3170, %v3176
        %v3178 = vrot.slane %v3177, 7
        %v3180 = vadd.f32 %v2922, %v3178
        %v3183 = vunpack.c.l.s4 1966171168
        %v3184 = vunpack.c.0.s8 %v3183
        %v3185 = vlaneseq
        %v3186 = vshrl.u32 %v3185, 7
        %v3187 = vsub.s32 %v3184, %v3186
        %v3188 = vrot.slane %v3180, %v3187
        %v3189 = vcombine.high %v3188, %v3188
        %s3191 = scalar_lea.vmem %s309, 1
        %3192 = vst.msk [vmem:[%s3191] ss:$2 sm:$0x3] %vm3166, %v3189
        %s3193 = smul.u32 2, %s24
        %p3194 = scmp.lt.s32.totalorder %s23, 1
        %s3195 = scalar_select %p3194, %s23, 1
        %p3196 = scmp.lt.s32.totalorder %s3193, 1
        %s3197 = scalar_select %p3196, %s3193, 1
        %s3198 = smul.addr %s3195, 2
        %s3199 = sadd.s32 %s3197, %s3198
        %s3200 = smul.addr %s3199, 2
        %s3201 = scalar_lea.vmem %s4, %s3200
        // Predicated region
        $region49: #{phi_ab_apply.1} parent=35 // pred_check
          %p3202 = pneg %p152
        $region50: #{phi_ab_apply.1} parent=35 // pred_check_branch
          %3204 = sbr.rel (%p3202) target = $region52
        $region51: #{phi_ab_apply.1} parent=35 // pred_region
          %s3205 = smul.u32 2, %s24
        $region52: #{phi_ab_apply.1} parent=35 // pred_fallthru
          _
      $region36: #{phi_ab_apply.1} parent=5 // pred_fallthru
        _
      %p3206 = scmp.le.s32.totalorder 2, %s14
      // Predicated region
      $region53: #{phi_ab_apply.1} parent=5 // pred_check
        %p3207 = pneg %p3206
      $region54: #{phi_ab_apply.1} parent=5 // pred_check_branch
        %3209 = sbr.rel (%p3207) target = $region56
      $region55: #{phi_ab_apply.1} parent=5 // pred_region
        %s3210 = ssub.s32 %s14, 2
        // Predicated region
        $region57: #{phi_ab_apply.1} parent=55 // pred_check
          %p3211 = pneg %p158
        $region58: #{phi_ab_apply.1} parent=55 // pred_check_branch
          %3213 = sbr.rel (%p3211) target = $region60
        $region59: #{phi_ab_apply.1} parent=55 // pred_region
          %s3214 = smul.u32 2, %s26
          %p3215 = scmp.lt.s32.totalorder %s25, 1
          %s3216 = scalar_select %p3215, %s25, 1
          %p3217 = scmp.lt.s32.totalorder %s3214, 1
          %s3218 = scalar_select %p3217, %s3214, 1
          %s3219 = smul.addr %s3216, 2
          %s3220 = sadd.s32 %s3218, %s3219
          %s3221 = smul.addr %s3220, 2
          %s3222 = scalar_lea.vmem %s4, %s3221
        $region60: #{phi_ab_apply.1} parent=55 // pred_fallthru
          _
      $region56: #{phi_ab_apply.1} parent=5 // pred_fallthru
        _
    $region6: #{phi_ab_apply.1} parent=1 // loop_footer
      %s18 = sadd.s32 1, %s14
    $region7: #{phi_ab_apply.1} parent=1 // loop_footer_branch
      %13 = sbr.rel target = $region3
    $region8: #{phi_ab_apply.1} parent=1 // loop_exit
      _
    %3223 = vsyncpa [#allocation5], 1
    %s3224 = scalar_lea.sflag [#allocation5], 1
    %3225 = vsyncpa %s3224, 1
    %3226 = vsyncpa [#allocation6], 1
    %s3227 = scalar_lea.sflag [#allocation6], 1
    %3228 = vsyncpa %s3227, 1

</llo_original>
